<compile_context>
chip_gen: v7x
topology: tpu7x:2x2x1
jax: 0.10.0
libtpu: 0.0.40
codegen_flags: <defaults>
</compile_context>

<pallas_src>
import functools

import jax
import jax.numpy as jnp
from jax import lax
from jax.experimental import pallas as pl
from jax.experimental.pallas import tpu as pltpu

EPS = 1e-5
LANE = 128


def _round_up(v, m):
    return (v + m - 1) // m * m


def _pick_row_tile(ho, wo, target_pixels=1024):
    """Largest divisor of ho giving ~target_pixels output pixels per tile."""
    cap = min(ho, max(1, target_pixels // max(wo, 1)))
    for th in range(cap, 0, -1):
        if ho % th == 0:
            return th
    return 1


# ------------------------------ Pallas kernel ------------------------------ #
def _basic_block_kernel(x_ref, w1_ref, sh1_ref, w2_ref, sh2_ref, *rest,
                        stride, has_proj, th, wo):
    """Fused BasicBlock forward for one (image, output-row-tile) grid step.

    x_ref:   (s*s, 1, Hp, Wp, CinP) bf16   stride-phase views of padded input
    w1_ref:  (9, CinP, CoutP)       bf16   conv1 weights (BN1 scale folded)
    sh1_ref: (1, CoutP)             f32    folded BN1 shift
    w2_ref:  (9, CoutP, CoutP)      bf16   conv2 weights (BN2 scale folded)
    sh2_ref: (1, CoutP)             f32    folded BN2 shift
    rest:    has_proj: (wsc_ref, shsc_ref, o_ref, acc_ref, mid_ref)
             else    : (o_ref, acc_ref, mid_ref)
    o_ref:   (1, TH, Wo, CoutP)     bf16   output row tile
    acc_ref: (TH*Wo, CoutP)         f32    VMEM accumulator scratch
    mid_ref: (Ho+2, Wo+2, CoutP)    bf16   padded conv1 output (per image)
    """
    if has_proj:
        wsc_ref, shsc_ref, o_ref, acc_ref, mid_ref = rest
    else:
        o_ref, acc_ref, mid_ref = rest

    s = stride
    coutp = o_ref.shape[-1]
    m = th * wo

    def accum_conv(load_tap, w_ref):
        """9 accumulating (TH*Wo, C) @ (C, CoutP) MXU matmuls into acc_ref."""
        first = True
        for kh in range(3):
            for kw in range(3):
                slab = load_tap(kh, kw)                        # (TH, Wo, C)
                t = jnp.dot(slab.reshape(m, slab.shape[-1]),
                            w_ref[kh * 3 + kw],
                            preferred_element_type=jnp.float32)
                if first:
                    acc_ref[...] = t
                    first = False
                else:
                    acc_ref[...] += t

    # ---- conv1 + bn1 + relu: whole image into the padded VMEM scratch ------
    # Runs once per image (at the first row tile); later tiles of the same
    # image reuse mid_ref (row-tile grid axis is "arbitrary" => sequential).
    @pl.when(pl.program_id(1) == 0)
    def _conv1():
        mid_ref[...] = jnp.zeros_like(mid_ref)        # zero the 1-pixel halo

        def chunk(c, carry):
            r0 = c * th

            def tap(kh, kw):
                ph = (kh % s) * s + (kw % s)
                return x_ref[ph, 0, pl.ds(r0 + kh // s, th),
                             pl.ds(kw // s, wo), :]

            accum_conv(tap, w1_ref)
            y = jnp.maximum(acc_ref[...] + sh1_ref[...], 0.0)   # BN shift+ReLU
            mid_ref[pl.ds(1 + r0, th), pl.ds(1, wo), :] = (
                y.reshape(th, wo, coutp).astype(mid_ref.dtype))
            return carry

        lax.fori_loop(0, pl.num_programs(1), chunk, 0)

    # ---- conv2 + bn2 + shortcut + relu for this row tile --------------------
    row0 = pl.program_id(1) * th
    accum_conv(lambda kh, kw: mid_ref[pl.ds(row0 + kh, th), pl.ds(kw, wo), :],
               w2_ref)
    out = acc_ref[...] + sh2_ref[...]

    if has_proj:
        # 1x1/stride-s projection: x[::s, ::s] == phase (1%s, 1%s) of x_ref,
        # already VMEM-resident; one extra full-tile matmul.
        ph = (1 % s) * s + (1 % s)
        off = 1 // s
        xs = x_ref[ph, 0, pl.ds(row0 + off, th), pl.ds(off, wo), :]
        out = out + (jnp.dot(xs.reshape(m, xs.shape[-1]), wsc_ref[...],
                             preferred_element_type=jnp.float32)
                     + shsc_ref[...])
    else:
        # identity shortcut: interior of the (single, padded) phase of x.
        res = x_ref[0, 0, pl.ds(row0 + 1, th), pl.ds(1, wo), :]
        out = out + res.reshape(m, coutp).astype(jnp.float32)

    out = jnp.maximum(out, 0.0)
    o_ref[0, :, :, :] = out.reshape(th, wo, coutp).astype(o_ref.dtype)


# ------------------------------- host glue --------------------------------- #
def _make_phases(x_nhwc, stride):
    """NHWC -> stride-phase views of the zero-padded (pad=1) input.

    Returns (s*s, N, Hph, Wph, C) bf16 and the 3x3-conv output size (Ho, Wo).
    Tap (kh, kw) reads phase[(kh%s)*s + kw%s] at offset (kh//s, kw//s).
    """
    n, h, w, c = x_nhwc.shape
    s = stride
    ho = (h + 2 - 3) // s + 1
    wo = (w + 2 - 3) // s + 1
    off = 2 // s                          # max in-phase tap offset
    hph, wph = ho + off, wo + off
    hp, wp = s * hph, s * wph             # pad so phase extraction never OOBs
    xp = jnp.pad(x_nhwc, ((0, 0), (1, hp - h - 1), (1, wp - w - 1), (0, 0)))
    phases = [xp[:, pr::s, pc::s, :][:, :hph, :wph, :]
              for pr in range(s) for pc in range(s)]
    return jnp.stack(phases, 0).astype(jnp.bfloat16), ho, wo


def _pack_conv3x3(w_oihw, scale, cinp, coutp):
    """(Cout,Cin,3,3) + BN scale -> (9, CinP, CoutP) bf16, scale folded in."""
    cout, cin = w_oihw.shape[:2]
    w = w_oihw * scale[:, None, None, None]
    w = jnp.transpose(w, (2, 3, 1, 0)).reshape(9, cin, cout)
    w = jnp.pad(w, ((0, 0), (0, cinp - cin), (0, coutp - cout)))
    return w.astype(jnp.bfloat16)


def _pad_row(v, cp):
    return jnp.pad(v, (0, cp - v.shape[0])).reshape(1, cp).astype(jnp.float32)


def fold_bn(gamma, beta, mean, var):
    scale = gamma * lax.rsqrt(var + EPS)
    shift = beta - mean * scale
    return scale, shift


def basic_block_pallas(x_nchw, p, stride, row_tile=None, nchw_out=True):
    """Forward of BasicBlock (eval-mode BN) as a single fused Pallas call."""
    n, cin, h, w = x_nchw.shape
    cout = p["w1"].shape[0]
    cinp = _round_up(cin, LANE)
    coutp = _round_up(cout, LANE)

    # NHWC, channels zero-padded onto the 128-lane axis.
    x = jnp.transpose(x_nchw, (0, 2, 3, 1))
    x = jnp.pad(x, ((0, 0), (0, 0), (0, 0), (0, cinp - cin)))

    sc1, sh1 = fold_bn(*p["bn1"])
    sc2, sh2 = fold_bn(*p["bn2"])
    w1 = _pack_conv3x3(p["w1"], sc1, cinp, coutp)
    w2 = _pack_conv3x3(p["w2"], sc2, coutp, coutp)

    phases, ho, wo = _make_phases(x, stride)      # (s*s, N, Hp, Wp, CinP) bf16
    s2, _, hp1, wp1, _ = phases.shape

    has_proj = "wsc" in p
    args = [phases, w1, _pad_row(sh1, coutp), w2, _pad_row(sh2, coutp)]
    if has_proj:
        ssc, bsc = fold_bn(*p["bnsc"])
        wsc = (p["wsc"].reshape(cout, cin) * ssc[:, None]).T       # (Cin, Cout)
        wsc = jnp.pad(wsc, ((0, cinp - cin), (0, coutp - cout))).astype(jnp.bfloat16)
        args += [wsc, _pad_row(bsc, coutp)]
    else:
        assert stride == 1 and cinp == coutp       # identity shortcut shapes

    th = row_tile or _pick_row_tile(ho, wo)
    assert ho % th == 0, (ho, th)

    in_specs = [
        # Per-image phase stack: block index constant along the row-tile axis,
        # so it is DMA'd once per image and stays resident in VMEM.
        pl.BlockSpec((s2, 1, hp1, wp1, cinp), lambda b, j: (0, b, 0, 0, 0)),
        pl.BlockSpec((9, cinp, coutp), lambda b, j: (0, 0, 0)),
        pl.BlockSpec((1, coutp), lambda b, j: (0, 0)),
        pl.BlockSpec((9, coutp, coutp), lambda b, j: (0, 0, 0)),
        pl.BlockSpec((1, coutp), lambda b, j: (0, 0)),
    ]
    if has_proj:
        in_specs += [pl.BlockSpec((cinp, coutp), lambda b, j: (0, 0)),
                     pl.BlockSpec((1, coutp), lambda b, j: (0, 0))]

    # VMEM limit derived from actual buffer sizes (double-buffered inputs and
    # output tile + scratch), so ResNet-scale shapes stay within v7x's 64 MiB
    # per TensorCore while keeping headroom on v5e/v6e.
    b16, b32 = 2, 4
    resident = s2 * hp1 * wp1 * cinp * b16
    weights = (9 * cinp * coutp + 9 * coutp * coutp
               + (cinp * coutp if has_proj else 0)) * b16
    shifts = (3 if has_proj else 2) * coutp * b32
    out_tile = th * wo * coutp * b16
    scratch = th * wo * coutp * b32 + (ho + 2) * (wo + 2) * coutp * b16
    est = 2 * (resident + weights + shifts + out_tile) + scratch
    vmem_limit = int(min(max(est + (8 << 20), 32 << 20), 96 << 20))

    kernel = functools.partial(_basic_block_kernel, stride=stride,
                               has_proj=has_proj, th=th, wo=wo)

    out = pl.pallas_call(
        kernel,
        out_shape=jax.ShapeDtypeStruct((n, ho, wo, coutp), jnp.bfloat16),
        grid=(n, ho // th),
        in_specs=in_specs,
        out_specs=pl.BlockSpec((1, th, wo, coutp), lambda b, j: (b, j, 0, 0)),
        scratch_shapes=[
            pltpu.VMEM((th * wo, coutp), jnp.float32),            # accumulator
            pltpu.VMEM((ho + 2, wo + 2, coutp), jnp.bfloat16),    # conv1 out
        ],
        compiler_params=pltpu.CompilerParams(
            # Row-tile axis must run sequentially (conv1 scratch computed at
            # j == 0 is reused by later tiles of the same image); the batch
            # axis stays parallel so a v7x megacore can split images across
            # its TensorCores.
            dimension_semantics=("parallel", "arbitrary"),
            vmem_limit_bytes=vmem_limit),
    )(*args)

    if not nchw_out:
        return out                 # padded NHWC bf16, for chaining blocks
    # block boundary: strip channel padding, back to NCHW f32
    return jnp.transpose(out[..., :cout].astype(jnp.float32), (0, 3, 1, 2))


# ----------------------- pure-JAX reference (check) ------------------------ #
def basic_block_ref(x, p, stride):
    def conv(y, w, s, pad):
        return lax.conv_general_dilated(
            y, w, (s, s), [(pad, pad), (pad, pad)],
            dimension_numbers=("NCHW", "OIHW", "NCHW"))

    def bn(y, bnp):
        g, b, m, v = bnp
        inv = lax.rsqrt(v + EPS)
        return (y - m[None, :, None, None]) * (g * inv)[None, :, None, None] \
            + b[None, :, None, None]

    out = jax.nn.relu(bn(conv(x, p["w1"], stride, 1), p["bn1"]))
    out = bn(conv(out, p["w2"], 1, 1), p["bn2"])
    sc = bn(conv(x, p["wsc"], stride, 0), p["bnsc"]) if "wsc" in p else x
    return jax.nn.relu(out + sc)


# ------------------------------ parameters --------------------------------- #
def init_params(key, inplanes, planes, stride):
    ks = jax.random.split(key, 12)

    def bn_params(k0, k1, k2, k3, c):
        gamma = 0.5 + jax.random.uniform(k0, (c,))
        beta = 0.1 * jax.random.normal(k1, (c,))
        mean = 0.1 * jax.random.normal(k2, (c,))
        var = 0.5 + jax.random.uniform(k3, (c,))
        return (gamma, beta, mean, var)

    p = {
        "w1": 0.1 * jax.random.normal(ks[0], (planes, inplanes, 3, 3)),
        "w2": 0.1 * jax.random.normal(ks[1], (planes, planes, 3, 3)),
        "bn1": bn_params(ks[2], ks[3], ks[4], ks[5], planes),
        "bn2": bn_params(ks[6], ks[7], ks[8], ks[9], planes),
    }
    if stride != 1 or inplanes != planes:
        p["wsc"] = 0.1 * jax.random.normal(ks[10], (planes, inplanes, 1, 1))
        p["bnsc"] = bn_params(ks[11], ks[2], ks[6], ks[3], planes)
    return jax.tree_util.tree_map(lambda a: a.astype(jnp.float32), p)


# --------------------------------- main ------------------------------------ #
if __name__ == "__main__":
    key = jax.random.PRNGKey(0)
    kx, kp1, kp2 = jax.random.split(key, 3)
    x = jax.random.normal(kx, (2, 4, 16, 16), dtype=jnp.float32)

    # bf16 MXU inputs / bf16 output (f32 accumulation) -> compare against the
    # f32 reference with a bf16-appropriate tolerance.
    tol = dict(atol=5e-2, rtol=5e-2)

    # Config A: identity shortcut (stride 1, Cin == Cout). row_tile=4 forces
    # several output-row tiles per image to exercise the multi-tile path and
    # the per-image conv1 VMEM scratch reuse.
    pA = init_params(kp1, 4, 4, 1)
    outA = jax.block_until_ready(basic_block_pallas(x, pA, 1, row_tile=4))
    refA = basic_block_ref(x, pA, 1)
    assert outA.shape == (2, 4, 16, 16)
    assert jnp.allclose(outA, refA, **tol), float(jnp.max(jnp.abs(outA - refA)))

    # Config B: projection shortcut (1x1 conv + BN read from the resident
    # phase stack), stride 2, channel change, multiple row tiles.
    pB = init_params(kp2, 4, 8, 2)
    outB = jax.block_until_ready(basic_block_pallas(x, pB, 2, row_tile=4))
    refB = basic_block_ref(x, pB, 2)
    assert outB.shape == (2, 8, 8, 8)
    assert jnp.allclose(outB, refB, **tol), float(jnp.max(jnp.abs(outB - refB)))

    print("KERNEL_OK")
</pallas_src>

<mosaic_0001>
module attributes {stable_mosaic.version = 11 : i64} {
  func.func @_basic_block_kernel(%arg0: i32, %arg1: i32, %arg2: memref<1x1x18x18x128xbf16, #tpu.memory_space<vmem>>, %arg3: memref<9x128x128xbf16, #tpu.memory_space<vmem>>, %arg4: memref<1x128xf32, #tpu.memory_space<vmem>>, %arg5: memref<9x128x128xbf16, #tpu.memory_space<vmem>>, %arg6: memref<1x128xf32, #tpu.memory_space<vmem>>, %arg7: memref<1x4x16x128xbf16, #tpu.memory_space<vmem>>, %arg8: memref<64x128xf32, #tpu.memory_space<vmem>>, %arg9: memref<18x18x128xbf16, #tpu.memory_space<vmem>>) attributes {dimension_semantics = [#tpu.dimension_semantics<parallel>, #tpu.dimension_semantics<arbitrary>], iteration_bounds = array<i64: 2, 4>, scalar_prefetch = 0 : i64, scratch_operands = 2 : i64, tpu.core_type = #tpu.core_type<tc>, window_params = [{transform_indices = @transform_0, window_bounds = array<i64: 1, 1, 18, 18, 128>}, {pipeline_mode = #tpu.pipeline_mode<synchronous>, transform_indices = @transform_1, window_bounds = array<i64: 9, 128, 128>}, {pipeline_mode = #tpu.pipeline_mode<synchronous>, transform_indices = @transform_2, window_bounds = array<i64: 1, 128>}, {pipeline_mode = #tpu.pipeline_mode<synchronous>, transform_indices = @transform_3, window_bounds = array<i64: 9, 128, 128>}, {pipeline_mode = #tpu.pipeline_mode<synchronous>, transform_indices = @transform_4, window_bounds = array<i64: 1, 128>}, {transform_indices = @transform_5, window_bounds = array<i64: 1, 4, 16, 128>}]} {
    %c0_i32 = arith.constant 0 : i32
    %0 = arith.cmpi eq, %arg1, %c0_i32 : i32
    %1 = arith.extui %0 : i1 to i32
    %c0_i32_0 = arith.constant 0 : i32
    %2 = arith.cmpi ne, %1, %c0_i32_0 : i32
    scf.if %2 {
      %cst_100 = arith.constant 0.000000e+00 : bf16
      %110 = vector.broadcast %cst_100 : bf16 to vector<18x18x128xbf16>
      %c0_101 = arith.constant 0 : index
      %c0_102 = arith.constant 0 : index
      %c0_103 = arith.constant 0 : index
      %111 = vector.load %arg9[%c0_101, %c0_102, %c0_103] : memref<18x18x128xbf16, #tpu.memory_space<vmem>>, vector<18x18x128xbf16>
      tpu.vector_store %arg9[%c0_101, %c0_102, %c0_103], %110 {strides = array<i32>} : memref<18x18x128xbf16, #tpu.memory_space<vmem>>, vector<18x18x128xbf16>,
      %c0_i32_104 = arith.constant 0 : i32
      %c4_i32_105 = arith.constant 4 : i32
      %112 = arith.addi %c0_i32_104, %c4_i32_105 : i32
      %c1_i32_106 = arith.constant 1 : i32
      scf.for %arg10 = %c0_i32_104 to %112 step %c1_i32_106  : i32 {
        %c4_i32_108 = arith.constant 4 : i32
        %113 = arith.muli %arg10, %c4_i32_108 : i32
        %c0_i32_109 = arith.constant 0 : i32
        %114 = arith.addi %113, %c0_i32_109 : i32
        %c0_110 = arith.constant 0 : index
        %c0_111 = arith.constant 0 : index
        %115 = arith.index_cast %114 : i32 to index
        %c0_112 = arith.constant 0 : index
        %c0_113 = arith.constant 0 : index
        %116 = vector.load %arg2[%c0_110, %c0_111, %115, %c0_112, %c0_113] : memref<1x1x18x18x128xbf16, #tpu.memory_space<vmem>>, vector<1x1x4x16x128xbf16>
        %117 = vector.shape_cast %116 : vector<1x1x4x16x128xbf16> to vector<4x16x128xbf16>
        %118 = vector.shape_cast %117 : vector<4x16x128xbf16> to vector<64x128xbf16>
        %c0_114 = arith.constant 0 : index
        %c0_115 = arith.constant 0 : index
        %c0_116 = arith.constant 0 : index
        %119 = vector.load %arg3[%c0_114, %c0_115, %c0_116] : memref<9x128x128xbf16, #tpu.memory_space<vmem>>, vector<1x128x128xbf16>
        %120 = vector.shape_cast %119 : vector<1x128x128xbf16> to vector<128x128xbf16>
        %cst_117 = arith.constant dense<0.000000e+00> : vector<64x128xf32>
        %121 = tpu.matmul %118, %120, %cst_117 {dimension_numbers = #tpu.dot_dimension_numbers<[1], [0], [0], [1], [0, 0, 1, 1], [], []>} : vector<64x128xbf16>, vector<128x128xbf16>, vector<64x128xf32> -> vector<64x128xf32>
        %c0_118 = arith.constant 0 : index
        %c0_119 = arith.constant 0 : index
        %122 = vector.load %arg8[%c0_118, %c0_119] : memref<64x128xf32, #tpu.memory_space<vmem>>, vector<64x128xf32>
        tpu.vector_store %arg8[%c0_118, %c0_119], %121 {strides = array<i32>} : memref<64x128xf32, #tpu.memory_space<vmem>>, vector<64x128xf32>,
        %c0_i32_120 = arith.constant 0 : i32
        %123 = arith.addi %113, %c0_i32_120 : i32
        %c0_121 = arith.constant 0 : index
        %c0_122 = arith.constant 0 : index
        %124 = arith.index_cast %123 : i32 to index
        %c1_123 = arith.constant 1 : index
        %c0_124 = arith.constant 0 : index
        %125 = vector.load %arg2[%c0_121, %c0_122, %124, %c1_123, %c0_124] : memref<1x1x18x18x128xbf16, #tpu.memory_space<vmem>>, vector<1x1x4x16x128xbf16>
        %126 = vector.shape_cast %125 : vector<1x1x4x16x128xbf16> to vector<4x16x128xbf16>
        %127 = vector.shape_cast %126 : vector<4x16x128xbf16> to vector<64x128xbf16>
        %c1_125 = arith.constant 1 : index
        %c0_126 = arith.constant 0 : index
        %c0_127 = arith.constant 0 : index
        %128 = vector.load %arg3[%c1_125, %c0_126, %c0_127] : memref<9x128x128xbf16, #tpu.memory_space<vmem>>, vector<1x128x128xbf16>
        %129 = vector.shape_cast %128 : vector<1x128x128xbf16> to vector<128x128xbf16>
        %cst_128 = arith.constant dense<0.000000e+00> : vector<64x128xf32>
        %130 = tpu.matmul %127, %129, %cst_128 {dimension_numbers = #tpu.dot_dimension_numbers<[1], [0], [0], [1], [0, 0, 1, 1], [], []>} : vector<64x128xbf16>, vector<128x128xbf16>, vector<64x128xf32> -> vector<64x128xf32>
        %c0_129 = arith.constant 0 : index
        %c0_130 = arith.constant 0 : index
        %131 = vector.load %arg8[%c0_129, %c0_130] : memref<64x128xf32, #tpu.memory_space<vmem>>, vector<64x128xf32>
        %132 = arith.addf %131, %130 : vector<64x128xf32>
        %c0_131 = arith.constant 0 : index
        %c0_132 = arith.constant 0 : index
        %133 = vector.load %arg8[%c0_131, %c0_132] : memref<64x128xf32, #tpu.memory_space<vmem>>, vector<64x128xf32>
        tpu.vector_store %arg8[%c0_131, %c0_132], %132 {strides = array<i32>} : memref<64x128xf32, #tpu.memory_space<vmem>>, vector<64x128xf32>,
        %c0_i32_133 = arith.constant 0 : i32
        %134 = arith.addi %113, %c0_i32_133 : i32
        %c0_134 = arith.constant 0 : index
        %c0_135 = arith.constant 0 : index
        %135 = arith.index_cast %134 : i32 to index
        %c2_136 = arith.constant 2 : index
        %c0_137 = arith.constant 0 : index
        %136 = vector.load %arg2[%c0_134, %c0_135, %135, %c2_136, %c0_137] : memref<1x1x18x18x128xbf16, #tpu.memory_space<vmem>>, vector<1x1x4x16x128xbf16>
        %137 = vector.shape_cast %136 : vector<1x1x4x16x128xbf16> to vector<4x16x128xbf16>
        %138 = vector.shape_cast %137 : vector<4x16x128xbf16> to vector<64x128xbf16>
        %c2_138 = arith.constant 2 : index
        %c0_139 = arith.constant 0 : index
        %c0_140 = arith.constant 0 : index
        %139 = vector.load %arg3[%c2_138, %c0_139, %c0_140] : memref<9x128x128xbf16, #tpu.memory_space<vmem>>, vector<1x128x128xbf16>
        %140 = vector.shape_cast %139 : vector<1x128x128xbf16> to vector<128x128xbf16>
        %cst_141 = arith.constant dense<0.000000e+00> : vector<64x128xf32>
        %141 = tpu.matmul %138, %140, %cst_141 {dimension_numbers = #tpu.dot_dimension_numbers<[1], [0], [0], [1], [0, 0, 1, 1], [], []>} : vector<64x128xbf16>, vector<128x128xbf16>, vector<64x128xf32> -> vector<64x128xf32>
        %c0_142 = arith.constant 0 : index
        %c0_143 = arith.constant 0 : index
        %142 = vector.load %arg8[%c0_142, %c0_143] : memref<64x128xf32, #tpu.memory_space<vmem>>, vector<64x128xf32>
        %143 = arith.addf %142, %141 : vector<64x128xf32>
        %c0_144 = arith.constant 0 : index
        %c0_145 = arith.constant 0 : index
        %144 = vector.load %arg8[%c0_144, %c0_145] : memref<64x128xf32, #tpu.memory_space<vmem>>, vector<64x128xf32>
        tpu.vector_store %arg8[%c0_144, %c0_145], %143 {strides = array<i32>} : memref<64x128xf32, #tpu.memory_space<vmem>>, vector<64x128xf32>,
        %c1_i32_146 = arith.constant 1 : i32
        %145 = arith.addi %113, %c1_i32_146 : i32
        %c0_147 = arith.constant 0 : index
        %c0_148 = arith.constant 0 : index
        %146 = arith.index_cast %145 : i32 to index
        %c0_149 = arith.constant 0 : index
        %c0_150 = arith.constant 0 : index
        %147 = vector.load %arg2[%c0_147, %c0_148, %146, %c0_149, %c0_150] : memref<1x1x18x18x128xbf16, #tpu.memory_space<vmem>>, vector<1x1x4x16x128xbf16>
        %148 = vector.shape_cast %147 : vector<1x1x4x16x128xbf16> to vector<4x16x128xbf16>
        %149 = vector.shape_cast %148 : vector<4x16x128xbf16> to vector<64x128xbf16>
        %c3_151 = arith.constant 3 : index
        %c0_152 = arith.constant 0 : index
        %c0_153 = arith.constant 0 : index
        %150 = vector.load %arg3[%c3_151, %c0_152, %c0_153] : memref<9x128x128xbf16, #tpu.memory_space<vmem>>, vector<1x128x128xbf16>
        %151 = vector.shape_cast %150 : vector<1x128x128xbf16> to vector<128x128xbf16>
        %cst_154 = arith.constant dense<0.000000e+00> : vector<64x128xf32>
        %152 = tpu.matmul %149, %151, %cst_154 {dimension_numbers = #tpu.dot_dimension_numbers<[1], [0], [0], [1], [0, 0, 1, 1], [], []>} : vector<64x128xbf16>, vector<128x128xbf16>, vector<64x128xf32> -> vector<64x128xf32>
        %c0_155 = arith.constant 0 : index
        %c0_156 = arith.constant 0 : index
        %153 = vector.load %arg8[%c0_155, %c0_156] : memref<64x128xf32, #tpu.memory_space<vmem>>, vector<64x128xf32>
        %154 = arith.addf %153, %152 : vector<64x128xf32>
        %c0_157 = arith.constant 0 : index
        %c0_158 = arith.constant 0 : index
        %155 = vector.load %arg8[%c0_157, %c0_158] : memref<64x128xf32, #tpu.memory_space<vmem>>, vector<64x128xf32>
        tpu.vector_store %arg8[%c0_157, %c0_158], %154 {strides = array<i32>} : memref<64x128xf32, #tpu.memory_space<vmem>>, vector<64x128xf32>,
        %c1_i32_159 = arith.constant 1 : i32
        %156 = arith.addi %113, %c1_i32_159 : i32
        %c0_160 = arith.constant 0 : index
        %c0_161 = arith.constant 0 : index
        %157 = arith.index_cast %156 : i32 to index
        %c1_162 = arith.constant 1 : index
        %c0_163 = arith.constant 0 : index
        %158 = vector.load %arg2[%c0_160, %c0_161, %157, %c1_162, %c0_163] : memref<1x1x18x18x128xbf16, #tpu.memory_space<vmem>>, vector<1x1x4x16x128xbf16>
        %159 = vector.shape_cast %158 : vector<1x1x4x16x128xbf16> to vector<4x16x128xbf16>
        %160 = vector.shape_cast %159 : vector<4x16x128xbf16> to vector<64x128xbf16>
        %c4_164 = arith.constant 4 : index
        %c0_165 = arith.constant 0 : index
        %c0_166 = arith.constant 0 : index
        %161 = vector.load %arg3[%c4_164, %c0_165, %c0_166] : memref<9x128x128xbf16, #tpu.memory_space<vmem>>, vector<1x128x128xbf16>
        %162 = vector.shape_cast %161 : vector<1x128x128xbf16> to vector<128x128xbf16>
        %cst_167 = arith.constant dense<0.000000e+00> : vector<64x128xf32>
        %163 = tpu.matmul %160, %162, %cst_167 {dimension_numbers = #tpu.dot_dimension_numbers<[1], [0], [0], [1], [0, 0, 1, 1], [], []>} : vector<64x128xbf16>, vector<128x128xbf16>, vector<64x128xf32> -> vector<64x128xf32>
        %c0_168 = arith.constant 0 : index
        %c0_169 = arith.constant 0 : index
        %164 = vector.load %arg8[%c0_168, %c0_169] : memref<64x128xf32, #tpu.memory_space<vmem>>, vector<64x128xf32>
        %165 = arith.addf %164, %163 : vector<64x128xf32>
        %c0_170 = arith.constant 0 : index
        %c0_171 = arith.constant 0 : index
        %166 = vector.load %arg8[%c0_170, %c0_171] : memref<64x128xf32, #tpu.memory_space<vmem>>, vector<64x128xf32>
        tpu.vector_store %arg8[%c0_170, %c0_171], %165 {strides = array<i32>} : memref<64x128xf32, #tpu.memory_space<vmem>>, vector<64x128xf32>,
        %c1_i32_172 = arith.constant 1 : i32
        %167 = arith.addi %113, %c1_i32_172 : i32
        %c0_173 = arith.constant 0 : index
        %c0_174 = arith.constant 0 : index
        %168 = arith.index_cast %167 : i32 to index
        %c2_175 = arith.constant 2 : index
        %c0_176 = arith.constant 0 : index
        %169 = vector.load %arg2[%c0_173, %c0_174, %168, %c2_175, %c0_176] : memref<1x1x18x18x128xbf16, #tpu.memory_space<vmem>>, vector<1x1x4x16x128xbf16>
        %170 = vector.shape_cast %169 : vector<1x1x4x16x128xbf16> to vector<4x16x128xbf16>
        %171 = vector.shape_cast %170 : vector<4x16x128xbf16> to vector<64x128xbf16>
        %c5_177 = arith.constant 5 : index
        %c0_178 = arith.constant 0 : index
        %c0_179 = arith.constant 0 : index
        %172 = vector.load %arg3[%c5_177, %c0_178, %c0_179] : memref<9x128x128xbf16, #tpu.memory_space<vmem>>, vector<1x128x128xbf16>
        %173 = vector.shape_cast %172 : vector<1x128x128xbf16> to vector<128x128xbf16>
        %cst_180 = arith.constant dense<0.000000e+00> : vector<64x128xf32>
        %174 = tpu.matmul %171, %173, %cst_180 {dimension_numbers = #tpu.dot_dimension_numbers<[1], [0], [0], [1], [0, 0, 1, 1], [], []>} : vector<64x128xbf16>, vector<128x128xbf16>, vector<64x128xf32> -> vector<64x128xf32>
        %c0_181 = arith.constant 0 : index
        %c0_182 = arith.constant 0 : index
        %175 = vector.load %arg8[%c0_181, %c0_182] : memref<64x128xf32, #tpu.memory_space<vmem>>, vector<64x128xf32>
        %176 = arith.addf %175, %174 : vector<64x128xf32>
        %c0_183 = arith.constant 0 : index
        %c0_184 = arith.constant 0 : index
        %177 = vector.load %arg8[%c0_183, %c0_184] : memref<64x128xf32, #tpu.memory_space<vmem>>, vector<64x128xf32>
        tpu.vector_store %arg8[%c0_183, %c0_184], %176 {strides = array<i32>} : memref<64x128xf32, #tpu.memory_space<vmem>>, vector<64x128xf32>,
        %c2_i32_185 = arith.constant 2 : i32
        %178 = arith.addi %113, %c2_i32_185 : i32
        %c0_186 = arith.constant 0 : index
        %c0_187 = arith.constant 0 : index
        %179 = arith.index_cast %178 : i32 to index
        %c0_188 = arith.constant 0 : index
        %c0_189 = arith.constant 0 : index
        %180 = vector.load %arg2[%c0_186, %c0_187, %179, %c0_188, %c0_189] : memref<1x1x18x18x128xbf16, #tpu.memory_space<vmem>>, vector<1x1x4x16x128xbf16>
        %181 = vector.shape_cast %180 : vector<1x1x4x16x128xbf16> to vector<4x16x128xbf16>
        %182 = vector.shape_cast %181 : vector<4x16x128xbf16> to vector<64x128xbf16>
        %c6_190 = arith.constant 6 : index
        %c0_191 = arith.constant 0 : index
        %c0_192 = arith.constant 0 : index
        %183 = vector.load %arg3[%c6_190, %c0_191, %c0_192] : memref<9x128x128xbf16, #tpu.memory_space<vmem>>, vector<1x128x128xbf16>
        %184 = vector.shape_cast %183 : vector<1x128x128xbf16> to vector<128x128xbf16>
        %cst_193 = arith.constant dense<0.000000e+00> : vector<64x128xf32>
        %185 = tpu.matmul %182, %184, %cst_193 {dimension_numbers = #tpu.dot_dimension_numbers<[1], [0], [0], [1], [0, 0, 1, 1], [], []>} : vector<64x128xbf16>, vector<128x128xbf16>, vector<64x128xf32> -> vector<64x128xf32>
        %c0_194 = arith.constant 0 : index
        %c0_195 = arith.constant 0 : index
        %186 = vector.load %arg8[%c0_194, %c0_195] : memref<64x128xf32, #tpu.memory_space<vmem>>, vector<64x128xf32>
        %187 = arith.addf %186, %185 : vector<64x128xf32>
        %c0_196 = arith.constant 0 : index
        %c0_197 = arith.constant 0 : index
        %188 = vector.load %arg8[%c0_196, %c0_197] : memref<64x128xf32, #tpu.memory_space<vmem>>, vector<64x128xf32>
        tpu.vector_store %arg8[%c0_196, %c0_197], %187 {strides = array<i32>} : memref<64x128xf32, #tpu.memory_space<vmem>>, vector<64x128xf32>,
        %c2_i32_198 = arith.constant 2 : i32
        %189 = arith.addi %113, %c2_i32_198 : i32
        %c0_199 = arith.constant 0 : index
        %c0_200 = arith.constant 0 : index
        %190 = arith.index_cast %189 : i32 to index
        %c1_201 = arith.constant 1 : index
        %c0_202 = arith.constant 0 : index
        %191 = vector.load %arg2[%c0_199, %c0_200, %190, %c1_201, %c0_202] : memref<1x1x18x18x128xbf16, #tpu.memory_space<vmem>>, vector<1x1x4x16x128xbf16>
        %192 = vector.shape_cast %191 : vector<1x1x4x16x128xbf16> to vector<4x16x128xbf16>
        %193 = vector.shape_cast %192 : vector<4x16x128xbf16> to vector<64x128xbf16>
        %c7_203 = arith.constant 7 : index
        %c0_204 = arith.constant 0 : index
        %c0_205 = arith.constant 0 : index
        %194 = vector.load %arg3[%c7_203, %c0_204, %c0_205] : memref<9x128x128xbf16, #tpu.memory_space<vmem>>, vector<1x128x128xbf16>
        %195 = vector.shape_cast %194 : vector<1x128x128xbf16> to vector<128x128xbf16>
        %cst_206 = arith.constant dense<0.000000e+00> : vector<64x128xf32>
        %196 = tpu.matmul %193, %195, %cst_206 {dimension_numbers = #tpu.dot_dimension_numbers<[1], [0], [0], [1], [0, 0, 1, 1], [], []>} : vector<64x128xbf16>, vector<128x128xbf16>, vector<64x128xf32> -> vector<64x128xf32>
        %c0_207 = arith.constant 0 : index
        %c0_208 = arith.constant 0 : index
        %197 = vector.load %arg8[%c0_207, %c0_208] : memref<64x128xf32, #tpu.memory_space<vmem>>, vector<64x128xf32>
        %198 = arith.addf %197, %196 : vector<64x128xf32>
        %c0_209 = arith.constant 0 : index
        %c0_210 = arith.constant 0 : index
        %199 = vector.load %arg8[%c0_209, %c0_210] : memref<64x128xf32, #tpu.memory_space<vmem>>, vector<64x128xf32>
        tpu.vector_store %arg8[%c0_209, %c0_210], %198 {strides = array<i32>} : memref<64x128xf32, #tpu.memory_space<vmem>>, vector<64x128xf32>,
        %c2_i32_211 = arith.constant 2 : i32
        %200 = arith.addi %113, %c2_i32_211 : i32
        %c0_212 = arith.constant 0 : index
        %c0_213 = arith.constant 0 : index
        %201 = arith.index_cast %200 : i32 to index
        %c2_214 = arith.constant 2 : index
        %c0_215 = arith.constant 0 : index
        %202 = vector.load %arg2[%c0_212, %c0_213, %201, %c2_214, %c0_215] : memref<1x1x18x18x128xbf16, #tpu.memory_space<vmem>>, vector<1x1x4x16x128xbf16>
        %203 = vector.shape_cast %202 : vector<1x1x4x16x128xbf16> to vector<4x16x128xbf16>
        %204 = vector.shape_cast %203 : vector<4x16x128xbf16> to vector<64x128xbf16>
        %c8_216 = arith.constant 8 : index
        %c0_217 = arith.constant 0 : index
        %c0_218 = arith.constant 0 : index
        %205 = vector.load %arg3[%c8_216, %c0_217, %c0_218] : memref<9x128x128xbf16, #tpu.memory_space<vmem>>, vector<1x128x128xbf16>
        %206 = vector.shape_cast %205 : vector<1x128x128xbf16> to vector<128x128xbf16>
        %cst_219 = arith.constant dense<0.000000e+00> : vector<64x128xf32>
        %207 = tpu.matmul %204, %206, %cst_219 {dimension_numbers = #tpu.dot_dimension_numbers<[1], [0], [0], [1], [0, 0, 1, 1], [], []>} : vector<64x128xbf16>, vector<128x128xbf16>, vector<64x128xf32> -> vector<64x128xf32>
        %c0_220 = arith.constant 0 : index
        %c0_221 = arith.constant 0 : index
        %208 = vector.load %arg8[%c0_220, %c0_221] : memref<64x128xf32, #tpu.memory_space<vmem>>, vector<64x128xf32>
        %209 = arith.addf %208, %207 : vector<64x128xf32>
        %c0_222 = arith.constant 0 : index
        %c0_223 = arith.constant 0 : index
        %210 = vector.load %arg8[%c0_222, %c0_223] : memref<64x128xf32, #tpu.memory_space<vmem>>, vector<64x128xf32>
        tpu.vector_store %arg8[%c0_222, %c0_223], %209 {strides = array<i32>} : memref<64x128xf32, #tpu.memory_space<vmem>>, vector<64x128xf32>,
        %c0_224 = arith.constant 0 : index
        %c0_225 = arith.constant 0 : index
        %211 = vector.load %arg8[%c0_224, %c0_225] : memref<64x128xf32, #tpu.memory_space<vmem>>, vector<64x128xf32>
        %c0_226 = arith.constant 0 : index
        %c0_227 = arith.constant 0 : index
        %212 = vector.load %arg4[%c0_226, %c0_227] : memref<1x128xf32, #tpu.memory_space<vmem>>, vector<1x128xf32>
        %213 = vector.broadcast %212 : vector<1x128xf32> to vector<64x128xf32>
        %214 = arith.addf %211, %213 : vector<64x128xf32>
        %cst_228 = arith.constant 0.000000e+00 : f32
        %215 = vector.broadcast %cst_228 : f32 to vector<64x128xf32>
        %216 = arith.maximumf %214, %215 : vector<64x128xf32>
        %217 = vector.shape_cast %216 : vector<64x128xf32> to vector<4x16x128xf32>
        %218 = arith.truncf %217 : vector<4x16x128xf32> to vector<4x16x128xbf16>
        %c1_i32_229 = arith.constant 1 : i32
        %219 = arith.addi %c1_i32_229, %113 : i32
        %220 = arith.index_cast %219 : i32 to index
        %c1_230 = arith.constant 1 : index
        %c0_231 = arith.constant 0 : index
        %221 = vector.load %arg9[%220, %c1_230, %c0_231] : memref<18x18x128xbf16, #tpu.memory_space<vmem>>, vector<4x16x128xbf16>
        tpu.vector_store %arg9[%220, %c1_230, %c0_231], %218 {strides = array<i32>} : memref<18x18x128xbf16, #tpu.memory_space<vmem>>, vector<4x16x128xbf16>,
      }
      %c4_i32_107 = arith.constant 4 : i32
    } else {
    }
    %c4_i32 = arith.constant 4 : i32
    %3 = arith.muli %arg1, %c4_i32 : i32
    %c0_i32_1 = arith.constant 0 : i32
    %4 = arith.addi %3, %c0_i32_1 : i32
    %5 = arith.index_cast %4 : i32 to index
    %c0 = arith.constant 0 : index
    %c0_2 = arith.constant 0 : index
    %6 = vector.load %arg9[%5, %c0, %c0_2] : memref<18x18x128xbf16, #tpu.memory_space<vmem>>, vector<4x16x128xbf16>
    %7 = vector.shape_cast %6 : vector<4x16x128xbf16> to vector<64x128xbf16>
    %c0_3 = arith.constant 0 : index
    %c0_4 = arith.constant 0 : index
    %c0_5 = arith.constant 0 : index
    %8 = vector.load %arg5[%c0_3, %c0_4, %c0_5] : memref<9x128x128xbf16, #tpu.memory_space<vmem>>, vector<1x128x128xbf16>
    %9 = vector.shape_cast %8 : vector<1x128x128xbf16> to vector<128x128xbf16>
    %cst = arith.constant dense<0.000000e+00> : vector<64x128xf32>
    %10 = tpu.matmul %7, %9, %cst {dimension_numbers = #tpu.dot_dimension_numbers<[1], [0], [0], [1], [0, 0, 1, 1], [], []>} : vector<64x128xbf16>, vector<128x128xbf16>, vector<64x128xf32> -> vector<64x128xf32>
    %c0_6 = arith.constant 0 : index
    %c0_7 = arith.constant 0 : index
    %11 = vector.load %arg8[%c0_6, %c0_7] : memref<64x128xf32, #tpu.memory_space<vmem>>, vector<64x128xf32>
    tpu.vector_store %arg8[%c0_6, %c0_7], %10 {strides = array<i32>} : memref<64x128xf32, #tpu.memory_space<vmem>>, vector<64x128xf32>,
    %c0_i32_8 = arith.constant 0 : i32
    %12 = arith.addi %3, %c0_i32_8 : i32
    %13 = arith.index_cast %12 : i32 to index
    %c1 = arith.constant 1 : index
    %c0_9 = arith.constant 0 : index
    %14 = vector.load %arg9[%13, %c1, %c0_9] : memref<18x18x128xbf16, #tpu.memory_space<vmem>>, vector<4x16x128xbf16>
    %15 = vector.shape_cast %14 : vector<4x16x128xbf16> to vector<64x128xbf16>
    %c1_10 = arith.constant 1 : index
    %c0_11 = arith.constant 0 : index
    %c0_12 = arith.constant 0 : index
    %16 = vector.load %arg5[%c1_10, %c0_11, %c0_12] : memref<9x128x128xbf16, #tpu.memory_space<vmem>>, vector<1x128x128xbf16>
    %17 = vector.shape_cast %16 : vector<1x128x128xbf16> to vector<128x128xbf16>
    %cst_13 = arith.constant dense<0.000000e+00> : vector<64x128xf32>
    %18 = tpu.matmul %15, %17, %cst_13 {dimension_numbers = #tpu.dot_dimension_numbers<[1], [0], [0], [1], [0, 0, 1, 1], [], []>} : vector<64x128xbf16>, vector<128x128xbf16>, vector<64x128xf32> -> vector<64x128xf32>
    %c0_14 = arith.constant 0 : index
    %c0_15 = arith.constant 0 : index
    %19 = vector.load %arg8[%c0_14, %c0_15] : memref<64x128xf32, #tpu.memory_space<vmem>>, vector<64x128xf32>
    %20 = arith.addf %19, %18 : vector<64x128xf32>
    %c0_16 = arith.constant 0 : index
    %c0_17 = arith.constant 0 : index
    %21 = vector.load %arg8[%c0_16, %c0_17] : memref<64x128xf32, #tpu.memory_space<vmem>>, vector<64x128xf32>
    tpu.vector_store %arg8[%c0_16, %c0_17], %20 {strides = array<i32>} : memref<64x128xf32, #tpu.memory_space<vmem>>, vector<64x128xf32>,
    %c0_i32_18 = arith.constant 0 : i32
    %22 = arith.addi %3, %c0_i32_18 : i32
    %23 = arith.index_cast %22 : i32 to index
    %c2 = arith.constant 2 : index
    %c0_19 = arith.constant 0 : index
    %24 = vector.load %arg9[%23, %c2, %c0_19] : memref<18x18x128xbf16, #tpu.memory_space<vmem>>, vector<4x16x128xbf16>
    %25 = vector.shape_cast %24 : vector<4x16x128xbf16> to vector<64x128xbf16>
    %c2_20 = arith.constant 2 : index
    %c0_21 = arith.constant 0 : index
    %c0_22 = arith.constant 0 : index
    %26 = vector.load %arg5[%c2_20, %c0_21, %c0_22] : memref<9x128x128xbf16, #tpu.memory_space<vmem>>, vector<1x128x128xbf16>
    %27 = vector.shape_cast %26 : vector<1x128x128xbf16> to vector<128x128xbf16>
    %cst_23 = arith.constant dense<0.000000e+00> : vector<64x128xf32>
    %28 = tpu.matmul %25, %27, %cst_23 {dimension_numbers = #tpu.dot_dimension_numbers<[1], [0], [0], [1], [0, 0, 1, 1], [], []>} : vector<64x128xbf16>, vector<128x128xbf16>, vector<64x128xf32> -> vector<64x128xf32>
    %c0_24 = arith.constant 0 : index
    %c0_25 = arith.constant 0 : index
    %29 = vector.load %arg8[%c0_24, %c0_25] : memref<64x128xf32, #tpu.memory_space<vmem>>, vector<64x128xf32>
    %30 = arith.addf %29, %28 : vector<64x128xf32>
    %c0_26 = arith.constant 0 : index
    %c0_27 = arith.constant 0 : index
    %31 = vector.load %arg8[%c0_26, %c0_27] : memref<64x128xf32, #tpu.memory_space<vmem>>, vector<64x128xf32>
    tpu.vector_store %arg8[%c0_26, %c0_27], %30 {strides = array<i32>} : memref<64x128xf32, #tpu.memory_space<vmem>>, vector<64x128xf32>,
    %c1_i32 = arith.constant 1 : i32
    %32 = arith.addi %3, %c1_i32 : i32
    %33 = arith.index_cast %32 : i32 to index
    %c0_28 = arith.constant 0 : index
    %c0_29 = arith.constant 0 : index
    %34 = vector.load %arg9[%33, %c0_28, %c0_29] : memref<18x18x128xbf16, #tpu.memory_space<vmem>>, vector<4x16x128xbf16>
    %35 = vector.shape_cast %34 : vector<4x16x128xbf16> to vector<64x128xbf16>
    %c3 = arith.constant 3 : index
    %c0_30 = arith.constant 0 : index
    %c0_31 = arith.constant 0 : index
    %36 = vector.load %arg5[%c3, %c0_30, %c0_31] : memref<9x128x128xbf16, #tpu.memory_space<vmem>>, vector<1x128x128xbf16>
    %37 = vector.shape_cast %36 : vector<1x128x128xbf16> to vector<128x128xbf16>
    %cst_32 = arith.constant dense<0.000000e+00> : vector<64x128xf32>
    %38 = tpu.matmul %35, %37, %cst_32 {dimension_numbers = #tpu.dot_dimension_numbers<[1], [0], [0], [1], [0, 0, 1, 1], [], []>} : vector<64x128xbf16>, vector<128x128xbf16>, vector<64x128xf32> -> vector<64x128xf32>
    %c0_33 = arith.constant 0 : index
    %c0_34 = arith.constant 0 : index
    %39 = vector.load %arg8[%c0_33, %c0_34] : memref<64x128xf32, #tpu.memory_space<vmem>>, vector<64x128xf32>
    %40 = arith.addf %39, %38 : vector<64x128xf32>
    %c0_35 = arith.constant 0 : index
    %c0_36 = arith.constant 0 : index
    %41 = vector.load %arg8[%c0_35, %c0_36] : memref<64x128xf32, #tpu.memory_space<vmem>>, vector<64x128xf32>
    tpu.vector_store %arg8[%c0_35, %c0_36], %40 {strides = array<i32>} : memref<64x128xf32, #tpu.memory_space<vmem>>, vector<64x128xf32>,
    %c1_i32_37 = arith.constant 1 : i32
    %42 = arith.addi %3, %c1_i32_37 : i32
    %43 = arith.index_cast %42 : i32 to index
    %c1_38 = arith.constant 1 : index
    %c0_39 = arith.constant 0 : index
    %44 = vector.load %arg9[%43, %c1_38, %c0_39] : memref<18x18x128xbf16, #tpu.memory_space<vmem>>, vector<4x16x128xbf16>
    %45 = vector.shape_cast %44 : vector<4x16x128xbf16> to vector<64x128xbf16>
    %c4 = arith.constant 4 : index
    %c0_40 = arith.constant 0 : index
    %c0_41 = arith.constant 0 : index
    %46 = vector.load %arg5[%c4, %c0_40, %c0_41] : memref<9x128x128xbf16, #tpu.memory_space<vmem>>, vector<1x128x128xbf16>
    %47 = vector.shape_cast %46 : vector<1x128x128xbf16> to vector<128x128xbf16>
    %cst_42 = arith.constant dense<0.000000e+00> : vector<64x128xf32>
    %48 = tpu.matmul %45, %47, %cst_42 {dimension_numbers = #tpu.dot_dimension_numbers<[1], [0], [0], [1], [0, 0, 1, 1], [], []>} : vector<64x128xbf16>, vector<128x128xbf16>, vector<64x128xf32> -> vector<64x128xf32>
    %c0_43 = arith.constant 0 : index
    %c0_44 = arith.constant 0 : index
    %49 = vector.load %arg8[%c0_43, %c0_44] : memref<64x128xf32, #tpu.memory_space<vmem>>, vector<64x128xf32>
    %50 = arith.addf %49, %48 : vector<64x128xf32>
    %c0_45 = arith.constant 0 : index
    %c0_46 = arith.constant 0 : index
    %51 = vector.load %arg8[%c0_45, %c0_46] : memref<64x128xf32, #tpu.memory_space<vmem>>, vector<64x128xf32>
    tpu.vector_store %arg8[%c0_45, %c0_46], %50 {strides = array<i32>} : memref<64x128xf32, #tpu.memory_space<vmem>>, vector<64x128xf32>,
    %c1_i32_47 = arith.constant 1 : i32
    %52 = arith.addi %3, %c1_i32_47 : i32
    %53 = arith.index_cast %52 : i32 to index
    %c2_48 = arith.constant 2 : index
    %c0_49 = arith.constant 0 : index
    %54 = vector.load %arg9[%53, %c2_48, %c0_49] : memref<18x18x128xbf16, #tpu.memory_space<vmem>>, vector<4x16x128xbf16>
    %55 = vector.shape_cast %54 : vector<4x16x128xbf16> to vector<64x128xbf16>
    %c5 = arith.constant 5 : index
    %c0_50 = arith.constant 0 : index
    %c0_51 = arith.constant 0 : index
    %56 = vector.load %arg5[%c5, %c0_50, %c0_51] : memref<9x128x128xbf16, #tpu.memory_space<vmem>>, vector<1x128x128xbf16>
    %57 = vector.shape_cast %56 : vector<1x128x128xbf16> to vector<128x128xbf16>
    %cst_52 = arith.constant dense<0.000000e+00> : vector<64x128xf32>
    %58 = tpu.matmul %55, %57, %cst_52 {dimension_numbers = #tpu.dot_dimension_numbers<[1], [0], [0], [1], [0, 0, 1, 1], [], []>} : vector<64x128xbf16>, vector<128x128xbf16>, vector<64x128xf32> -> vector<64x128xf32>
    %c0_53 = arith.constant 0 : index
    %c0_54 = arith.constant 0 : index
    %59 = vector.load %arg8[%c0_53, %c0_54] : memref<64x128xf32, #tpu.memory_space<vmem>>, vector<64x128xf32>
    %60 = arith.addf %59, %58 : vector<64x128xf32>
    %c0_55 = arith.constant 0 : index
    %c0_56 = arith.constant 0 : index
    %61 = vector.load %arg8[%c0_55, %c0_56] : memref<64x128xf32, #tpu.memory_space<vmem>>, vector<64x128xf32>
    tpu.vector_store %arg8[%c0_55, %c0_56], %60 {strides = array<i32>} : memref<64x128xf32, #tpu.memory_space<vmem>>, vector<64x128xf32>,
    %c2_i32 = arith.constant 2 : i32
    %62 = arith.addi %3, %c2_i32 : i32
    %63 = arith.index_cast %62 : i32 to index
    %c0_57 = arith.constant 0 : index
    %c0_58 = arith.constant 0 : index
    %64 = vector.load %arg9[%63, %c0_57, %c0_58] : memref<18x18x128xbf16, #tpu.memory_space<vmem>>, vector<4x16x128xbf16>
    %65 = vector.shape_cast %64 : vector<4x16x128xbf16> to vector<64x128xbf16>
    %c6 = arith.constant 6 : index
    %c0_59 = arith.constant 0 : index
    %c0_60 = arith.constant 0 : index
    %66 = vector.load %arg5[%c6, %c0_59, %c0_60] : memref<9x128x128xbf16, #tpu.memory_space<vmem>>, vector<1x128x128xbf16>
    %67 = vector.shape_cast %66 : vector<1x128x128xbf16> to vector<128x128xbf16>
    %cst_61 = arith.constant dense<0.000000e+00> : vector<64x128xf32>
    %68 = tpu.matmul %65, %67, %cst_61 {dimension_numbers = #tpu.dot_dimension_numbers<[1], [0], [0], [1], [0, 0, 1, 1], [], []>} : vector<64x128xbf16>, vector<128x128xbf16>, vector<64x128xf32> -> vector<64x128xf32>
    %c0_62 = arith.constant 0 : index
    %c0_63 = arith.constant 0 : index
    %69 = vector.load %arg8[%c0_62, %c0_63] : memref<64x128xf32, #tpu.memory_space<vmem>>, vector<64x128xf32>
    %70 = arith.addf %69, %68 : vector<64x128xf32>
    %c0_64 = arith.constant 0 : index
    %c0_65 = arith.constant 0 : index
    %71 = vector.load %arg8[%c0_64, %c0_65] : memref<64x128xf32, #tpu.memory_space<vmem>>, vector<64x128xf32>
    tpu.vector_store %arg8[%c0_64, %c0_65], %70 {strides = array<i32>} : memref<64x128xf32, #tpu.memory_space<vmem>>, vector<64x128xf32>,
    %c2_i32_66 = arith.constant 2 : i32
    %72 = arith.addi %3, %c2_i32_66 : i32
    %73 = arith.index_cast %72 : i32 to index
    %c1_67 = arith.constant 1 : index
    %c0_68 = arith.constant 0 : index
    %74 = vector.load %arg9[%73, %c1_67, %c0_68] : memref<18x18x128xbf16, #tpu.memory_space<vmem>>, vector<4x16x128xbf16>
    %75 = vector.shape_cast %74 : vector<4x16x128xbf16> to vector<64x128xbf16>
    %c7 = arith.constant 7 : index
    %c0_69 = arith.constant 0 : index
    %c0_70 = arith.constant 0 : index
    %76 = vector.load %arg5[%c7, %c0_69, %c0_70] : memref<9x128x128xbf16, #tpu.memory_space<vmem>>, vector<1x128x128xbf16>
    %77 = vector.shape_cast %76 : vector<1x128x128xbf16> to vector<128x128xbf16>
    %cst_71 = arith.constant dense<0.000000e+00> : vector<64x128xf32>
    %78 = tpu.matmul %75, %77, %cst_71 {dimension_numbers = #tpu.dot_dimension_numbers<[1], [0], [0], [1], [0, 0, 1, 1], [], []>} : vector<64x128xbf16>, vector<128x128xbf16>, vector<64x128xf32> -> vector<64x128xf32>
    %c0_72 = arith.constant 0 : index
    %c0_73 = arith.constant 0 : index
    %79 = vector.load %arg8[%c0_72, %c0_73] : memref<64x128xf32, #tpu.memory_space<vmem>>, vector<64x128xf32>
    %80 = arith.addf %79, %78 : vector<64x128xf32>
    %c0_74 = arith.constant 0 : index
    %c0_75 = arith.constant 0 : index
    %81 = vector.load %arg8[%c0_74, %c0_75] : memref<64x128xf32, #tpu.memory_space<vmem>>, vector<64x128xf32>
    tpu.vector_store %arg8[%c0_74, %c0_75], %80 {strides = array<i32>} : memref<64x128xf32, #tpu.memory_space<vmem>>, vector<64x128xf32>,
    %c2_i32_76 = arith.constant 2 : i32
    %82 = arith.addi %3, %c2_i32_76 : i32
    %83 = arith.index_cast %82 : i32 to index
    %c2_77 = arith.constant 2 : index
    %c0_78 = arith.constant 0 : index
    %84 = vector.load %arg9[%83, %c2_77, %c0_78] : memref<18x18x128xbf16, #tpu.memory_space<vmem>>, vector<4x16x128xbf16>
    %85 = vector.shape_cast %84 : vector<4x16x128xbf16> to vector<64x128xbf16>
    %c8 = arith.constant 8 : index
    %c0_79 = arith.constant 0 : index
    %c0_80 = arith.constant 0 : index
    %86 = vector.load %arg5[%c8, %c0_79, %c0_80] : memref<9x128x128xbf16, #tpu.memory_space<vmem>>, vector<1x128x128xbf16>
    %87 = vector.shape_cast %86 : vector<1x128x128xbf16> to vector<128x128xbf16>
    %cst_81 = arith.constant dense<0.000000e+00> : vector<64x128xf32>
    %88 = tpu.matmul %85, %87, %cst_81 {dimension_numbers = #tpu.dot_dimension_numbers<[1], [0], [0], [1], [0, 0, 1, 1], [], []>} : vector<64x128xbf16>, vector<128x128xbf16>, vector<64x128xf32> -> vector<64x128xf32>
    %c0_82 = arith.constant 0 : index
    %c0_83 = arith.constant 0 : index
    %89 = vector.load %arg8[%c0_82, %c0_83] : memref<64x128xf32, #tpu.memory_space<vmem>>, vector<64x128xf32>
    %90 = arith.addf %89, %88 : vector<64x128xf32>
    %c0_84 = arith.constant 0 : index
    %c0_85 = arith.constant 0 : index
    %91 = vector.load %arg8[%c0_84, %c0_85] : memref<64x128xf32, #tpu.memory_space<vmem>>, vector<64x128xf32>
    tpu.vector_store %arg8[%c0_84, %c0_85], %90 {strides = array<i32>} : memref<64x128xf32, #tpu.memory_space<vmem>>, vector<64x128xf32>,
    %c0_86 = arith.constant 0 : index
    %c0_87 = arith.constant 0 : index
    %92 = vector.load %arg8[%c0_86, %c0_87] : memref<64x128xf32, #tpu.memory_space<vmem>>, vector<64x128xf32>
    %c0_88 = arith.constant 0 : index
    %c0_89 = arith.constant 0 : index
    %93 = vector.load %arg6[%c0_88, %c0_89] : memref<1x128xf32, #tpu.memory_space<vmem>>, vector<1x128xf32>
    %94 = vector.broadcast %93 : vector<1x128xf32> to vector<64x128xf32>
    %95 = arith.addf %92, %94 : vector<64x128xf32>
    %c1_i32_90 = arith.constant 1 : i32
    %96 = arith.addi %3, %c1_i32_90 : i32
    %c0_91 = arith.constant 0 : index
    %c0_92 = arith.constant 0 : index
    %97 = arith.index_cast %96 : i32 to index
    %c1_93 = arith.constant 1 : index
    %c0_94 = arith.constant 0 : index
    %98 = vector.load %arg2[%c0_91, %c0_92, %97, %c1_93, %c0_94] : memref<1x1x18x18x128xbf16, #tpu.memory_space<vmem>>, vector<1x1x4x16x128xbf16>
    %99 = vector.shape_cast %98 : vector<1x1x4x16x128xbf16> to vector<4x16x128xbf16>
    %100 = vector.shape_cast %99 : vector<4x16x128xbf16> to vector<64x128xbf16>
    %101 = arith.extf %100 : vector<64x128xbf16> to vector<64x128xf32>
    %102 = arith.addf %95, %101 : vector<64x128xf32>
    %cst_95 = arith.constant 0.000000e+00 : f32
    %103 = vector.broadcast %cst_95 : f32 to vector<64x128xf32>
    %104 = arith.maximumf %102, %103 : vector<64x128xf32>
    %105 = vector.shape_cast %104 : vector<64x128xf32> to vector<4x16x128xf32>
    %106 = arith.truncf %105 : vector<4x16x128xf32> to vector<4x16x128xbf16>
    %c0_96 = arith.constant 0 : index
    %c0_97 = arith.constant 0 : index
    %c0_98 = arith.constant 0 : index
    %c0_99 = arith.constant 0 : index
    %107 = vector.load %arg7[%c0_96, %c0_97, %c0_98, %c0_99] : memref<1x4x16x128xbf16, #tpu.memory_space<vmem>>, vector<1x4x16x128xbf16>
    %108 = vector.shape_cast %107 : vector<1x4x16x128xbf16> to vector<4x16x128xbf16>
    %109 = vector.shape_cast %106 : vector<4x16x128xbf16> to vector<1x4x16x128xbf16>
    tpu.vector_store %arg7[%c0_96, %c0_97, %c0_98, %c0_99], %109 {strides = array<i32>} : memref<1x4x16x128xbf16, #tpu.memory_space<vmem>>, vector<1x4x16x128xbf16>,
    return
  }
  func.func @transform_0(%arg0: i32, %arg1: i32) -> (i32, i32, i32, i32, i32) {
    %c0_i32 = arith.constant 0 : i32
    %c0_i32_0 = arith.constant 0 : i32
    %c0_i32_1 = arith.constant 0 : i32
    %c0_i32_2 = arith.constant 0 : i32
    %c0_i32_3 = arith.constant 0 : i32
    return %c0_i32, %arg0, %c0_i32_0, %c0_i32_1, %c0_i32_2 : i32, i32, i32, i32, i32
  }
  func.func @transform_1(%arg0: i32, %arg1: i32) -> (i32, i32, i32) {
    %c0_i32 = arith.constant 0 : i32
    %c0_i32_0 = arith.constant 0 : i32
    %c0_i32_1 = arith.constant 0 : i32
    %c0_i32_2 = arith.constant 0 : i32
    return %c0_i32, %c0_i32_0, %c0_i32_1 : i32, i32, i32
  }
  func.func @transform_2(%arg0: i32, %arg1: i32) -> (i32, i32) {
    %c0_i32 = arith.constant 0 : i32
    %c0_i32_0 = arith.constant 0 : i32
    %c0_i32_1 = arith.constant 0 : i32
    return %c0_i32, %c0_i32_0 : i32, i32
  }
  func.func @transform_3(%arg0: i32, %arg1: i32) -> (i32, i32, i32) {
    %c0_i32 = arith.constant 0 : i32
    %c0_i32_0 = arith.constant 0 : i32
    %c0_i32_1 = arith.constant 0 : i32
    %c0_i32_2 = arith.constant 0 : i32
    return %c0_i32, %c0_i32_0, %c0_i32_1 : i32, i32, i32
  }
  func.func @transform_4(%arg0: i32, %arg1: i32) -> (i32, i32) {
    %c0_i32 = arith.constant 0 : i32
    %c0_i32_0 = arith.constant 0 : i32
    %c0_i32_1 = arith.constant 0 : i32
    return %c0_i32, %c0_i32_0 : i32, i32
  }
  func.func @transform_5(%arg0: i32, %arg1: i32) -> (i32, i32, i32, i32) {
    %c0_i32 = arith.constant 0 : i32
    %c0_i32_0 = arith.constant 0 : i32
    %c0_i32_1 = arith.constant 0 : i32
    return %arg0, %arg1, %c0_i32, %c0_i32_0 : i32, i32, i32, i32
  }
}

</mosaic_0001>

<llo_original>
// kernel: tpu_custom_call.1
$region0: #{tpu_custom_call.1}
  #allocation0 [shape = 'u32[]', space=smem, size = 0x4, offset = 0x4, fixed_abs, tag = 'smem constant byte address 0x4 - core index']
  #allocation1 [shape = 'u32[144,128]{1,0:T(1,128)}', space=vmem, size = 0x12000, scoped, tag = 'internal scratch']
  #allocation2 [shape = 'f32[64,128]{1,0:T(8,128)}', space=vmem, size = 0x8000, scoped, tag = 'scratch operand']
  #allocation3 [shape = 'bf16[18,18,128]{2,1,0:T(8,128)(2,1)}', space=vmem, size = 0x1b000, scoped, tag = 'scratch operand']
  %s0 = inlined_call_operand.vmem [shape: bf16[1,2,18,18,128], index: 0, kind: input, shape index: {}]
  %s1 = inlined_call_operand.vmem [shape: bf16[9,128,128], index: 1, kind: input, shape index: {}]
  %s2 = inlined_call_operand.vmem [shape: f32[1,128], index: 2, kind: input, shape index: {}]
  %s3 = inlined_call_operand.hbm [shape: bf16[9,128,128], index: 3, kind: input, shape index: {}]
  %s4 = inlined_call_operand.vmem [shape: f32[1,128], index: 4, kind: input, shape index: {}]
  %s5 = inlined_call_operand.hbm [shape: bf16[2,16,16,128], index: 5, kind: output, shape index: {}]
  %s6 = sld [smem:[#allocation0]]
  $region68: #{tpu_custom_call.1} parent=0
    _
  %s8 = ssub.s32 1, %s6
  %s9 = scalar_select 0, %s8, %s6
  $region1: #{tpu_custom_call.1} parent=0
    #allocation4 [shape = 'u8[294912]{0}', space=vmem, size = 0x48000, scoped, tag = 'input window, operand 3, single buffered']
    #allocation5 [shape = 's32[2]{0}', space=sflag, size = 0x8, scoped, tag = 'scoped memory for tpu_custom_call.1']
    #allocation6 [shape = 's32[2]{0}', space=sflag, size = 0x8, scoped, tag = 'scoped memory for tpu_custom_call.1']
    #allocation7 [shape = 'u8[32768]{0}', space=vmem, size = 0x8000, scoped, tag = 'output window, operand 0']
    %10 = vsyncpa [#allocation5], 0
    %11 = vsyncpa [#allocation6], 0
    %s12 = scalar_lea.sflag [#allocation6], 1
    %13 = vsyncpa %s12, 0
    loop: start=0, step=1, limit=10
    $region2: #{tpu_custom_call.1} parent=1 // loop_pre_header
      _
    $region3: #{tpu_custom_call.1} parent=1 // loop_header
      %s15 = sphi 0, %s19
      %p16 = scmp.ge.s32.totalorder %s15, 10
      %s22 = sphi 0, %s34
      %s23 = sphi 0, %s30
      %s24 = sphi 0, %s22
      %s25 = sphi 0, %s23
      %s26 = sphi 0, %s24
      %s27 = sphi 0, %s25
      %s37 = sphi 0, %s39
      %s40 = sphi 0, %s37
      %s41 = sphi 0, %s40
      %s57 = sphi 0, %s41
      %s61 = sphi 0, %s61
      %s63 = sphi 0, %s61
      %s64 = sphi 0, %s63
      %s78 = sphi 0, %s64
      %s82 = sphi 0, %s82
      %s84 = sphi 0, %s82
      %s85 = sphi 0, %s84
      %s99 = sphi 0, %s85
      %s103 = sphi 0, %s103
      %s105 = sphi 0, %s103
      %s106 = sphi 0, %s105
      %s120 = sphi 0, %s106
      %s124 = sphi 0, %s124
      %s126 = sphi 0, %s124
      %s127 = sphi 0, %s126
      %s141 = sphi 0, %s127
      %s149 = sphi 0, %s151
      %s152 = sphi 0, %s149
      %s153 = sphi 0, %s152
      %s169 = sphi 0, %s153
    $region4: #{tpu_custom_call.1} parent=1 // loop_header_branch
      %18 = sbr.rel (%p16) target = $region8
    $region5: #{tpu_custom_call.1} parent=1 // loop_body
      %s20 = ssub.s32 %s15, 1
      %s21 = ssub.s32 %s15, 2
      %s28 = sadd.s32 1, %s23
      %p29 = scmp.ge.s32.totalorder %s28, 4
      %s30 = scalar_select %p29, 0, %s28
      %s31 = sadd.s32 1, %s22
      %s32 = scalar_select %p29, %s31, %s22
      %p33 = scmp.ge.s32.totalorder %s32, 2
      %s34 = scalar_select %p33, 0, %s32
      %s35 = ssub.s32 %s22, %s34
      %p36 = scmp.eq.s32.totalorder %s35, 0
      %s38 = sadd.s32 %s37, 1
      %s39 = scalar_select %p36, %s37, %s38
      %p42 = pneg %p36
      %p43 = scmp.eq.s32.totalorder %s15, 7
      %p44 = por %p42, %p43
      %p45 = scmp.ne.s32.totalorder %s37, %s40
      %p46 = scmp.eq.s32.totalorder %s15, 0
      %p47 = por %p45, %p46
      %p48 = scmp.ne.s32.totalorder %s37, %s40
      %p49 = scmp.eq.s32.totalorder %s20, 7
      %p50 = por %p48, %p49
      %p51 = scmp.ne.s32.totalorder %s40, %s41
      %p52 = scmp.eq.s32.totalorder %s20, 0
      %p53 = por %p51, %p52
      %p54 = scmp.ne.s32.totalorder %s40, %s41
      %p55 = scmp.eq.s32.totalorder %s21, 7
      %p56 = por %p54, %p55
      %p58 = scmp.ne.s32.totalorder %s41, %s57
      %p59 = scmp.eq.s32.totalorder %s21, 0
      %p60 = por %p58, %p59
      %s62 = sadd.s32 %s61, 1
      %p65 = scmp.eq.s32.totalorder %s15, 7
      %p66 = scmp.ne.s32.totalorder %s61, %s63
      %p67 = scmp.eq.s32.totalorder %s15, 0
      %p68 = por %p66, %p67
      %p69 = scmp.ne.s32.totalorder %s61, %s63
      %p70 = scmp.eq.s32.totalorder %s20, 7
      %p71 = por %p69, %p70
      %p72 = scmp.ne.s32.totalorder %s63, %s64
      %p73 = scmp.eq.s32.totalorder %s20, 0
      %p74 = por %p72, %p73
      %p75 = scmp.ne.s32.totalorder %s63, %s64
      %p76 = scmp.eq.s32.totalorder %s21, 7
      %p77 = por %p75, %p76
      %p79 = scmp.ne.s32.totalorder %s64, %s78
      %p80 = scmp.eq.s32.totalorder %s21, 0
      %p81 = por %p79, %p80
      %s83 = sadd.s32 %s82, 1
      %p86 = scmp.eq.s32.totalorder %s15, 7
      %p87 = scmp.ne.s32.totalorder %s82, %s84
      %p88 = scmp.eq.s32.totalorder %s15, 0
      %p89 = por %p87, %p88
      %p90 = scmp.ne.s32.totalorder %s82, %s84
      %p91 = scmp.eq.s32.totalorder %s20, 7
      %p92 = por %p90, %p91
      %p93 = scmp.ne.s32.totalorder %s84, %s85
      %p94 = scmp.eq.s32.totalorder %s20, 0
      %p95 = por %p93, %p94
      %p96 = scmp.ne.s32.totalorder %s84, %s85
      %p97 = scmp.eq.s32.totalorder %s21, 7
      %p98 = por %p96, %p97
      %p100 = scmp.ne.s32.totalorder %s85, %s99
      %p101 = scmp.eq.s32.totalorder %s21, 0
      %p102 = por %p100, %p101
      %s104 = sadd.s32 %s103, 1
      %p107 = scmp.eq.s32.totalorder %s15, 7
      %p108 = scmp.ne.s32.totalorder %s103, %s105
      %p109 = scmp.eq.s32.totalorder %s15, 0
      %p110 = por %p108, %p109
      %p111 = scmp.ne.s32.totalorder %s103, %s105
      %p112 = scmp.eq.s32.totalorder %s20, 7
      %p113 = por %p111, %p112
      %p114 = scmp.ne.s32.totalorder %s105, %s106
      %p115 = scmp.eq.s32.totalorder %s20, 0
      %p116 = por %p114, %p115
      %p117 = scmp.ne.s32.totalorder %s105, %s106
      %p118 = scmp.eq.s32.totalorder %s21, 7
      %p119 = por %p117, %p118
      %p121 = scmp.ne.s32.totalorder %s106, %s120
      %p122 = scmp.eq.s32.totalorder %s21, 0
      %p123 = por %p121, %p122
      %s125 = sadd.s32 %s124, 1
      %p128 = scmp.eq.s32.totalorder %s15, 7
      %p129 = scmp.ne.s32.totalorder %s124, %s126
      %p130 = scmp.eq.s32.totalorder %s15, 0
      %p131 = por %p129, %p130
      %p132 = scmp.ne.s32.totalorder %s124, %s126
      %p133 = scmp.eq.s32.totalorder %s20, 7
      %p134 = por %p132, %p133
      %p135 = scmp.ne.s32.totalorder %s126, %s127
      %p136 = scmp.eq.s32.totalorder %s20, 0
      %p137 = por %p135, %p136
      %p138 = scmp.ne.s32.totalorder %s126, %s127
      %p139 = scmp.eq.s32.totalorder %s21, 7
      %p140 = por %p138, %p139
      %p142 = scmp.ne.s32.totalorder %s127, %s141
      %p143 = scmp.eq.s32.totalorder %s21, 0
      %p144 = por %p142, %p143
      %s145 = ssub.s32 %s22, %s34
      %s146 = ssub.s32 %s23, %s30
      %s147 = sor.u32 %s145, %s146
      %p148 = scmp.eq.s32.totalorder %s147, 0
      %s150 = sadd.s32 %s149, 1
      %s151 = scalar_select %p148, %s149, %s150
      %p154 = pneg %p148
      %p155 = scmp.eq.s32.totalorder %s15, 7
      %p156 = por %p154, %p155
      %p157 = scmp.ne.s32.totalorder %s149, %s152
      %p158 = scmp.eq.s32.totalorder %s15, 0
      %p159 = por %p157, %p158
      %p160 = scmp.ne.s32.totalorder %s149, %s152
      %p161 = scmp.eq.s32.totalorder %s20, 7
      %p162 = por %p160, %p161
      %p163 = scmp.ne.s32.totalorder %s152, %s153
      %p164 = scmp.eq.s32.totalorder %s20, 0
      %p165 = por %p163, %p164
      %p166 = scmp.ne.s32.totalorder %s152, %s153
      %p167 = scmp.eq.s32.totalorder %s21, 7
      %p168 = por %p166, %p167
      %p170 = scmp.ne.s32.totalorder %s153, %s169
      %p171 = scmp.eq.s32.totalorder %s21, 0
      %p172 = por %p170, %p171
      %p173 = scmp.le.s32.totalorder 1, %s15
      %p174 = scmp.lt.s32.totalorder %s15, 9
      %p175 = pnand %p173, %p174
      %p176 = pneg %p175
      // Predicated region
      $region9: #{tpu_custom_call.1} parent=5 // pred_check
        _
      $region10: #{tpu_custom_call.1} parent=5 // pred_check_branch
        %178 = sbr.rel (%p175) target = $region12
      $region11: #{tpu_custom_call.1} parent=5 // pred_region
        %s179 = ssub.s32 %s15, 1
        // Predicated region
        $region13: #{tpu_custom_call.1} parent=11 // pred_check
          %p180 = pneg %p74
        $region14: #{tpu_custom_call.1} parent=11 // pred_check_branch
          %182 = sbr.rel (%p180) target = $region16
        $region15: #{tpu_custom_call.1} parent=11 // pred_region
          _
        $region16: #{tpu_custom_call.1} parent=11 // pred_fallthru
          _
        // Predicated region
        $region17: #{tpu_custom_call.1} parent=11 // pred_check
          %p183 = pneg %p95
        $region18: #{tpu_custom_call.1} parent=11 // pred_check_branch
          %185 = sbr.rel (%p183) target = $region20
        $region19: #{tpu_custom_call.1} parent=11 // pred_region
          _
        $region20: #{tpu_custom_call.1} parent=11 // pred_fallthru
          _
        // Predicated region
        $region21: #{tpu_custom_call.1} parent=11 // pred_check
          %p186 = pneg %p116
        $region22: #{tpu_custom_call.1} parent=11 // pred_check_branch
          %188 = sbr.rel (%p186) target = $region24
        $region23: #{tpu_custom_call.1} parent=11 // pred_region
          %s190 = ssub.s32 9216, 9216
          %191 = vsyncadd [#allocation5], %s190
          %s192 = sshll.u32 [#allocation4], 4
          %s193 = int_to_ptr.vmem [resolvable:$true] %s192
          %198 = dma.hbm_to_vmem [thread:$0]  %s3, 9216, %s193, [#allocation5], 64, 64, 4
        $region24: #{tpu_custom_call.1} parent=11 // pred_fallthru
          _
        // Predicated region
        $region25: #{tpu_custom_call.1} parent=11 // pred_check
          %p199 = pneg %p137
        $region26: #{tpu_custom_call.1} parent=11 // pred_check_branch
          %201 = sbr.rel (%p199) target = $region28
        $region27: #{tpu_custom_call.1} parent=11 // pred_region
          _
        $region28: #{tpu_custom_call.1} parent=11 // pred_fallthru
          _
      $region12: #{tpu_custom_call.1} parent=5 // pred_fallthru
        _
      %p202 = scmp.lt.s32.totalorder %s15, 8
      // Predicated region
      $region29: #{tpu_custom_call.1} parent=5 // pred_check
        %p203 = pneg %p202
      $region30: #{tpu_custom_call.1} parent=5 // pred_check_branch
        %205 = sbr.rel (%p203) target = $region32
      $region31: #{tpu_custom_call.1} parent=5 // pred_region
        // Predicated region
        $region33: #{tpu_custom_call.1} parent=31 // pred_check
          %p206 = pneg %p47
        $region34: #{tpu_custom_call.1} parent=31 // pred_check_branch
          %208 = sbr.rel (%p206) target = $region36
        $region35: #{tpu_custom_call.1} parent=31 // pred_region
          %p209 = scmp.lt.s32.totalorder %s22, 1
          %s210 = scalar_select %p209, %s22, 1
          %s211 = smul.addr %s210, 54
          %s212 = smul.addr %s211, 4
          %s213 = scalar_lea.vmem %s0, %s212
        $region36: #{tpu_custom_call.1} parent=31 // pred_fallthru
          _
      $region32: #{tpu_custom_call.1} parent=5 // pred_fallthru
        _
      %p214 = scmp.le.s32.totalorder 1, %s15
      %p215 = scmp.lt.s32.totalorder %s15, 9
      %p216 = pnand %p214, %p215
      %p217 = pneg %p216
      // Predicated region
      $region37: #{tpu_custom_call.1} parent=5 // pred_check
        _
      $region38: #{tpu_custom_call.1} parent=5 // pred_check_branch
        %219 = sbr.rel (%p216) target = $region40
      $region39: #{tpu_custom_call.1} parent=5 // pred_region
        %s220 = ssub.s32 %s15, 1
        // Predicated region
        $region41: #{tpu_custom_call.1} parent=39 // pred_check
          %p221 = pneg %p116
        $region42: #{tpu_custom_call.1} parent=39 // pred_check_branch
          %223 = sbr.rel (%p221) target = $region44
        $region43: #{tpu_custom_call.1} parent=39 // pred_region
          %224 = dma.done [#allocation5], 9216
        $region44: #{tpu_custom_call.1} parent=39 // pred_fallthru
          _
        %p225 = scmp.lt.s32.totalorder %s24, 1
        %s226 = scalar_select %p225, %s24, 1
        %s227 = smul.addr %s226, 54
        %s228 = smul.addr %s227, 4
        %s229 = scalar_lea.vmem %s0, %s228
        %p230 = pneg %p53
        %p231 = pneg %p50
        %p232 = pneg %p74
        %p233 = pneg %p71
        %p234 = pneg %p95
        %p235 = pneg %p92
        %p236 = pneg %p116
        %p237 = pneg %p113
        %p238 = pneg %p137
        %p239 = pneg %p134
        %p240 = pneg %p165
        %p241 = pneg %p162
        %s242 = sand.u32 %s152, 1
        %s243 = scalar_lea.sflag [#allocation6], %s242
        %s244 = sand.u32 %s152, 1
        %s245 = smul.addr %s244, 32
        %s246 = scalar_lea.vmem [#allocation7], %s245
        %p247 = scmp.lt.s32.totalorder %s24, 1
        %s248 = scalar_select %p247, %s24, 1
        %s249 = smul.addr %s248, 54
        %s250 = smul.addr %s249, 4
        %s251 = scalar_lea.vmem %s0, %s250
        %s252 = smul.u32 4, %s25
        %p254 = scmp.eq.s32.totalorder %s25, 0
        // Predicated region
        $region45: #{tpu_custom_call.1} parent=39 // pred_check
          %p255 = pneg %p254
        $region46: #{tpu_custom_call.1} parent=39 // pred_check_branch
          %257 = sbr.rel (%p255) target = $region48
        $region47: #{tpu_custom_call.1} parent=39 // pred_region
          %258 = vst [vmem:[#allocation3] sm:$0xf] 0
          %259 = vst [vmem:[#allocation3 + $0x4] sm:$0xf] 0
          %260 = vst [vmem:[#allocation3 + $0x8] sm:$0x1] 0
          %261 = vst [vmem:[#allocation3 + $0xc] sm:$0xf] 0
          %262 = vst [vmem:[#allocation3 + $0x10] sm:$0xf] 0
          %263 = vst [vmem:[#allocation3 + $0x14] sm:$0x1] 0
          %264 = vst [vmem:[#allocation3 + $0x18] sm:$0xf] 0
          %265 = vst [vmem:[#allocation3 + $0x1c] sm:$0xf] 0
          %266 = vst [vmem:[#allocation3 + $0x20] sm:$0x1] 0
          %267 = vst [vmem:[#allocation3 + $0x24] sm:$0xf] 0
          %268 = vst [vmem:[#allocation3 + $0x28] sm:$0xf] 0
          %269 = vst [vmem:[#allocation3 + $0x2c] sm:$0x1] 0
          %270 = vst [vmem:[#allocation3 + $0x30] sm:$0xf] 0
          %271 = vst [vmem:[#allocation3 + $0x34] sm:$0xf] 0
          %272 = vst [vmem:[#allocation3 + $0x38] sm:$0x1] 0
          %273 = vst [vmem:[#allocation3 + $0x3c] sm:$0xf] 0
          %274 = vst [vmem:[#allocation3 + $0x40] sm:$0xf] 0
          %275 = vst [vmem:[#allocation3 + $0x44] sm:$0x1] 0
          %276 = vst [vmem:[#allocation3 + $0x48] sm:$0xf] 0
          %277 = vst [vmem:[#allocation3 + $0x4c] sm:$0xf] 0
          %278 = vst [vmem:[#allocation3 + $0x50] sm:$0x1] 0
          %279 = vst [vmem:[#allocation3 + $0x54] sm:$0xf] 0
          %280 = vst [vmem:[#allocation3 + $0x58] sm:$0xf] 0
          %281 = vst [vmem:[#allocation3 + $0x5c] sm:$0x1] 0
          %282 = vst [vmem:[#allocation3 + $0x60] sm:$0xf] 0
          %283 = vst [vmem:[#allocation3 + $0x64] sm:$0xf] 0
          %284 = vst [vmem:[#allocation3 + $0x68] sm:$0x1] 0
          %285 = vst [vmem:[#allocation3 + $0x6c] sm:$0xf] 0
          %286 = vst [vmem:[#allocation3 + $0x70] sm:$0xf] 0
          %287 = vst [vmem:[#allocation3 + $0x74] sm:$0x1] 0
          %288 = vst [vmem:[#allocation3 + $0x78] sm:$0xf] 0
          %289 = vst [vmem:[#allocation3 + $0x7c] sm:$0xf] 0
          %290 = vst [vmem:[#allocation3 + $0x80] sm:$0x1] 0
          %291 = vst [vmem:[#allocation3 + $0x84] sm:$0xf] 0
          %292 = vst [vmem:[#allocation3 + $0x88] sm:$0xf] 0
          %293 = vst [vmem:[#allocation3 + $0x8c] sm:$0x1] 0
          %294 = vst [vmem:[#allocation3 + $0x90] sm:$0xf] 0
          %295 = vst [vmem:[#allocation3 + $0x94] sm:$0xf] 0
          %296 = vst [vmem:[#allocation3 + $0x98] sm:$0x1] 0
          %297 = vst [vmem:[#allocation3 + $0x9c] sm:$0xf] 0
          %298 = vst [vmem:[#allocation3 + $0xa0] sm:$0xf] 0
          %299 = vst [vmem:[#allocation3 + $0xa4] sm:$0x1] 0
          %300 = vst [vmem:[#allocation3 + $0xa8] sm:$0xf] 0
          %301 = vst [vmem:[#allocation3 + $0xac] sm:$0xf] 0
          %302 = vst [vmem:[#allocation3 + $0xb0] sm:$0x1] 0
          %303 = vst [vmem:[#allocation3 + $0xb4] sm:$0xf] 0
          %304 = vst [vmem:[#allocation3 + $0xb8] sm:$0xf] 0
          %305 = vst [vmem:[#allocation3 + $0xbc] sm:$0x1] 0
          %306 = vst [vmem:[#allocation3 + $0xc0] sm:$0xf] 0
          %307 = vst [vmem:[#allocation3 + $0xc4] sm:$0xf] 0
          %308 = vst [vmem:[#allocation3 + $0xc8] sm:$0x1] 0
          %309 = vst [vmem:[#allocation3 + $0xcc] sm:$0xf] 0
          %310 = vst [vmem:[#allocation3 + $0xd0] sm:$0xf] 0
          %311 = vst [vmem:[#allocation3 + $0xd4] sm:$0x1] 0
          loop: start=0, step=1, limit=4
          $region49: #{tpu_custom_call.1} parent=47 // loop_pre_header
            _
          $region50: #{tpu_custom_call.1} parent=47 // loop_header
            %s313 = sphi 0, %s317
            %p314 = scmp.ge.s32.totalorder %s313, 4
          $region51: #{tpu_custom_call.1} parent=47 // loop_header_branch
            %316 = sbr.rel (%p314) target = $region55
          $region52: #{tpu_custom_call.1} parent=47 // loop_body
            %s318 = smul.u32 %s313, 4
            %s319 = smul.u32 %s318, 3
            %s320 = smul.addr %s319, 4
            %s321 = scalar_lea.vmem %s251, %s320
            %v322 = vld [vmem:[%s321] sm:$0xf]
            %v323 = vld [vmem:[%s321 + $0x4] sm:$0xf]
            %v324 = vld [vmem:[%s321 + $0xc] sm:$0xf]
            %v325 = vld [vmem:[%s321 + $0x10] sm:$0xf]
            %v326 = vld [vmem:[%s321 + $0x18] sm:$0xf]
            %v327 = vld [vmem:[%s321 + $0x1c] sm:$0xf]
            %v328 = vld [vmem:[%s321 + $0x24] sm:$0xf]
            %v329 = vld [vmem:[%s321 + $0x28] sm:$0xf]
            %v330 = vld [vmem:[%s1] sm:$0xf]
            %v331 = vld [vmem:[%s1 + $0x4] sm:$0xf]
            %v332 = vld [vmem:[%s1 + $0x8] sm:$0xf]
            %v333 = vld [vmem:[%s1 + $0xc] sm:$0xf]
            %v334 = vld [vmem:[%s1 + $0x10] sm:$0xf]
            %v335 = vld [vmem:[%s1 + $0x14] sm:$0xf]
            %v336 = vld [vmem:[%s1 + $0x18] sm:$0xf]
            %v337 = vld [vmem:[%s1 + $0x1c] sm:$0xf]
            %v338 = vld [vmem:[%s1 + $0x20] sm:$0xf]
            %v339 = vld [vmem:[%s1 + $0x24] sm:$0xf]
            %v340 = vld [vmem:[%s1 + $0x28] sm:$0xf]
            %v341 = vld [vmem:[%s1 + $0x2c] sm:$0xf]
            %v342 = vld [vmem:[%s1 + $0x30] sm:$0xf]
            %v343 = vld [vmem:[%s1 + $0x34] sm:$0xf]
            %v344 = vld [vmem:[%s1 + $0x38] sm:$0xf]
            %v345 = vld [vmem:[%s1 + $0x3c] sm:$0xf]
            %v354 = vunpack.c.l.b16 %v322
            %v355 = vunpack.c.l.b16 %v323
            %v356 = vunpack.c.l.b16 %v324
            %v357 = vunpack.c.l.b16 %v325
            %v358 = vunpack.c.l.b16 %v326
            %v359 = vunpack.c.l.b16 %v327
            %v360 = vunpack.c.l.b16 %v328
            %v361 = vunpack.c.l.b16 %v329
            %v362 = vpack.c.b16 %v355, %v354
            %v363 = vpack.c.b16 %v357, %v356
            %v364 = vpack.c.b16 %v359, %v358
            %v365 = vpack.c.b16 %v361, %v360
            %v386 = vunpack.c.l.b16 %v330
            %v387 = vunpack.c.l.b16 %v331
            %v388 = vunpack.c.l.b16 %v332
            %v389 = vunpack.c.l.b16 %v333
            %v390 = vunpack.c.l.b16 %v334
            %v391 = vunpack.c.l.b16 %v335
            %v392 = vunpack.c.l.b16 %v336
            %v393 = vunpack.c.l.b16 %v337
            %v394 = vunpack.c.l.b16 %v338
            %v395 = vunpack.c.l.b16 %v339
            %v396 = vunpack.c.l.b16 %v340
            %v397 = vunpack.c.l.b16 %v341
            %v398 = vunpack.c.l.b16 %v342
            %v399 = vunpack.c.l.b16 %v343
            %v400 = vunpack.c.l.b16 %v344
            %v401 = vunpack.c.l.b16 %v345
            %v402 = vpack.c.b16 %v387, %v386
            %v403 = vpack.c.b16 %v389, %v388
            %v404 = vpack.c.b16 %v391, %v390
            %v405 = vpack.c.b16 %v393, %v392
            %v406 = vpack.c.b16 %v395, %v394
            %v407 = vpack.c.b16 %v397, %v396
            %v408 = vpack.c.b16 %v399, %v398
            %v409 = vpack.c.b16 %v401, %v400
            %418 = vmatprep.subr.bf16.mxu0 0
            %419 = vmatpush1.bf16.msra.mxu0 %v402
            %420 = vmatprep.subr.bf16.mxu0 0
            %421 = vmatpush1.bf16.msra.mxu0 %v403
            %422 = vmatprep.subr.bf16.mxu0 0
            %423 = vmatpush1.bf16.msra.mxu0 %v404
            %424 = vmatprep.subr.bf16.mxu0 0
            %425 = vmatpush1.bf16.msra.mxu0 %v405
            %426 = vmatprep.subr.bf16.mxu0 0
            %427 = vmatpush1.bf16.msra.mxu0 %v406
            %428 = vmatprep.subr.bf16.mxu0 0
            %429 = vmatpush1.bf16.msra.mxu0 %v407
            %430 = vmatprep.subr.bf16.mxu0 0
            %431 = vmatpush1.bf16.msra.mxu0 %v408
            %432 = vmatprep.subr.bf16.mxu0 0
            %433 = vmatpush1.bf16.msra.mxu0 %v409
            %434 = vmatprep.subr.bf16.mxu0 0
            %435 = vmatpush1.bf16.msra.mxu0 0
            %436 = vmatprep.subr.bf16.mxu0 0
            %437 = vmatpush1.bf16.msra.mxu0 0
            %438 = vmatprep.subr.bf16.mxu0 0
            %439 = vmatpush1.bf16.msra.mxu0 0
            %440 = vmatprep.subr.bf16.mxu0 0
            %441 = vmatpush1.bf16.msra.mxu0 0
            %442 = vmatprep.subr.bf16.mxu0 0
            %443 = vmatpush1.bf16.msra.mxu0 0
            %444 = vmatprep.subr.bf16.mxu0 0
            %445 = vmatpush1.bf16.msra.mxu0 0
            %446 = vmatprep.subr.bf16.mxu0 0
            %447 = vmatpush1.bf16.msra.mxu0 0
            %448 = vmatprep.subr.bf16.mxu0 0
            %449 = vmatpush1.bf16.msra.mxu0 0
            %450 = vmatprep.mubr.bf16.mxu0 0
            %451 = vmatmul.mubr.bf16.gmra.mrb[0].mxu0 %v362
            %v452 = vpop.f32.mrb[0].mxu0
            %v453 = vadd.f32 0.0, %v452
            %v454 = vpop.f32.mrb[0].mxu0
            %v455 = vpop.f32.mrb[0].mxu0
            %v456 = vadd.f32 0.0, %v455
            %v457 = vpop.f32.mrb[0].mxu0
            %458 = vmatprep.mubr.bf16.mxu0 0
            %459 = vmatmul.mubr.bf16.gmra.mrb[0].mxu0 %v363
            %v460 = vpop.f32.mrb[0].mxu0
            %v461 = vadd.f32 0.0, %v460
            %v462 = vpop.f32.mrb[0].mxu0
            %v463 = vpop.f32.mrb[0].mxu0
            %v464 = vadd.f32 0.0, %v463
            %v465 = vpop.f32.mrb[0].mxu0
            %466 = vmatprep.mubr.bf16.mxu0 0
            %467 = vmatmul.mubr.bf16.gmra.mrb[0].mxu0 %v364
            %v468 = vpop.f32.mrb[0].mxu0
            %v469 = vadd.f32 0.0, %v468
            %v470 = vpop.f32.mrb[0].mxu0
            %v471 = vpop.f32.mrb[0].mxu0
            %v472 = vadd.f32 0.0, %v471
            %v473 = vpop.f32.mrb[0].mxu0
            %474 = vmatprep.mubr.bf16.mxu0 0
            %475 = vmatmul.mubr.bf16.gmra.mrb[0].mxu0 %v365
            %v476 = vpop.f32.mrb[0].mxu0
            %v477 = vadd.f32 0.0, %v476
            %v478 = vpop.f32.mrb[0].mxu0
            %v479 = vpop.f32.mrb[0].mxu0
            %v480 = vadd.f32 0.0, %v479
            %v481 = vpop.f32.mrb[0].mxu0
            %482 = vdwg.mxu0
            %483 = vst [vmem:[#allocation2] sm:$0xff] %v453
            %484 = vst [vmem:[#allocation2 + $0x8] sm:$0xff] %v456
            %485 = vst [vmem:[#allocation2 + $0x10] sm:$0xff] %v461
            %486 = vst [vmem:[#allocation2 + $0x18] sm:$0xff] %v464
            %487 = vst [vmem:[#allocation2 + $0x20] sm:$0xff] %v469
            %488 = vst [vmem:[#allocation2 + $0x28] sm:$0xff] %v472
            %489 = vst [vmem:[#allocation2 + $0x30] sm:$0xff] %v477
            %490 = vst [vmem:[#allocation2 + $0x38] sm:$0xff] %v480
            %v491 = vld [vmem:[%s321] sm:$0xf]
            %v492 = vld [vmem:[%s321 + $0x4] sm:$0xf]
            %v493 = vld [vmem:[%s321 + $0x8] sm:$0x1]
            %v494 = vld [vmem:[%s321 + $0xc] sm:$0xf]
            %v495 = vld [vmem:[%s321 + $0x10] sm:$0xf]
            %v496 = vld [vmem:[%s321 + $0x14] sm:$0x1]
            %v497 = vld [vmem:[%s321 + $0x18] sm:$0xf]
            %v498 = vld [vmem:[%s321 + $0x1c] sm:$0xf]
            %v499 = vld [vmem:[%s321 + $0x20] sm:$0x1]
            %v500 = vld [vmem:[%s321 + $0x24] sm:$0xf]
            %v501 = vld [vmem:[%s321 + $0x28] sm:$0xf]
            %v502 = vld [vmem:[%s321 + $0x2c] sm:$0x1]
            %vm503 = vsmask.f32 3328
            %vm504 = vsmask.f32 7440
            %vm505 = vmor %vm503, %vm504
            %v507 = vshrl.u32 %v491, 16
            %v509 = vrot.slane %v507, 4
            %v510 = vshll.u32 %v491, 16
            %v512 = vrot.slane %v510, 5
            %v513 = vor.u32 %v509, %v512
            %v514 = vrot.slane %v513, 4
            %v516 = vshll.u32 %v492, 16
            %v518 = vrot.slane %v516, 5
            %v519 = vsel %vm505, %v514, %v518
            %v520 = vshrl.u32 %v492, 16
            %v522 = vrot.slane %v520, 4
            %v523 = vor.u32 %v522, %v518
            %v524 = vrot.slane %v523, 4
            %v526 = vshll.u32 %v493, 16
            %v528 = vrot.slane %v526, 5
            %v529 = vsel %vm505, %v524, %v528
            %v531 = vshrl.u32 %v494, 16
            %v533 = vrot.slane %v531, 4
            %v534 = vshll.u32 %v494, 16
            %v536 = vrot.slane %v534, 5
            %v537 = vor.u32 %v533, %v536
            %v538 = vrot.slane %v537, 4
            %v540 = vshll.u32 %v495, 16
            %v542 = vrot.slane %v540, 5
            %v543 = vsel %vm505, %v538, %v542
            %v544 = vshrl.u32 %v495, 16
            %v546 = vrot.slane %v544, 4
            %v547 = vor.u32 %v546, %v542
            %v548 = vrot.slane %v547, 4
            %v550 = vshll.u32 %v496, 16
            %v552 = vrot.slane %v550, 5
            %v553 = vsel %vm505, %v548, %v552
            %v555 = vshrl.u32 %v497, 16
            %v557 = vrot.slane %v555, 4
            %v558 = vshll.u32 %v497, 16
            %v560 = vrot.slane %v558, 5
            %v561 = vor.u32 %v557, %v560
            %v562 = vrot.slane %v561, 4
            %v564 = vshll.u32 %v498, 16
            %v566 = vrot.slane %v564, 5
            %v567 = vsel %vm505, %v562, %v566
            %v568 = vshrl.u32 %v498, 16
            %v570 = vrot.slane %v568, 4
            %v571 = vor.u32 %v570, %v566
            %v572 = vrot.slane %v571, 4
            %v574 = vshll.u32 %v499, 16
            %v576 = vrot.slane %v574, 5
            %v577 = vsel %vm505, %v572, %v576
            %v579 = vshrl.u32 %v500, 16
            %v581 = vrot.slane %v579, 4
            %v582 = vshll.u32 %v500, 16
            %v584 = vrot.slane %v582, 5
            %v585 = vor.u32 %v581, %v584
            %v586 = vrot.slane %v585, 4
            %v588 = vshll.u32 %v501, 16
            %v590 = vrot.slane %v588, 5
            %v591 = vsel %vm505, %v586, %v590
            %v592 = vshrl.u32 %v501, 16
            %v594 = vrot.slane %v592, 4
            %v595 = vor.u32 %v594, %v590
            %v596 = vrot.slane %v595, 4
            %v598 = vshll.u32 %v502, 16
            %v600 = vrot.slane %v598, 5
            %v601 = vsel %vm505, %v596, %v600
            %s602 = scalar_lea.vmem %s1, 64
            %v603 = vld [vmem:[%s602] sm:$0xf]
            %v604 = vld [vmem:[%s602 + $0x4] sm:$0xf]
            %v605 = vld [vmem:[%s602 + $0x8] sm:$0xf]
            %v606 = vld [vmem:[%s602 + $0xc] sm:$0xf]
            %v607 = vld [vmem:[%s602 + $0x10] sm:$0xf]
            %v608 = vld [vmem:[%s602 + $0x14] sm:$0xf]
            %v609 = vld [vmem:[%s602 + $0x18] sm:$0xf]
            %v610 = vld [vmem:[%s602 + $0x1c] sm:$0xf]
            %v611 = vld [vmem:[%s602 + $0x20] sm:$0xf]
            %v612 = vld [vmem:[%s602 + $0x24] sm:$0xf]
            %v613 = vld [vmem:[%s602 + $0x28] sm:$0xf]
            %v614 = vld [vmem:[%s602 + $0x2c] sm:$0xf]
            %v615 = vld [vmem:[%s602 + $0x30] sm:$0xf]
            %v616 = vld [vmem:[%s602 + $0x34] sm:$0xf]
            %v617 = vld [vmem:[%s602 + $0x38] sm:$0xf]
            %v618 = vld [vmem:[%s602 + $0x3c] sm:$0xf]
            %v619 = vunpack.c.l.b16 %v519
            %v620 = vunpack.c.l.b16 %v529
            %v621 = vunpack.c.l.b16 %v543
            %v622 = vunpack.c.l.b16 %v553
            %v623 = vunpack.c.l.b16 %v567
            %v624 = vunpack.c.l.b16 %v577
            %v625 = vunpack.c.l.b16 %v591
            %v626 = vunpack.c.l.b16 %v601
            %v627 = vpack.c.b16 %v620, %v619
            %v628 = vpack.c.b16 %v622, %v621
            %v629 = vpack.c.b16 %v624, %v623
            %v630 = vpack.c.b16 %v626, %v625
            %v651 = vunpack.c.l.b16 %v603
            %v652 = vunpack.c.l.b16 %v604
            %v653 = vunpack.c.l.b16 %v605
            %v654 = vunpack.c.l.b16 %v606
            %v655 = vunpack.c.l.b16 %v607
            %v656 = vunpack.c.l.b16 %v608
            %v657 = vunpack.c.l.b16 %v609
            %v658 = vunpack.c.l.b16 %v610
            %v659 = vunpack.c.l.b16 %v611
            %v660 = vunpack.c.l.b16 %v612
            %v661 = vunpack.c.l.b16 %v613
            %v662 = vunpack.c.l.b16 %v614
            %v663 = vunpack.c.l.b16 %v615
            %v664 = vunpack.c.l.b16 %v616
            %v665 = vunpack.c.l.b16 %v617
            %v666 = vunpack.c.l.b16 %v618
            %v667 = vpack.c.b16 %v652, %v651
            %v668 = vpack.c.b16 %v654, %v653
            %v669 = vpack.c.b16 %v656, %v655
            %v670 = vpack.c.b16 %v658, %v657
            %v671 = vpack.c.b16 %v660, %v659
            %v672 = vpack.c.b16 %v662, %v661
            %v673 = vpack.c.b16 %v664, %v663
            %v674 = vpack.c.b16 %v666, %v665
            %683 = vmatprep.subr.bf16.mxu0 0
            %684 = vmatpush1.bf16.msra.mxu0 %v667
            %685 = vmatprep.subr.bf16.mxu0 0
            %686 = vmatpush1.bf16.msra.mxu0 %v668
            %687 = vmatprep.subr.bf16.mxu0 0
            %688 = vmatpush1.bf16.msra.mxu0 %v669
            %689 = vmatprep.subr.bf16.mxu0 0
            %690 = vmatpush1.bf16.msra.mxu0 %v670
            %691 = vmatprep.subr.bf16.mxu0 0
            %692 = vmatpush1.bf16.msra.mxu0 %v671
            %693 = vmatprep.subr.bf16.mxu0 0
            %694 = vmatpush1.bf16.msra.mxu0 %v672
            %695 = vmatprep.subr.bf16.mxu0 0
            %696 = vmatpush1.bf16.msra.mxu0 %v673
            %697 = vmatprep.subr.bf16.mxu0 0
            %698 = vmatpush1.bf16.msra.mxu0 %v674
            %699 = vmatprep.subr.bf16.mxu0 0
            %700 = vmatpush1.bf16.msra.mxu0 0
            %701 = vmatprep.subr.bf16.mxu0 0
            %702 = vmatpush1.bf16.msra.mxu0 0
            %703 = vmatprep.subr.bf16.mxu0 0
            %704 = vmatpush1.bf16.msra.mxu0 0
            %705 = vmatprep.subr.bf16.mxu0 0
            %706 = vmatpush1.bf16.msra.mxu0 0
            %707 = vmatprep.subr.bf16.mxu0 0
            %708 = vmatpush1.bf16.msra.mxu0 0
            %709 = vmatprep.subr.bf16.mxu0 0
            %710 = vmatpush1.bf16.msra.mxu0 0
            %711 = vmatprep.subr.bf16.mxu0 0
            %712 = vmatpush1.bf16.msra.mxu0 0
            %713 = vmatprep.subr.bf16.mxu0 0
            %714 = vmatpush1.bf16.msra.mxu0 0
            %715 = vmatprep.mubr.bf16.mxu0 0
            %716 = vmatmul.mubr.bf16.gmra.mrb[0].mxu0 %v627
            %v717 = vpop.f32.mrb[0].mxu0
            %v718 = vadd.f32 0.0, %v717
            %v719 = vpop.f32.mrb[0].mxu0
            %v720 = vpop.f32.mrb[0].mxu0
            %v721 = vadd.f32 0.0, %v720
            %v722 = vpop.f32.mrb[0].mxu0
            %723 = vmatprep.mubr.bf16.mxu0 0
            %724 = vmatmul.mubr.bf16.gmra.mrb[0].mxu0 %v628
            %v725 = vpop.f32.mrb[0].mxu0
            %v726 = vadd.f32 0.0, %v725
            %v727 = vpop.f32.mrb[0].mxu0
            %v728 = vpop.f32.mrb[0].mxu0
            %v729 = vadd.f32 0.0, %v728
            %v730 = vpop.f32.mrb[0].mxu0
            %731 = vmatprep.mubr.bf16.mxu0 0
            %732 = vmatmul.mubr.bf16.gmra.mrb[0].mxu0 %v629
            %v733 = vpop.f32.mrb[0].mxu0
            %v734 = vadd.f32 0.0, %v733
            %v735 = vpop.f32.mrb[0].mxu0
            %v736 = vpop.f32.mrb[0].mxu0
            %v737 = vadd.f32 0.0, %v736
            %v738 = vpop.f32.mrb[0].mxu0
            %739 = vmatprep.mubr.bf16.mxu0 0
            %740 = vmatmul.mubr.bf16.gmra.mrb[0].mxu0 %v630
            %v741 = vpop.f32.mrb[0].mxu0
            %v742 = vadd.f32 0.0, %v741
            %v743 = vpop.f32.mrb[0].mxu0
            %v744 = vpop.f32.mrb[0].mxu0
            %v745 = vadd.f32 0.0, %v744
            %v746 = vpop.f32.mrb[0].mxu0
            %747 = vdwg.mxu0
            %v748 = vld [vmem:[#allocation2] sm:$0xff]
            %v749 = vld [vmem:[#allocation2 + $0x8] sm:$0xff]
            %v750 = vld [vmem:[#allocation2 + $0x10] sm:$0xff]
            %v751 = vld [vmem:[#allocation2 + $0x18] sm:$0xff]
            %v752 = vld [vmem:[#allocation2 + $0x20] sm:$0xff]
            %v753 = vld [vmem:[#allocation2 + $0x28] sm:$0xff]
            %v754 = vld [vmem:[#allocation2 + $0x30] sm:$0xff]
            %v755 = vld [vmem:[#allocation2 + $0x38] sm:$0xff]
            %v756 = vadd.f32 %v748, %v718
            %v757 = vadd.f32 %v749, %v721
            %v758 = vadd.f32 %v750, %v726
            %v759 = vadd.f32 %v751, %v729
            %v760 = vadd.f32 %v752, %v734
            %v761 = vadd.f32 %v753, %v737
            %v762 = vadd.f32 %v754, %v742
            %v763 = vadd.f32 %v755, %v745
            %764 = vst [vmem:[#allocation2] sm:$0xff] %v756
            %765 = vst [vmem:[#allocation2 + $0x8] sm:$0xff] %v757
            %766 = vst [vmem:[#allocation2 + $0x10] sm:$0xff] %v758
            %767 = vst [vmem:[#allocation2 + $0x18] sm:$0xff] %v759
            %768 = vst [vmem:[#allocation2 + $0x20] sm:$0xff] %v760
            %769 = vst [vmem:[#allocation2 + $0x28] sm:$0xff] %v761
            %770 = vst [vmem:[#allocation2 + $0x30] sm:$0xff] %v762
            %771 = vst [vmem:[#allocation2 + $0x38] sm:$0xff] %v763
            %v772 = vld [vmem:[%s321] sm:$0xe]
            %v773 = vld [vmem:[%s321 + $0x4] sm:$0xf]
            %v774 = vld [vmem:[%s321 + $0x8] sm:$0x1]
            %v775 = vld [vmem:[%s321 + $0xc] sm:$0xe]
            %v776 = vld [vmem:[%s321 + $0x10] sm:$0xf]
            %v777 = vld [vmem:[%s321 + $0x14] sm:$0x1]
            %v778 = vld [vmem:[%s321 + $0x18] sm:$0xe]
            %v779 = vld [vmem:[%s321 + $0x1c] sm:$0xf]
            %v780 = vld [vmem:[%s321 + $0x20] sm:$0x1]
            %v781 = vld [vmem:[%s321 + $0x24] sm:$0xe]
            %v782 = vld [vmem:[%s321 + $0x28] sm:$0xf]
            %v783 = vld [vmem:[%s321 + $0x2c] sm:$0x1]
            %vm796 = vcmask 1042432
            %vm797 = vcmask 1046532
            %vm798 = vmor %vm796, %vm797
            %v799 = vrot.slane %v772, 5
            %v800 = vrot.slane %v799, 4
            %v801 = vrot.slane %v773, 5
            %v802 = vsel %vm798, %v800, %v801
            %v803 = vrot.slane %v801, 4
            %v804 = vrot.slane %v774, 5
            %v805 = vsel %vm798, %v803, %v804
            %v806 = vrot.slane %v775, 5
            %v807 = vrot.slane %v806, 4
            %v808 = vrot.slane %v776, 5
            %v809 = vsel %vm798, %v807, %v808
            %v810 = vrot.slane %v808, 4
            %v811 = vrot.slane %v777, 5
            %v812 = vsel %vm798, %v810, %v811
            %v813 = vrot.slane %v778, 5
            %v814 = vrot.slane %v813, 4
            %v815 = vrot.slane %v779, 5
            %v816 = vsel %vm798, %v814, %v815
            %v817 = vrot.slane %v815, 4
            %v818 = vrot.slane %v780, 5
            %v819 = vsel %vm798, %v817, %v818
            %v820 = vrot.slane %v781, 5
            %v821 = vrot.slane %v820, 4
            %v822 = vrot.slane %v782, 5
            %v823 = vsel %vm798, %v821, %v822
            %v824 = vrot.slane %v822, 4
            %v825 = vrot.slane %v783, 5
            %v826 = vsel %vm798, %v824, %v825
            %s827 = scalar_lea.vmem %s1, 128
            %v828 = vld [vmem:[%s827] sm:$0xf]
            %v829 = vld [vmem:[%s827 + $0x4] sm:$0xf]
            %v830 = vld [vmem:[%s827 + $0x8] sm:$0xf]
            %v831 = vld [vmem:[%s827 + $0xc] sm:$0xf]
            %v832 = vld [vmem:[%s827 + $0x10] sm:$0xf]
            %v833 = vld [vmem:[%s827 + $0x14] sm:$0xf]
            %v834 = vld [vmem:[%s827 + $0x18] sm:$0xf]
            %v835 = vld [vmem:[%s827 + $0x1c] sm:$0xf]
            %v836 = vld [vmem:[%s827 + $0x20] sm:$0xf]
            %v837 = vld [vmem:[%s827 + $0x24] sm:$0xf]
            %v838 = vld [vmem:[%s827 + $0x28] sm:$0xf]
            %v839 = vld [vmem:[%s827 + $0x2c] sm:$0xf]
            %v840 = vld [vmem:[%s827 + $0x30] sm:$0xf]
            %v841 = vld [vmem:[%s827 + $0x34] sm:$0xf]
            %v842 = vld [vmem:[%s827 + $0x38] sm:$0xf]
            %v843 = vld [vmem:[%s827 + $0x3c] sm:$0xf]
            %v844 = vunpack.c.l.b16 %v802
            %v845 = vunpack.c.l.b16 %v805
            %v846 = vunpack.c.l.b16 %v809
            %v847 = vunpack.c.l.b16 %v812
            %v848 = vunpack.c.l.b16 %v816
            %v849 = vunpack.c.l.b16 %v819
            %v850 = vunpack.c.l.b16 %v823
            %v851 = vunpack.c.l.b16 %v826
            %v852 = vpack.c.b16 %v845, %v844
            %v853 = vpack.c.b16 %v847, %v846
            %v854 = vpack.c.b16 %v849, %v848
            %v855 = vpack.c.b16 %v851, %v850
            %v876 = vunpack.c.l.b16 %v828
            %v877 = vunpack.c.l.b16 %v829
            %v878 = vunpack.c.l.b16 %v830
            %v879 = vunpack.c.l.b16 %v831
            %v880 = vunpack.c.l.b16 %v832
            %v881 = vunpack.c.l.b16 %v833
            %v882 = vunpack.c.l.b16 %v834
            %v883 = vunpack.c.l.b16 %v835
            %v884 = vunpack.c.l.b16 %v836
            %v885 = vunpack.c.l.b16 %v837
            %v886 = vunpack.c.l.b16 %v838
            %v887 = vunpack.c.l.b16 %v839
            %v888 = vunpack.c.l.b16 %v840
            %v889 = vunpack.c.l.b16 %v841
            %v890 = vunpack.c.l.b16 %v842
            %v891 = vunpack.c.l.b16 %v843
            %v892 = vpack.c.b16 %v877, %v876
            %v893 = vpack.c.b16 %v879, %v878
            %v894 = vpack.c.b16 %v881, %v880
            %v895 = vpack.c.b16 %v883, %v882
            %v896 = vpack.c.b16 %v885, %v884
            %v897 = vpack.c.b16 %v887, %v886
            %v898 = vpack.c.b16 %v889, %v888
            %v899 = vpack.c.b16 %v891, %v890
            %908 = vmatprep.subr.bf16.mxu0 0
            %909 = vmatpush1.bf16.msra.mxu0 %v892
            %910 = vmatprep.subr.bf16.mxu0 0
            %911 = vmatpush1.bf16.msra.mxu0 %v893
            %912 = vmatprep.subr.bf16.mxu0 0
            %913 = vmatpush1.bf16.msra.mxu0 %v894
            %914 = vmatprep.subr.bf16.mxu0 0
            %915 = vmatpush1.bf16.msra.mxu0 %v895
            %916 = vmatprep.subr.bf16.mxu0 0
            %917 = vmatpush1.bf16.msra.mxu0 %v896
            %918 = vmatprep.subr.bf16.mxu0 0
            %919 = vmatpush1.bf16.msra.mxu0 %v897
            %920 = vmatprep.subr.bf16.mxu0 0
            %921 = vmatpush1.bf16.msra.mxu0 %v898
            %922 = vmatprep.subr.bf16.mxu0 0
            %923 = vmatpush1.bf16.msra.mxu0 %v899
            %924 = vmatprep.subr.bf16.mxu0 0
            %925 = vmatpush1.bf16.msra.mxu0 0
            %926 = vmatprep.subr.bf16.mxu0 0
            %927 = vmatpush1.bf16.msra.mxu0 0
            %928 = vmatprep.subr.bf16.mxu0 0
            %929 = vmatpush1.bf16.msra.mxu0 0
            %930 = vmatprep.subr.bf16.mxu0 0
            %931 = vmatpush1.bf16.msra.mxu0 0
            %932 = vmatprep.subr.bf16.mxu0 0
            %933 = vmatpush1.bf16.msra.mxu0 0
            %934 = vmatprep.subr.bf16.mxu0 0
            %935 = vmatpush1.bf16.msra.mxu0 0
            %936 = vmatprep.subr.bf16.mxu0 0
            %937 = vmatpush1.bf16.msra.mxu0 0
            %938 = vmatprep.subr.bf16.mxu0 0
            %939 = vmatpush1.bf16.msra.mxu0 0
            %940 = vmatprep.mubr.bf16.mxu0 0
            %941 = vmatmul.mubr.bf16.gmra.mrb[0].mxu0 %v852
            %v942 = vpop.f32.mrb[0].mxu0
            %v943 = vadd.f32 0.0, %v942
            %v944 = vpop.f32.mrb[0].mxu0
            %v945 = vpop.f32.mrb[0].mxu0
            %v946 = vadd.f32 0.0, %v945
            %v947 = vpop.f32.mrb[0].mxu0
            %948 = vmatprep.mubr.bf16.mxu0 0
            %949 = vmatmul.mubr.bf16.gmra.mrb[0].mxu0 %v853
            %v950 = vpop.f32.mrb[0].mxu0
            %v951 = vadd.f32 0.0, %v950
            %v952 = vpop.f32.mrb[0].mxu0
            %v953 = vpop.f32.mrb[0].mxu0
            %v954 = vadd.f32 0.0, %v953
            %v955 = vpop.f32.mrb[0].mxu0
            %956 = vmatprep.mubr.bf16.mxu0 0
            %957 = vmatmul.mubr.bf16.gmra.mrb[0].mxu0 %v854
            %v958 = vpop.f32.mrb[0].mxu0
            %v959 = vadd.f32 0.0, %v958
            %v960 = vpop.f32.mrb[0].mxu0
            %v961 = vpop.f32.mrb[0].mxu0
            %v962 = vadd.f32 0.0, %v961
            %v963 = vpop.f32.mrb[0].mxu0
            %964 = vmatprep.mubr.bf16.mxu0 0
            %965 = vmatmul.mubr.bf16.gmra.mrb[0].mxu0 %v855
            %v966 = vpop.f32.mrb[0].mxu0
            %v967 = vadd.f32 0.0, %v966
            %v968 = vpop.f32.mrb[0].mxu0
            %v969 = vpop.f32.mrb[0].mxu0
            %v970 = vadd.f32 0.0, %v969
            %v971 = vpop.f32.mrb[0].mxu0
            %972 = vdwg.mxu0
            %v973 = vld [vmem:[#allocation2] sm:$0xff]
            %v974 = vld [vmem:[#allocation2 + $0x8] sm:$0xff]
            %v975 = vld [vmem:[#allocation2 + $0x10] sm:$0xff]
            %v976 = vld [vmem:[#allocation2 + $0x18] sm:$0xff]
            %v977 = vld [vmem:[#allocation2 + $0x20] sm:$0xff]
            %v978 = vld [vmem:[#allocation2 + $0x28] sm:$0xff]
            %v979 = vld [vmem:[#allocation2 + $0x30] sm:$0xff]
            %v980 = vld [vmem:[#allocation2 + $0x38] sm:$0xff]
            %v981 = vadd.f32 %v973, %v943
            %v982 = vadd.f32 %v974, %v946
            %v983 = vadd.f32 %v975, %v951
            %v984 = vadd.f32 %v976, %v954
            %v985 = vadd.f32 %v977, %v959
            %v986 = vadd.f32 %v978, %v962
            %v987 = vadd.f32 %v979, %v967
            %v988 = vadd.f32 %v980, %v970
            %989 = vst [vmem:[#allocation2] sm:$0xff] %v981
            %990 = vst [vmem:[#allocation2 + $0x8] sm:$0xff] %v982
            %991 = vst [vmem:[#allocation2 + $0x10] sm:$0xff] %v983
            %992 = vst [vmem:[#allocation2 + $0x18] sm:$0xff] %v984
            %993 = vst [vmem:[#allocation2 + $0x20] sm:$0xff] %v985
            %994 = vst [vmem:[#allocation2 + $0x28] sm:$0xff] %v986
            %995 = vst [vmem:[#allocation2 + $0x30] sm:$0xff] %v987
            %996 = vst [vmem:[#allocation2 + $0x38] sm:$0xff] %v988
            %s997 = sadd.s32 %s318, 1
            %s998 = smul.u32 %s997, 3
            %s999 = smul.addr %s998, 4
            %s1000 = scalar_lea.vmem %s251, %s999
            %v1001 = vld [vmem:[%s1000] sm:$0xf]
            %v1002 = vld [vmem:[%s1000 + $0x4] sm:$0xf]
            %v1003 = vld [vmem:[%s1000 + $0xc] sm:$0xf]
            %v1004 = vld [vmem:[%s1000 + $0x10] sm:$0xf]
            %v1005 = vld [vmem:[%s1000 + $0x18] sm:$0xf]
            %v1006 = vld [vmem:[%s1000 + $0x1c] sm:$0xf]
            %v1007 = vld [vmem:[%s1000 + $0x24] sm:$0xf]
            %v1008 = vld [vmem:[%s1000 + $0x28] sm:$0xf]
            %s1009 = scalar_lea.vmem %s1, 192
            %v1010 = vld [vmem:[%s1009] sm:$0xf]
            %v1011 = vld [vmem:[%s1009 + $0x4] sm:$0xf]
            %v1012 = vld [vmem:[%s1009 + $0x8] sm:$0xf]
            %v1013 = vld [vmem:[%s1009 + $0xc] sm:$0xf]
            %v1014 = vld [vmem:[%s1009 + $0x10] sm:$0xf]
            %v1015 = vld [vmem:[%s1009 + $0x14] sm:$0xf]
            %v1016 = vld [vmem:[%s1009 + $0x18] sm:$0xf]
            %v1017 = vld [vmem:[%s1009 + $0x1c] sm:$0xf]
            %v1018 = vld [vmem:[%s1009 + $0x20] sm:$0xf]
            %v1019 = vld [vmem:[%s1009 + $0x24] sm:$0xf]
            %v1020 = vld [vmem:[%s1009 + $0x28] sm:$0xf]
            %v1021 = vld [vmem:[%s1009 + $0x2c] sm:$0xf]
            %v1022 = vld [vmem:[%s1009 + $0x30] sm:$0xf]
            %v1023 = vld [vmem:[%s1009 + $0x34] sm:$0xf]
            %v1024 = vld [vmem:[%s1009 + $0x38] sm:$0xf]
            %v1025 = vld [vmem:[%s1009 + $0x3c] sm:$0xf]
            %v1034 = vunpack.c.l.b16 %v1001
            %v1035 = vunpack.c.l.b16 %v1002
            %v1036 = vunpack.c.l.b16 %v1003
            %v1037 = vunpack.c.l.b16 %v1004
            %v1038 = vunpack.c.l.b16 %v1005
            %v1039 = vunpack.c.l.b16 %v1006
            %v1040 = vunpack.c.l.b16 %v1007
            %v1041 = vunpack.c.l.b16 %v1008
            %v1042 = vpack.c.b16 %v1035, %v1034
            %v1043 = vpack.c.b16 %v1037, %v1036
            %v1044 = vpack.c.b16 %v1039, %v1038
            %v1045 = vpack.c.b16 %v1041, %v1040
            %v1066 = vunpack.c.l.b16 %v1010
            %v1067 = vunpack.c.l.b16 %v1011
            %v1068 = vunpack.c.l.b16 %v1012
            %v1069 = vunpack.c.l.b16 %v1013
            %v1070 = vunpack.c.l.b16 %v1014
            %v1071 = vunpack.c.l.b16 %v1015
            %v1072 = vunpack.c.l.b16 %v1016
            %v1073 = vunpack.c.l.b16 %v1017
            %v1074 = vunpack.c.l.b16 %v1018
            %v1075 = vunpack.c.l.b16 %v1019
            %v1076 = vunpack.c.l.b16 %v1020
            %v1077 = vunpack.c.l.b16 %v1021
            %v1078 = vunpack.c.l.b16 %v1022
            %v1079 = vunpack.c.l.b16 %v1023
            %v1080 = vunpack.c.l.b16 %v1024
            %v1081 = vunpack.c.l.b16 %v1025
            %v1082 = vpack.c.b16 %v1067, %v1066
            %v1083 = vpack.c.b16 %v1069, %v1068
            %v1084 = vpack.c.b16 %v1071, %v1070
            %v1085 = vpack.c.b16 %v1073, %v1072
            %v1086 = vpack.c.b16 %v1075, %v1074
            %v1087 = vpack.c.b16 %v1077, %v1076
            %v1088 = vpack.c.b16 %v1079, %v1078
            %v1089 = vpack.c.b16 %v1081, %v1080
            %1098 = vmatprep.subr.bf16.mxu0 0
            %1099 = vmatpush1.bf16.msra.mxu0 %v1082
            %1100 = vmatprep.subr.bf16.mxu0 0
            %1101 = vmatpush1.bf16.msra.mxu0 %v1083
            %1102 = vmatprep.subr.bf16.mxu0 0
            %1103 = vmatpush1.bf16.msra.mxu0 %v1084
            %1104 = vmatprep.subr.bf16.mxu0 0
            %1105 = vmatpush1.bf16.msra.mxu0 %v1085
            %1106 = vmatprep.subr.bf16.mxu0 0
            %1107 = vmatpush1.bf16.msra.mxu0 %v1086
            %1108 = vmatprep.subr.bf16.mxu0 0
            %1109 = vmatpush1.bf16.msra.mxu0 %v1087
            %1110 = vmatprep.subr.bf16.mxu0 0
            %1111 = vmatpush1.bf16.msra.mxu0 %v1088
            %1112 = vmatprep.subr.bf16.mxu0 0
            %1113 = vmatpush1.bf16.msra.mxu0 %v1089
            %1114 = vmatprep.subr.bf16.mxu0 0
            %1115 = vmatpush1.bf16.msra.mxu0 0
            %1116 = vmatprep.subr.bf16.mxu0 0
            %1117 = vmatpush1.bf16.msra.mxu0 0
            %1118 = vmatprep.subr.bf16.mxu0 0
            %1119 = vmatpush1.bf16.msra.mxu0 0
            %1120 = vmatprep.subr.bf16.mxu0 0
            %1121 = vmatpush1.bf16.msra.mxu0 0
            %1122 = vmatprep.subr.bf16.mxu0 0
            %1123 = vmatpush1.bf16.msra.mxu0 0
            %1124 = vmatprep.subr.bf16.mxu0 0
            %1125 = vmatpush1.bf16.msra.mxu0 0
            %1126 = vmatprep.subr.bf16.mxu0 0
            %1127 = vmatpush1.bf16.msra.mxu0 0
            %1128 = vmatprep.subr.bf16.mxu0 0
            %1129 = vmatpush1.bf16.msra.mxu0 0
            %1130 = vmatprep.mubr.bf16.mxu0 0
            %1131 = vmatmul.mubr.bf16.gmra.mrb[0].mxu0 %v1042
            %v1132 = vpop.f32.mrb[0].mxu0
            %v1133 = vadd.f32 0.0, %v1132
            %v1134 = vpop.f32.mrb[0].mxu0
            %v1135 = vpop.f32.mrb[0].mxu0
            %v1136 = vadd.f32 0.0, %v1135
            %v1137 = vpop.f32.mrb[0].mxu0
            %1138 = vmatprep.mubr.bf16.mxu0 0
            %1139 = vmatmul.mubr.bf16.gmra.mrb[0].mxu0 %v1043
            %v1140 = vpop.f32.mrb[0].mxu0
            %v1141 = vadd.f32 0.0, %v1140
            %v1142 = vpop.f32.mrb[0].mxu0
            %v1143 = vpop.f32.mrb[0].mxu0
            %v1144 = vadd.f32 0.0, %v1143
            %v1145 = vpop.f32.mrb[0].mxu0
            %1146 = vmatprep.mubr.bf16.mxu0 0
            %1147 = vmatmul.mubr.bf16.gmra.mrb[0].mxu0 %v1044
            %v1148 = vpop.f32.mrb[0].mxu0
            %v1149 = vadd.f32 0.0, %v1148
            %v1150 = vpop.f32.mrb[0].mxu0
            %v1151 = vpop.f32.mrb[0].mxu0
            %v1152 = vadd.f32 0.0, %v1151
            %v1153 = vpop.f32.mrb[0].mxu0
            %1154 = vmatprep.mubr.bf16.mxu0 0
            %1155 = vmatmul.mubr.bf16.gmra.mrb[0].mxu0 %v1045
            %v1156 = vpop.f32.mrb[0].mxu0
            %v1157 = vadd.f32 0.0, %v1156
            %v1158 = vpop.f32.mrb[0].mxu0
            %v1159 = vpop.f32.mrb[0].mxu0
            %v1160 = vadd.f32 0.0, %v1159
            %v1161 = vpop.f32.mrb[0].mxu0
            %1162 = vdwg.mxu0
            %v1163 = vld [vmem:[#allocation2] sm:$0xff]
            %v1164 = vld [vmem:[#allocation2 + $0x8] sm:$0xff]
            %v1165 = vld [vmem:[#allocation2 + $0x10] sm:$0xff]
            %v1166 = vld [vmem:[#allocation2 + $0x18] sm:$0xff]
            %v1167 = vld [vmem:[#allocation2 + $0x20] sm:$0xff]
            %v1168 = vld [vmem:[#allocation2 + $0x28] sm:$0xff]
            %v1169 = vld [vmem:[#allocation2 + $0x30] sm:$0xff]
            %v1170 = vld [vmem:[#allocation2 + $0x38] sm:$0xff]
            %v1171 = vadd.f32 %v1163, %v1133
            %v1172 = vadd.f32 %v1164, %v1136
            %v1173 = vadd.f32 %v1165, %v1141
            %v1174 = vadd.f32 %v1166, %v1144
            %v1175 = vadd.f32 %v1167, %v1149
            %v1176 = vadd.f32 %v1168, %v1152
            %v1177 = vadd.f32 %v1169, %v1157
            %v1178 = vadd.f32 %v1170, %v1160
            %1179 = vst [vmem:[#allocation2] sm:$0xff] %v1171
            %1180 = vst [vmem:[#allocation2 + $0x8] sm:$0xff] %v1172
            %1181 = vst [vmem:[#allocation2 + $0x10] sm:$0xff] %v1173
            %1182 = vst [vmem:[#allocation2 + $0x18] sm:$0xff] %v1174
            %1183 = vst [vmem:[#allocation2 + $0x20] sm:$0xff] %v1175
            %1184 = vst [vmem:[#allocation2 + $0x28] sm:$0xff] %v1176
            %1185 = vst [vmem:[#allocation2 + $0x30] sm:$0xff] %v1177
            %1186 = vst [vmem:[#allocation2 + $0x38] sm:$0xff] %v1178
            %v1187 = vld [vmem:[%s1000] sm:$0xf]
            %v1188 = vld [vmem:[%s1000 + $0x4] sm:$0xf]
            %v1189 = vld [vmem:[%s1000 + $0x8] sm:$0x1]
            %v1190 = vld [vmem:[%s1000 + $0xc] sm:$0xf]
            %v1191 = vld [vmem:[%s1000 + $0x10] sm:$0xf]
            %v1192 = vld [vmem:[%s1000 + $0x14] sm:$0x1]
            %v1193 = vld [vmem:[%s1000 + $0x18] sm:$0xf]
            %v1194 = vld [vmem:[%s1000 + $0x1c] sm:$0xf]
            %v1195 = vld [vmem:[%s1000 + $0x20] sm:$0x1]
            %v1196 = vld [vmem:[%s1000 + $0x24] sm:$0xf]
            %v1197 = vld [vmem:[%s1000 + $0x28] sm:$0xf]
            %v1198 = vld [vmem:[%s1000 + $0x2c] sm:$0x1]
            %v1200 = vshrl.u32 %v1187, 16
            %v1202 = vrot.slane %v1200, 4
            %v1203 = vshll.u32 %v1187, 16
            %v1205 = vrot.slane %v1203, 5
            %v1206 = vor.u32 %v1202, %v1205
            %v1207 = vrot.slane %v1206, 4
            %v1209 = vshll.u32 %v1188, 16
            %v1211 = vrot.slane %v1209, 5
            %v1212 = vsel %vm505, %v1207, %v1211
            %v1213 = vshrl.u32 %v1188, 16
            %v1215 = vrot.slane %v1213, 4
            %v1216 = vor.u32 %v1215, %v1211
            %v1217 = vrot.slane %v1216, 4
            %v1219 = vshll.u32 %v1189, 16
            %v1221 = vrot.slane %v1219, 5
            %v1222 = vsel %vm505, %v1217, %v1221
            %v1224 = vshrl.u32 %v1190, 16
            %v1226 = vrot.slane %v1224, 4
            %v1227 = vshll.u32 %v1190, 16
            %v1229 = vrot.slane %v1227, 5
            %v1230 = vor.u32 %v1226, %v1229
            %v1231 = vrot.slane %v1230, 4
            %v1233 = vshll.u32 %v1191, 16
            %v1235 = vrot.slane %v1233, 5
            %v1236 = vsel %vm505, %v1231, %v1235
            %v1237 = vshrl.u32 %v1191, 16
            %v1239 = vrot.slane %v1237, 4
            %v1240 = vor.u32 %v1239, %v1235
            %v1241 = vrot.slane %v1240, 4
            %v1243 = vshll.u32 %v1192, 16
            %v1245 = vrot.slane %v1243, 5
            %v1246 = vsel %vm505, %v1241, %v1245
            %v1248 = vshrl.u32 %v1193, 16
            %v1250 = vrot.slane %v1248, 4
            %v1251 = vshll.u32 %v1193, 16
            %v1253 = vrot.slane %v1251, 5
            %v1254 = vor.u32 %v1250, %v1253
            %v1255 = vrot.slane %v1254, 4
            %v1257 = vshll.u32 %v1194, 16
            %v1259 = vrot.slane %v1257, 5
            %v1260 = vsel %vm505, %v1255, %v1259
            %v1261 = vshrl.u32 %v1194, 16
            %v1263 = vrot.slane %v1261, 4
            %v1264 = vor.u32 %v1263, %v1259
            %v1265 = vrot.slane %v1264, 4
            %v1267 = vshll.u32 %v1195, 16
            %v1269 = vrot.slane %v1267, 5
            %v1270 = vsel %vm505, %v1265, %v1269
            %v1272 = vshrl.u32 %v1196, 16
            %v1274 = vrot.slane %v1272, 4
            %v1275 = vshll.u32 %v1196, 16
            %v1277 = vrot.slane %v1275, 5
            %v1278 = vor.u32 %v1274, %v1277
            %v1279 = vrot.slane %v1278, 4
            %v1281 = vshll.u32 %v1197, 16
            %v1283 = vrot.slane %v1281, 5
            %v1284 = vsel %vm505, %v1279, %v1283
            %v1285 = vshrl.u32 %v1197, 16
            %v1287 = vrot.slane %v1285, 4
            %v1288 = vor.u32 %v1287, %v1283
            %v1289 = vrot.slane %v1288, 4
            %v1291 = vshll.u32 %v1198, 16
            %v1293 = vrot.slane %v1291, 5
            %v1294 = vsel %vm505, %v1289, %v1293
            %s1295 = scalar_lea.vmem %s1, 256
            %v1296 = vld [vmem:[%s1295] sm:$0xf]
            %v1297 = vld [vmem:[%s1295 + $0x4] sm:$0xf]
            %v1298 = vld [vmem:[%s1295 + $0x8] sm:$0xf]
            %v1299 = vld [vmem:[%s1295 + $0xc] sm:$0xf]
            %v1300 = vld [vmem:[%s1295 + $0x10] sm:$0xf]
            %v1301 = vld [vmem:[%s1295 + $0x14] sm:$0xf]
            %v1302 = vld [vmem:[%s1295 + $0x18] sm:$0xf]
            %v1303 = vld [vmem:[%s1295 + $0x1c] sm:$0xf]
            %v1304 = vld [vmem:[%s1295 + $0x20] sm:$0xf]
            %v1305 = vld [vmem:[%s1295 + $0x24] sm:$0xf]
            %v1306 = vld [vmem:[%s1295 + $0x28] sm:$0xf]
            %v1307 = vld [vmem:[%s1295 + $0x2c] sm:$0xf]
            %v1308 = vld [vmem:[%s1295 + $0x30] sm:$0xf]
            %v1309 = vld [vmem:[%s1295 + $0x34] sm:$0xf]
            %v1310 = vld [vmem:[%s1295 + $0x38] sm:$0xf]
            %v1311 = vld [vmem:[%s1295 + $0x3c] sm:$0xf]
            %v1312 = vunpack.c.l.b16 %v1212
            %v1313 = vunpack.c.l.b16 %v1222
            %v1314 = vunpack.c.l.b16 %v1236
            %v1315 = vunpack.c.l.b16 %v1246
            %v1316 = vunpack.c.l.b16 %v1260
            %v1317 = vunpack.c.l.b16 %v1270
            %v1318 = vunpack.c.l.b16 %v1284
            %v1319 = vunpack.c.l.b16 %v1294
            %v1320 = vpack.c.b16 %v1313, %v1312
            %v1321 = vpack.c.b16 %v1315, %v1314
            %v1322 = vpack.c.b16 %v1317, %v1316
            %v1323 = vpack.c.b16 %v1319, %v1318
            %v1344 = vunpack.c.l.b16 %v1296
            %v1345 = vunpack.c.l.b16 %v1297
            %v1346 = vunpack.c.l.b16 %v1298
            %v1347 = vunpack.c.l.b16 %v1299
            %v1348 = vunpack.c.l.b16 %v1300
            %v1349 = vunpack.c.l.b16 %v1301
            %v1350 = vunpack.c.l.b16 %v1302
            %v1351 = vunpack.c.l.b16 %v1303
            %v1352 = vunpack.c.l.b16 %v1304
            %v1353 = vunpack.c.l.b16 %v1305
            %v1354 = vunpack.c.l.b16 %v1306
            %v1355 = vunpack.c.l.b16 %v1307
            %v1356 = vunpack.c.l.b16 %v1308
            %v1357 = vunpack.c.l.b16 %v1309
            %v1358 = vunpack.c.l.b16 %v1310
            %v1359 = vunpack.c.l.b16 %v1311
            %v1360 = vpack.c.b16 %v1345, %v1344
            %v1361 = vpack.c.b16 %v1347, %v1346
            %v1362 = vpack.c.b16 %v1349, %v1348
            %v1363 = vpack.c.b16 %v1351, %v1350
            %v1364 = vpack.c.b16 %v1353, %v1352
            %v1365 = vpack.c.b16 %v1355, %v1354
            %v1366 = vpack.c.b16 %v1357, %v1356
            %v1367 = vpack.c.b16 %v1359, %v1358
            %1376 = vmatprep.subr.bf16.mxu0 0
            %1377 = vmatpush1.bf16.msra.mxu0 %v1360
            %1378 = vmatprep.subr.bf16.mxu0 0
            %1379 = vmatpush1.bf16.msra.mxu0 %v1361
            %1380 = vmatprep.subr.bf16.mxu0 0
            %1381 = vmatpush1.bf16.msra.mxu0 %v1362
            %1382 = vmatprep.subr.bf16.mxu0 0
            %1383 = vmatpush1.bf16.msra.mxu0 %v1363
            %1384 = vmatprep.subr.bf16.mxu0 0
            %1385 = vmatpush1.bf16.msra.mxu0 %v1364
            %1386 = vmatprep.subr.bf16.mxu0 0
            %1387 = vmatpush1.bf16.msra.mxu0 %v1365
            %1388 = vmatprep.subr.bf16.mxu0 0
            %1389 = vmatpush1.bf16.msra.mxu0 %v1366
            %1390 = vmatprep.subr.bf16.mxu0 0
            %1391 = vmatpush1.bf16.msra.mxu0 %v1367
            %1392 = vmatprep.subr.bf16.mxu0 0
            %1393 = vmatpush1.bf16.msra.mxu0 0
            %1394 = vmatprep.subr.bf16.mxu0 0
            %1395 = vmatpush1.bf16.msra.mxu0 0
            %1396 = vmatprep.subr.bf16.mxu0 0
            %1397 = vmatpush1.bf16.msra.mxu0 0
            %1398 = vmatprep.subr.bf16.mxu0 0
            %1399 = vmatpush1.bf16.msra.mxu0 0
            %1400 = vmatprep.subr.bf16.mxu0 0
            %1401 = vmatpush1.bf16.msra.mxu0 0
            %1402 = vmatprep.subr.bf16.mxu0 0
            %1403 = vmatpush1.bf16.msra.mxu0 0
            %1404 = vmatprep.subr.bf16.mxu0 0
            %1405 = vmatpush1.bf16.msra.mxu0 0
            %1406 = vmatprep.subr.bf16.mxu0 0
            %1407 = vmatpush1.bf16.msra.mxu0 0
            %1408 = vmatprep.mubr.bf16.mxu0 0
            %1409 = vmatmul.mubr.bf16.gmra.mrb[0].mxu0 %v1320
            %v1410 = vpop.f32.mrb[0].mxu0
            %v1411 = vadd.f32 0.0, %v1410
            %v1412 = vpop.f32.mrb[0].mxu0
            %v1413 = vpop.f32.mrb[0].mxu0
            %v1414 = vadd.f32 0.0, %v1413
            %v1415 = vpop.f32.mrb[0].mxu0
            %1416 = vmatprep.mubr.bf16.mxu0 0
            %1417 = vmatmul.mubr.bf16.gmra.mrb[0].mxu0 %v1321
            %v1418 = vpop.f32.mrb[0].mxu0
            %v1419 = vadd.f32 0.0, %v1418
            %v1420 = vpop.f32.mrb[0].mxu0
            %v1421 = vpop.f32.mrb[0].mxu0
            %v1422 = vadd.f32 0.0, %v1421
            %v1423 = vpop.f32.mrb[0].mxu0
            %1424 = vmatprep.mubr.bf16.mxu0 0
            %1425 = vmatmul.mubr.bf16.gmra.mrb[0].mxu0 %v1322
            %v1426 = vpop.f32.mrb[0].mxu0
            %v1427 = vadd.f32 0.0, %v1426
            %v1428 = vpop.f32.mrb[0].mxu0
            %v1429 = vpop.f32.mrb[0].mxu0
            %v1430 = vadd.f32 0.0, %v1429
            %v1431 = vpop.f32.mrb[0].mxu0
            %1432 = vmatprep.mubr.bf16.mxu0 0
            %1433 = vmatmul.mubr.bf16.gmra.mrb[0].mxu0 %v1323
            %v1434 = vpop.f32.mrb[0].mxu0
            %v1435 = vadd.f32 0.0, %v1434
            %v1436 = vpop.f32.mrb[0].mxu0
            %v1437 = vpop.f32.mrb[0].mxu0
            %v1438 = vadd.f32 0.0, %v1437
            %v1439 = vpop.f32.mrb[0].mxu0
            %1440 = vdwg.mxu0
            %v1441 = vld [vmem:[#allocation2] sm:$0xff]
            %v1442 = vld [vmem:[#allocation2 + $0x8] sm:$0xff]
            %v1443 = vld [vmem:[#allocation2 + $0x10] sm:$0xff]
            %v1444 = vld [vmem:[#allocation2 + $0x18] sm:$0xff]
            %v1445 = vld [vmem:[#allocation2 + $0x20] sm:$0xff]
            %v1446 = vld [vmem:[#allocation2 + $0x28] sm:$0xff]
            %v1447 = vld [vmem:[#allocation2 + $0x30] sm:$0xff]
            %v1448 = vld [vmem:[#allocation2 + $0x38] sm:$0xff]
            %v1449 = vadd.f32 %v1441, %v1411
            %v1450 = vadd.f32 %v1442, %v1414
            %v1451 = vadd.f32 %v1443, %v1419
            %v1452 = vadd.f32 %v1444, %v1422
            %v1453 = vadd.f32 %v1445, %v1427
            %v1454 = vadd.f32 %v1446, %v1430
            %v1455 = vadd.f32 %v1447, %v1435
            %v1456 = vadd.f32 %v1448, %v1438
            %1457 = vst [vmem:[#allocation2] sm:$0xff] %v1449
            %1458 = vst [vmem:[#allocation2 + $0x8] sm:$0xff] %v1450
            %1459 = vst [vmem:[#allocation2 + $0x10] sm:$0xff] %v1451
            %1460 = vst [vmem:[#allocation2 + $0x18] sm:$0xff] %v1452
            %1461 = vst [vmem:[#allocation2 + $0x20] sm:$0xff] %v1453
            %1462 = vst [vmem:[#allocation2 + $0x28] sm:$0xff] %v1454
            %1463 = vst [vmem:[#allocation2 + $0x30] sm:$0xff] %v1455
            %1464 = vst [vmem:[#allocation2 + $0x38] sm:$0xff] %v1456
            %v1465 = vld [vmem:[%s1000] sm:$0xe]
            %v1466 = vld [vmem:[%s1000 + $0x4] sm:$0xf]
            %v1467 = vld [vmem:[%s1000 + $0x8] sm:$0x1]
            %v1468 = vld [vmem:[%s1000 + $0xc] sm:$0xe]
            %v1469 = vld [vmem:[%s1000 + $0x10] sm:$0xf]
            %v1470 = vld [vmem:[%s1000 + $0x14] sm:$0x1]
            %v1471 = vld [vmem:[%s1000 + $0x18] sm:$0xe]
            %v1472 = vld [vmem:[%s1000 + $0x1c] sm:$0xf]
            %v1473 = vld [vmem:[%s1000 + $0x20] sm:$0x1]
            %v1474 = vld [vmem:[%s1000 + $0x24] sm:$0xe]
            %v1475 = vld [vmem:[%s1000 + $0x28] sm:$0xf]
            %v1476 = vld [vmem:[%s1000 + $0x2c] sm:$0x1]
            %v1489 = vrot.slane %v1465, 5
            %v1490 = vrot.slane %v1489, 4
            %v1491 = vrot.slane %v1466, 5
            %v1492 = vsel %vm798, %v1490, %v1491
            %v1493 = vrot.slane %v1491, 4
            %v1494 = vrot.slane %v1467, 5
            %v1495 = vsel %vm798, %v1493, %v1494
            %v1496 = vrot.slane %v1468, 5
            %v1497 = vrot.slane %v1496, 4
            %v1498 = vrot.slane %v1469, 5
            %v1499 = vsel %vm798, %v1497, %v1498
            %v1500 = vrot.slane %v1498, 4
            %v1501 = vrot.slane %v1470, 5
            %v1502 = vsel %vm798, %v1500, %v1501
            %v1503 = vrot.slane %v1471, 5
            %v1504 = vrot.slane %v1503, 4
            %v1505 = vrot.slane %v1472, 5
            %v1506 = vsel %vm798, %v1504, %v1505
            %v1507 = vrot.slane %v1505, 4
            %v1508 = vrot.slane %v1473, 5
            %v1509 = vsel %vm798, %v1507, %v1508
            %v1510 = vrot.slane %v1474, 5
            %v1511 = vrot.slane %v1510, 4
            %v1512 = vrot.slane %v1475, 5
            %v1513 = vsel %vm798, %v1511, %v1512
            %v1514 = vrot.slane %v1512, 4
            %v1515 = vrot.slane %v1476, 5
            %v1516 = vsel %vm798, %v1514, %v1515
            %s1517 = scalar_lea.vmem %s1, 320
            %v1518 = vld [vmem:[%s1517] sm:$0xf]
            %v1519 = vld [vmem:[%s1517 + $0x4] sm:$0xf]
            %v1520 = vld [vmem:[%s1517 + $0x8] sm:$0xf]
            %v1521 = vld [vmem:[%s1517 + $0xc] sm:$0xf]
            %v1522 = vld [vmem:[%s1517 + $0x10] sm:$0xf]
            %v1523 = vld [vmem:[%s1517 + $0x14] sm:$0xf]
            %v1524 = vld [vmem:[%s1517 + $0x18] sm:$0xf]
            %v1525 = vld [vmem:[%s1517 + $0x1c] sm:$0xf]
            %v1526 = vld [vmem:[%s1517 + $0x20] sm:$0xf]
            %v1527 = vld [vmem:[%s1517 + $0x24] sm:$0xf]
            %v1528 = vld [vmem:[%s1517 + $0x28] sm:$0xf]
            %v1529 = vld [vmem:[%s1517 + $0x2c] sm:$0xf]
            %v1530 = vld [vmem:[%s1517 + $0x30] sm:$0xf]
            %v1531 = vld [vmem:[%s1517 + $0x34] sm:$0xf]
            %v1532 = vld [vmem:[%s1517 + $0x38] sm:$0xf]
            %v1533 = vld [vmem:[%s1517 + $0x3c] sm:$0xf]
            %v1534 = vunpack.c.l.b16 %v1492
            %v1535 = vunpack.c.l.b16 %v1495
            %v1536 = vunpack.c.l.b16 %v1499
            %v1537 = vunpack.c.l.b16 %v1502
            %v1538 = vunpack.c.l.b16 %v1506
            %v1539 = vunpack.c.l.b16 %v1509
            %v1540 = vunpack.c.l.b16 %v1513
            %v1541 = vunpack.c.l.b16 %v1516
            %v1542 = vpack.c.b16 %v1535, %v1534
            %v1543 = vpack.c.b16 %v1537, %v1536
            %v1544 = vpack.c.b16 %v1539, %v1538
            %v1545 = vpack.c.b16 %v1541, %v1540
            %v1566 = vunpack.c.l.b16 %v1518
            %v1567 = vunpack.c.l.b16 %v1519
            %v1568 = vunpack.c.l.b16 %v1520
            %v1569 = vunpack.c.l.b16 %v1521
            %v1570 = vunpack.c.l.b16 %v1522
            %v1571 = vunpack.c.l.b16 %v1523
            %v1572 = vunpack.c.l.b16 %v1524
            %v1573 = vunpack.c.l.b16 %v1525
            %v1574 = vunpack.c.l.b16 %v1526
            %v1575 = vunpack.c.l.b16 %v1527
            %v1576 = vunpack.c.l.b16 %v1528
            %v1577 = vunpack.c.l.b16 %v1529
            %v1578 = vunpack.c.l.b16 %v1530
            %v1579 = vunpack.c.l.b16 %v1531
            %v1580 = vunpack.c.l.b16 %v1532
            %v1581 = vunpack.c.l.b16 %v1533
            %v1582 = vpack.c.b16 %v1567, %v1566
            %v1583 = vpack.c.b16 %v1569, %v1568
            %v1584 = vpack.c.b16 %v1571, %v1570
            %v1585 = vpack.c.b16 %v1573, %v1572
            %v1586 = vpack.c.b16 %v1575, %v1574
            %v1587 = vpack.c.b16 %v1577, %v1576
            %v1588 = vpack.c.b16 %v1579, %v1578
            %v1589 = vpack.c.b16 %v1581, %v1580
            %1598 = vmatprep.subr.bf16.mxu0 0
            %1599 = vmatpush1.bf16.msra.mxu0 %v1582
            %1600 = vmatprep.subr.bf16.mxu0 0
            %1601 = vmatpush1.bf16.msra.mxu0 %v1583
            %1602 = vmatprep.subr.bf16.mxu0 0
            %1603 = vmatpush1.bf16.msra.mxu0 %v1584
            %1604 = vmatprep.subr.bf16.mxu0 0
            %1605 = vmatpush1.bf16.msra.mxu0 %v1585
            %1606 = vmatprep.subr.bf16.mxu0 0
            %1607 = vmatpush1.bf16.msra.mxu0 %v1586
            %1608 = vmatprep.subr.bf16.mxu0 0
            %1609 = vmatpush1.bf16.msra.mxu0 %v1587
            %1610 = vmatprep.subr.bf16.mxu0 0
            %1611 = vmatpush1.bf16.msra.mxu0 %v1588
            %1612 = vmatprep.subr.bf16.mxu0 0
            %1613 = vmatpush1.bf16.msra.mxu0 %v1589
            %1614 = vmatprep.subr.bf16.mxu0 0
            %1615 = vmatpush1.bf16.msra.mxu0 0
            %1616 = vmatprep.subr.bf16.mxu0 0
            %1617 = vmatpush1.bf16.msra.mxu0 0
            %1618 = vmatprep.subr.bf16.mxu0 0
            %1619 = vmatpush1.bf16.msra.mxu0 0
            %1620 = vmatprep.subr.bf16.mxu0 0
            %1621 = vmatpush1.bf16.msra.mxu0 0
            %1622 = vmatprep.subr.bf16.mxu0 0
            %1623 = vmatpush1.bf16.msra.mxu0 0
            %1624 = vmatprep.subr.bf16.mxu0 0
            %1625 = vmatpush1.bf16.msra.mxu0 0
            %1626 = vmatprep.subr.bf16.mxu0 0
            %1627 = vmatpush1.bf16.msra.mxu0 0
            %1628 = vmatprep.subr.bf16.mxu0 0
            %1629 = vmatpush1.bf16.msra.mxu0 0
            %1630 = vmatprep.mubr.bf16.mxu0 0
            %1631 = vmatmul.mubr.bf16.gmra.mrb[0].mxu0 %v1542
            %v1632 = vpop.f32.mrb[0].mxu0
            %v1633 = vadd.f32 0.0, %v1632
            %v1634 = vpop.f32.mrb[0].mxu0
            %v1635 = vpop.f32.mrb[0].mxu0
            %v1636 = vadd.f32 0.0, %v1635
            %v1637 = vpop.f32.mrb[0].mxu0
            %1638 = vmatprep.mubr.bf16.mxu0 0
            %1639 = vmatmul.mubr.bf16.gmra.mrb[0].mxu0 %v1543
            %v1640 = vpop.f32.mrb[0].mxu0
            %v1641 = vadd.f32 0.0, %v1640
            %v1642 = vpop.f32.mrb[0].mxu0
            %v1643 = vpop.f32.mrb[0].mxu0
            %v1644 = vadd.f32 0.0, %v1643
            %v1645 = vpop.f32.mrb[0].mxu0
            %1646 = vmatprep.mubr.bf16.mxu0 0
            %1647 = vmatmul.mubr.bf16.gmra.mrb[0].mxu0 %v1544
            %v1648 = vpop.f32.mrb[0].mxu0
            %v1649 = vadd.f32 0.0, %v1648
            %v1650 = vpop.f32.mrb[0].mxu0
            %v1651 = vpop.f32.mrb[0].mxu0
            %v1652 = vadd.f32 0.0, %v1651
            %v1653 = vpop.f32.mrb[0].mxu0
            %1654 = vmatprep.mubr.bf16.mxu0 0
            %1655 = vmatmul.mubr.bf16.gmra.mrb[0].mxu0 %v1545
            %v1656 = vpop.f32.mrb[0].mxu0
            %v1657 = vadd.f32 0.0, %v1656
            %v1658 = vpop.f32.mrb[0].mxu0
            %v1659 = vpop.f32.mrb[0].mxu0
            %v1660 = vadd.f32 0.0, %v1659
            %v1661 = vpop.f32.mrb[0].mxu0
            %1662 = vdwg.mxu0
            %v1663 = vld [vmem:[#allocation2] sm:$0xff]
            %v1664 = vld [vmem:[#allocation2 + $0x8] sm:$0xff]
            %v1665 = vld [vmem:[#allocation2 + $0x10] sm:$0xff]
            %v1666 = vld [vmem:[#allocation2 + $0x18] sm:$0xff]
            %v1667 = vld [vmem:[#allocation2 + $0x20] sm:$0xff]
            %v1668 = vld [vmem:[#allocation2 + $0x28] sm:$0xff]
            %v1669 = vld [vmem:[#allocation2 + $0x30] sm:$0xff]
            %v1670 = vld [vmem:[#allocation2 + $0x38] sm:$0xff]
            %v1671 = vadd.f32 %v1663, %v1633
            %v1672 = vadd.f32 %v1664, %v1636
            %v1673 = vadd.f32 %v1665, %v1641
            %v1674 = vadd.f32 %v1666, %v1644
            %v1675 = vadd.f32 %v1667, %v1649
            %v1676 = vadd.f32 %v1668, %v1652
            %v1677 = vadd.f32 %v1669, %v1657
            %v1678 = vadd.f32 %v1670, %v1660
            %1679 = vst [vmem:[#allocation2] sm:$0xff] %v1671
            %1680 = vst [vmem:[#allocation2 + $0x8] sm:$0xff] %v1672
            %1681 = vst [vmem:[#allocation2 + $0x10] sm:$0xff] %v1673
            %1682 = vst [vmem:[#allocation2 + $0x18] sm:$0xff] %v1674
            %1683 = vst [vmem:[#allocation2 + $0x20] sm:$0xff] %v1675
            %1684 = vst [vmem:[#allocation2 + $0x28] sm:$0xff] %v1676
            %1685 = vst [vmem:[#allocation2 + $0x30] sm:$0xff] %v1677
            %1686 = vst [vmem:[#allocation2 + $0x38] sm:$0xff] %v1678
            %s1687 = sadd.s32 %s318, 2
            %s1688 = smul.u32 %s1687, 3
            %s1689 = smul.addr %s1688, 4
            %s1690 = scalar_lea.vmem %s251, %s1689
            %v1691 = vld [vmem:[%s1690] sm:$0xf]
            %v1692 = vld [vmem:[%s1690 + $0x4] sm:$0xf]
            %v1693 = vld [vmem:[%s1690 + $0xc] sm:$0xf]
            %v1694 = vld [vmem:[%s1690 + $0x10] sm:$0xf]
            %v1695 = vld [vmem:[%s1690 + $0x18] sm:$0xf]
            %v1696 = vld [vmem:[%s1690 + $0x1c] sm:$0xf]
            %v1697 = vld [vmem:[%s1690 + $0x24] sm:$0xf]
            %v1698 = vld [vmem:[%s1690 + $0x28] sm:$0xf]
            %s1699 = scalar_lea.vmem %s1, 384
            %v1700 = vld [vmem:[%s1699] sm:$0xf]
            %v1701 = vld [vmem:[%s1699 + $0x4] sm:$0xf]
            %v1702 = vld [vmem:[%s1699 + $0x8] sm:$0xf]
            %v1703 = vld [vmem:[%s1699 + $0xc] sm:$0xf]
            %v1704 = vld [vmem:[%s1699 + $0x10] sm:$0xf]
            %v1705 = vld [vmem:[%s1699 + $0x14] sm:$0xf]
            %v1706 = vld [vmem:[%s1699 + $0x18] sm:$0xf]
            %v1707 = vld [vmem:[%s1699 + $0x1c] sm:$0xf]
            %v1708 = vld [vmem:[%s1699 + $0x20] sm:$0xf]
            %v1709 = vld [vmem:[%s1699 + $0x24] sm:$0xf]
            %v1710 = vld [vmem:[%s1699 + $0x28] sm:$0xf]
            %v1711 = vld [vmem:[%s1699 + $0x2c] sm:$0xf]
            %v1712 = vld [vmem:[%s1699 + $0x30] sm:$0xf]
            %v1713 = vld [vmem:[%s1699 + $0x34] sm:$0xf]
            %v1714 = vld [vmem:[%s1699 + $0x38] sm:$0xf]
            %v1715 = vld [vmem:[%s1699 + $0x3c] sm:$0xf]
            %v1724 = vunpack.c.l.b16 %v1691
            %v1725 = vunpack.c.l.b16 %v1692
            %v1726 = vunpack.c.l.b16 %v1693
            %v1727 = vunpack.c.l.b16 %v1694
            %v1728 = vunpack.c.l.b16 %v1695
            %v1729 = vunpack.c.l.b16 %v1696
            %v1730 = vunpack.c.l.b16 %v1697
            %v1731 = vunpack.c.l.b16 %v1698
            %v1732 = vpack.c.b16 %v1725, %v1724
            %v1733 = vpack.c.b16 %v1727, %v1726
            %v1734 = vpack.c.b16 %v1729, %v1728
            %v1735 = vpack.c.b16 %v1731, %v1730
            %v1756 = vunpack.c.l.b16 %v1700
            %v1757 = vunpack.c.l.b16 %v1701
            %v1758 = vunpack.c.l.b16 %v1702
            %v1759 = vunpack.c.l.b16 %v1703
            %v1760 = vunpack.c.l.b16 %v1704
            %v1761 = vunpack.c.l.b16 %v1705
            %v1762 = vunpack.c.l.b16 %v1706
            %v1763 = vunpack.c.l.b16 %v1707
            %v1764 = vunpack.c.l.b16 %v1708
            %v1765 = vunpack.c.l.b16 %v1709
            %v1766 = vunpack.c.l.b16 %v1710
            %v1767 = vunpack.c.l.b16 %v1711
            %v1768 = vunpack.c.l.b16 %v1712
            %v1769 = vunpack.c.l.b16 %v1713
            %v1770 = vunpack.c.l.b16 %v1714
            %v1771 = vunpack.c.l.b16 %v1715
            %v1772 = vpack.c.b16 %v1757, %v1756
            %v1773 = vpack.c.b16 %v1759, %v1758
            %v1774 = vpack.c.b16 %v1761, %v1760
            %v1775 = vpack.c.b16 %v1763, %v1762
            %v1776 = vpack.c.b16 %v1765, %v1764
            %v1777 = vpack.c.b16 %v1767, %v1766
            %v1778 = vpack.c.b16 %v1769, %v1768
            %v1779 = vpack.c.b16 %v1771, %v1770
            %1788 = vmatprep.subr.bf16.mxu0 0
            %1789 = vmatpush1.bf16.msra.mxu0 %v1772
            %1790 = vmatprep.subr.bf16.mxu0 0
            %1791 = vmatpush1.bf16.msra.mxu0 %v1773
            %1792 = vmatprep.subr.bf16.mxu0 0
            %1793 = vmatpush1.bf16.msra.mxu0 %v1774
            %1794 = vmatprep.subr.bf16.mxu0 0
            %1795 = vmatpush1.bf16.msra.mxu0 %v1775
            %1796 = vmatprep.subr.bf16.mxu0 0
            %1797 = vmatpush1.bf16.msra.mxu0 %v1776
            %1798 = vmatprep.subr.bf16.mxu0 0
            %1799 = vmatpush1.bf16.msra.mxu0 %v1777
            %1800 = vmatprep.subr.bf16.mxu0 0
            %1801 = vmatpush1.bf16.msra.mxu0 %v1778
            %1802 = vmatprep.subr.bf16.mxu0 0
            %1803 = vmatpush1.bf16.msra.mxu0 %v1779
            %1804 = vmatprep.subr.bf16.mxu0 0
            %1805 = vmatpush1.bf16.msra.mxu0 0
            %1806 = vmatprep.subr.bf16.mxu0 0
            %1807 = vmatpush1.bf16.msra.mxu0 0
            %1808 = vmatprep.subr.bf16.mxu0 0
            %1809 = vmatpush1.bf16.msra.mxu0 0
            %1810 = vmatprep.subr.bf16.mxu0 0
            %1811 = vmatpush1.bf16.msra.mxu0 0
            %1812 = vmatprep.subr.bf16.mxu0 0
            %1813 = vmatpush1.bf16.msra.mxu0 0
            %1814 = vmatprep.subr.bf16.mxu0 0
            %1815 = vmatpush1.bf16.msra.mxu0 0
            %1816 = vmatprep.subr.bf16.mxu0 0
            %1817 = vmatpush1.bf16.msra.mxu0 0
            %1818 = vmatprep.subr.bf16.mxu0 0
            %1819 = vmatpush1.bf16.msra.mxu0 0
            %1820 = vmatprep.mubr.bf16.mxu0 0
            %1821 = vmatmul.mubr.bf16.gmra.mrb[0].mxu0 %v1732
            %v1822 = vpop.f32.mrb[0].mxu0
            %v1823 = vadd.f32 0.0, %v1822
            %v1824 = vpop.f32.mrb[0].mxu0
            %v1825 = vpop.f32.mrb[0].mxu0
            %v1826 = vadd.f32 0.0, %v1825
            %v1827 = vpop.f32.mrb[0].mxu0
            %1828 = vmatprep.mubr.bf16.mxu0 0
            %1829 = vmatmul.mubr.bf16.gmra.mrb[0].mxu0 %v1733
            %v1830 = vpop.f32.mrb[0].mxu0
            %v1831 = vadd.f32 0.0, %v1830
            %v1832 = vpop.f32.mrb[0].mxu0
            %v1833 = vpop.f32.mrb[0].mxu0
            %v1834 = vadd.f32 0.0, %v1833
            %v1835 = vpop.f32.mrb[0].mxu0
            %1836 = vmatprep.mubr.bf16.mxu0 0
            %1837 = vmatmul.mubr.bf16.gmra.mrb[0].mxu0 %v1734
            %v1838 = vpop.f32.mrb[0].mxu0
            %v1839 = vadd.f32 0.0, %v1838
            %v1840 = vpop.f32.mrb[0].mxu0
            %v1841 = vpop.f32.mrb[0].mxu0
            %v1842 = vadd.f32 0.0, %v1841
            %v1843 = vpop.f32.mrb[0].mxu0
            %1844 = vmatprep.mubr.bf16.mxu0 0
            %1845 = vmatmul.mubr.bf16.gmra.mrb[0].mxu0 %v1735
            %v1846 = vpop.f32.mrb[0].mxu0
            %v1847 = vadd.f32 0.0, %v1846
            %v1848 = vpop.f32.mrb[0].mxu0
            %v1849 = vpop.f32.mrb[0].mxu0
            %v1850 = vadd.f32 0.0, %v1849
            %v1851 = vpop.f32.mrb[0].mxu0
            %1852 = vdwg.mxu0
            %v1853 = vld [vmem:[#allocation2] sm:$0xff]
            %v1854 = vld [vmem:[#allocation2 + $0x8] sm:$0xff]
            %v1855 = vld [vmem:[#allocation2 + $0x10] sm:$0xff]
            %v1856 = vld [vmem:[#allocation2 + $0x18] sm:$0xff]
            %v1857 = vld [vmem:[#allocation2 + $0x20] sm:$0xff]
            %v1858 = vld [vmem:[#allocation2 + $0x28] sm:$0xff]
            %v1859 = vld [vmem:[#allocation2 + $0x30] sm:$0xff]
            %v1860 = vld [vmem:[#allocation2 + $0x38] sm:$0xff]
            %v1861 = vadd.f32 %v1853, %v1823
            %v1862 = vadd.f32 %v1854, %v1826
            %v1863 = vadd.f32 %v1855, %v1831
            %v1864 = vadd.f32 %v1856, %v1834
            %v1865 = vadd.f32 %v1857, %v1839
            %v1866 = vadd.f32 %v1858, %v1842
            %v1867 = vadd.f32 %v1859, %v1847
            %v1868 = vadd.f32 %v1860, %v1850
            %1869 = vst [vmem:[#allocation2] sm:$0xff] %v1861
            %1870 = vst [vmem:[#allocation2 + $0x8] sm:$0xff] %v1862
            %1871 = vst [vmem:[#allocation2 + $0x10] sm:$0xff] %v1863
            %1872 = vst [vmem:[#allocation2 + $0x18] sm:$0xff] %v1864
            %1873 = vst [vmem:[#allocation2 + $0x20] sm:$0xff] %v1865
            %1874 = vst [vmem:[#allocation2 + $0x28] sm:$0xff] %v1866
            %1875 = vst [vmem:[#allocation2 + $0x30] sm:$0xff] %v1867
            %1876 = vst [vmem:[#allocation2 + $0x38] sm:$0xff] %v1868
            %v1877 = vld [vmem:[%s1690] sm:$0xf]
            %v1878 = vld [vmem:[%s1690 + $0x4] sm:$0xf]
            %v1879 = vld [vmem:[%s1690 + $0x8] sm:$0x1]
            %v1880 = vld [vmem:[%s1690 + $0xc] sm:$0xf]
            %v1881 = vld [vmem:[%s1690 + $0x10] sm:$0xf]
            %v1882 = vld [vmem:[%s1690 + $0x14] sm:$0x1]
            %v1883 = vld [vmem:[%s1690 + $0x18] sm:$0xf]
            %v1884 = vld [vmem:[%s1690 + $0x1c] sm:$0xf]
            %v1885 = vld [vmem:[%s1690 + $0x20] sm:$0x1]
            %v1886 = vld [vmem:[%s1690 + $0x24] sm:$0xf]
            %v1887 = vld [vmem:[%s1690 + $0x28] sm:$0xf]
            %v1888 = vld [vmem:[%s1690 + $0x2c] sm:$0x1]
            %v1890 = vshrl.u32 %v1877, 16
            %v1892 = vrot.slane %v1890, 4
            %v1893 = vshll.u32 %v1877, 16
            %v1895 = vrot.slane %v1893, 5
            %v1896 = vor.u32 %v1892, %v1895
            %v1897 = vrot.slane %v1896, 4
            %v1899 = vshll.u32 %v1878, 16
            %v1901 = vrot.slane %v1899, 5
            %v1902 = vsel %vm505, %v1897, %v1901
            %v1903 = vshrl.u32 %v1878, 16
            %v1905 = vrot.slane %v1903, 4
            %v1906 = vor.u32 %v1905, %v1901
            %v1907 = vrot.slane %v1906, 4
            %v1909 = vshll.u32 %v1879, 16
            %v1911 = vrot.slane %v1909, 5
            %v1912 = vsel %vm505, %v1907, %v1911
            %v1914 = vshrl.u32 %v1880, 16
            %v1916 = vrot.slane %v1914, 4
            %v1917 = vshll.u32 %v1880, 16
            %v1919 = vrot.slane %v1917, 5
            %v1920 = vor.u32 %v1916, %v1919
            %v1921 = vrot.slane %v1920, 4
            %v1923 = vshll.u32 %v1881, 16
            %v1925 = vrot.slane %v1923, 5
            %v1926 = vsel %vm505, %v1921, %v1925
            %v1927 = vshrl.u32 %v1881, 16
            %v1929 = vrot.slane %v1927, 4
            %v1930 = vor.u32 %v1929, %v1925
            %v1931 = vrot.slane %v1930, 4
            %v1933 = vshll.u32 %v1882, 16
            %v1935 = vrot.slane %v1933, 5
            %v1936 = vsel %vm505, %v1931, %v1935
            %v1938 = vshrl.u32 %v1883, 16
            %v1940 = vrot.slane %v1938, 4
            %v1941 = vshll.u32 %v1883, 16
            %v1943 = vrot.slane %v1941, 5
            %v1944 = vor.u32 %v1940, %v1943
            %v1945 = vrot.slane %v1944, 4
            %v1947 = vshll.u32 %v1884, 16
            %v1949 = vrot.slane %v1947, 5
            %v1950 = vsel %vm505, %v1945, %v1949
            %v1951 = vshrl.u32 %v1884, 16
            %v1953 = vrot.slane %v1951, 4
            %v1954 = vor.u32 %v1953, %v1949
            %v1955 = vrot.slane %v1954, 4
            %v1957 = vshll.u32 %v1885, 16
            %v1959 = vrot.slane %v1957, 5
            %v1960 = vsel %vm505, %v1955, %v1959
            %v1962 = vshrl.u32 %v1886, 16
            %v1964 = vrot.slane %v1962, 4
            %v1965 = vshll.u32 %v1886, 16
            %v1967 = vrot.slane %v1965, 5
            %v1968 = vor.u32 %v1964, %v1967
            %v1969 = vrot.slane %v1968, 4
            %v1971 = vshll.u32 %v1887, 16
            %v1973 = vrot.slane %v1971, 5
            %v1974 = vsel %vm505, %v1969, %v1973
            %v1975 = vshrl.u32 %v1887, 16
            %v1977 = vrot.slane %v1975, 4
            %v1978 = vor.u32 %v1977, %v1973
            %v1979 = vrot.slane %v1978, 4
            %v1981 = vshll.u32 %v1888, 16
            %v1983 = vrot.slane %v1981, 5
            %v1984 = vsel %vm505, %v1979, %v1983
            %s1985 = scalar_lea.vmem %s1, 448
            %v1986 = vld [vmem:[%s1985] sm:$0xf]
            %v1987 = vld [vmem:[%s1985 + $0x4] sm:$0xf]
            %v1988 = vld [vmem:[%s1985 + $0x8] sm:$0xf]
            %v1989 = vld [vmem:[%s1985 + $0xc] sm:$0xf]
            %v1990 = vld [vmem:[%s1985 + $0x10] sm:$0xf]
            %v1991 = vld [vmem:[%s1985 + $0x14] sm:$0xf]
            %v1992 = vld [vmem:[%s1985 + $0x18] sm:$0xf]
            %v1993 = vld [vmem:[%s1985 + $0x1c] sm:$0xf]
            %v1994 = vld [vmem:[%s1985 + $0x20] sm:$0xf]
            %v1995 = vld [vmem:[%s1985 + $0x24] sm:$0xf]
            %v1996 = vld [vmem:[%s1985 + $0x28] sm:$0xf]
            %v1997 = vld [vmem:[%s1985 + $0x2c] sm:$0xf]
            %v1998 = vld [vmem:[%s1985 + $0x30] sm:$0xf]
            %v1999 = vld [vmem:[%s1985 + $0x34] sm:$0xf]
            %v2000 = vld [vmem:[%s1985 + $0x38] sm:$0xf]
            %v2001 = vld [vmem:[%s1985 + $0x3c] sm:$0xf]
            %v2002 = vunpack.c.l.b16 %v1902
            %v2003 = vunpack.c.l.b16 %v1912
            %v2004 = vunpack.c.l.b16 %v1926
            %v2005 = vunpack.c.l.b16 %v1936
            %v2006 = vunpack.c.l.b16 %v1950
            %v2007 = vunpack.c.l.b16 %v1960
            %v2008 = vunpack.c.l.b16 %v1974
            %v2009 = vunpack.c.l.b16 %v1984
            %v2010 = vpack.c.b16 %v2003, %v2002
            %v2011 = vpack.c.b16 %v2005, %v2004
            %v2012 = vpack.c.b16 %v2007, %v2006
            %v2013 = vpack.c.b16 %v2009, %v2008
            %v2034 = vunpack.c.l.b16 %v1986
            %v2035 = vunpack.c.l.b16 %v1987
            %v2036 = vunpack.c.l.b16 %v1988
            %v2037 = vunpack.c.l.b16 %v1989
            %v2038 = vunpack.c.l.b16 %v1990
            %v2039 = vunpack.c.l.b16 %v1991
            %v2040 = vunpack.c.l.b16 %v1992
            %v2041 = vunpack.c.l.b16 %v1993
            %v2042 = vunpack.c.l.b16 %v1994
            %v2043 = vunpack.c.l.b16 %v1995
            %v2044 = vunpack.c.l.b16 %v1996
            %v2045 = vunpack.c.l.b16 %v1997
            %v2046 = vunpack.c.l.b16 %v1998
            %v2047 = vunpack.c.l.b16 %v1999
            %v2048 = vunpack.c.l.b16 %v2000
            %v2049 = vunpack.c.l.b16 %v2001
            %v2050 = vpack.c.b16 %v2035, %v2034
            %v2051 = vpack.c.b16 %v2037, %v2036
            %v2052 = vpack.c.b16 %v2039, %v2038
            %v2053 = vpack.c.b16 %v2041, %v2040
            %v2054 = vpack.c.b16 %v2043, %v2042
            %v2055 = vpack.c.b16 %v2045, %v2044
            %v2056 = vpack.c.b16 %v2047, %v2046
            %v2057 = vpack.c.b16 %v2049, %v2048
            %2066 = vmatprep.subr.bf16.mxu0 0
            %2067 = vmatpush1.bf16.msra.mxu0 %v2050
            %2068 = vmatprep.subr.bf16.mxu0 0
            %2069 = vmatpush1.bf16.msra.mxu0 %v2051
            %2070 = vmatprep.subr.bf16.mxu0 0
            %2071 = vmatpush1.bf16.msra.mxu0 %v2052
            %2072 = vmatprep.subr.bf16.mxu0 0
            %2073 = vmatpush1.bf16.msra.mxu0 %v2053
            %2074 = vmatprep.subr.bf16.mxu0 0
            %2075 = vmatpush1.bf16.msra.mxu0 %v2054
            %2076 = vmatprep.subr.bf16.mxu0 0
            %2077 = vmatpush1.bf16.msra.mxu0 %v2055
            %2078 = vmatprep.subr.bf16.mxu0 0
            %2079 = vmatpush1.bf16.msra.mxu0 %v2056
            %2080 = vmatprep.subr.bf16.mxu0 0
            %2081 = vmatpush1.bf16.msra.mxu0 %v2057
            %2082 = vmatprep.subr.bf16.mxu0 0
            %2083 = vmatpush1.bf16.msra.mxu0 0
            %2084 = vmatprep.subr.bf16.mxu0 0
            %2085 = vmatpush1.bf16.msra.mxu0 0
            %2086 = vmatprep.subr.bf16.mxu0 0
            %2087 = vmatpush1.bf16.msra.mxu0 0
            %2088 = vmatprep.subr.bf16.mxu0 0
            %2089 = vmatpush1.bf16.msra.mxu0 0
            %2090 = vmatprep.subr.bf16.mxu0 0
            %2091 = vmatpush1.bf16.msra.mxu0 0
            %2092 = vmatprep.subr.bf16.mxu0 0
            %2093 = vmatpush1.bf16.msra.mxu0 0
            %2094 = vmatprep.subr.bf16.mxu0 0
            %2095 = vmatpush1.bf16.msra.mxu0 0
            %2096 = vmatprep.subr.bf16.mxu0 0
            %2097 = vmatpush1.bf16.msra.mxu0 0
            %2098 = vmatprep.mubr.bf16.mxu0 0
            %2099 = vmatmul.mubr.bf16.gmra.mrb[0].mxu0 %v2010
            %v2100 = vpop.f32.mrb[0].mxu0
            %v2101 = vadd.f32 0.0, %v2100
            %v2102 = vpop.f32.mrb[0].mxu0
            %v2103 = vpop.f32.mrb[0].mxu0
            %v2104 = vadd.f32 0.0, %v2103
            %v2105 = vpop.f32.mrb[0].mxu0
            %2106 = vmatprep.mubr.bf16.mxu0 0
            %2107 = vmatmul.mubr.bf16.gmra.mrb[0].mxu0 %v2011
            %v2108 = vpop.f32.mrb[0].mxu0
            %v2109 = vadd.f32 0.0, %v2108
            %v2110 = vpop.f32.mrb[0].mxu0
            %v2111 = vpop.f32.mrb[0].mxu0
            %v2112 = vadd.f32 0.0, %v2111
            %v2113 = vpop.f32.mrb[0].mxu0
            %2114 = vmatprep.mubr.bf16.mxu0 0
            %2115 = vmatmul.mubr.bf16.gmra.mrb[0].mxu0 %v2012
            %v2116 = vpop.f32.mrb[0].mxu0
            %v2117 = vadd.f32 0.0, %v2116
            %v2118 = vpop.f32.mrb[0].mxu0
            %v2119 = vpop.f32.mrb[0].mxu0
            %v2120 = vadd.f32 0.0, %v2119
            %v2121 = vpop.f32.mrb[0].mxu0
            %2122 = vmatprep.mubr.bf16.mxu0 0
            %2123 = vmatmul.mubr.bf16.gmra.mrb[0].mxu0 %v2013
            %v2124 = vpop.f32.mrb[0].mxu0
            %v2125 = vadd.f32 0.0, %v2124
            %v2126 = vpop.f32.mrb[0].mxu0
            %v2127 = vpop.f32.mrb[0].mxu0
            %v2128 = vadd.f32 0.0, %v2127
            %v2129 = vpop.f32.mrb[0].mxu0
            %2130 = vdwg.mxu0
            %v2131 = vld [vmem:[#allocation2] sm:$0xff]
            %v2132 = vld [vmem:[#allocation2 + $0x8] sm:$0xff]
            %v2133 = vld [vmem:[#allocation2 + $0x10] sm:$0xff]
            %v2134 = vld [vmem:[#allocation2 + $0x18] sm:$0xff]
            %v2135 = vld [vmem:[#allocation2 + $0x20] sm:$0xff]
            %v2136 = vld [vmem:[#allocation2 + $0x28] sm:$0xff]
            %v2137 = vld [vmem:[#allocation2 + $0x30] sm:$0xff]
            %v2138 = vld [vmem:[#allocation2 + $0x38] sm:$0xff]
            %v2139 = vadd.f32 %v2131, %v2101
            %v2140 = vadd.f32 %v2132, %v2104
            %v2141 = vadd.f32 %v2133, %v2109
            %v2142 = vadd.f32 %v2134, %v2112
            %v2143 = vadd.f32 %v2135, %v2117
            %v2144 = vadd.f32 %v2136, %v2120
            %v2145 = vadd.f32 %v2137, %v2125
            %v2146 = vadd.f32 %v2138, %v2128
            %2147 = vst [vmem:[#allocation2] sm:$0xff] %v2139
            %2148 = vst [vmem:[#allocation2 + $0x8] sm:$0xff] %v2140
            %2149 = vst [vmem:[#allocation2 + $0x10] sm:$0xff] %v2141
            %2150 = vst [vmem:[#allocation2 + $0x18] sm:$0xff] %v2142
            %2151 = vst [vmem:[#allocation2 + $0x20] sm:$0xff] %v2143
            %2152 = vst [vmem:[#allocation2 + $0x28] sm:$0xff] %v2144
            %2153 = vst [vmem:[#allocation2 + $0x30] sm:$0xff] %v2145
            %2154 = vst [vmem:[#allocation2 + $0x38] sm:$0xff] %v2146
            %v2155 = vld [vmem:[%s1690] sm:$0xe]
            %v2156 = vld [vmem:[%s1690 + $0x4] sm:$0xf]
            %v2157 = vld [vmem:[%s1690 + $0x8] sm:$0x1]
            %v2158 = vld [vmem:[%s1690 + $0xc] sm:$0xe]
            %v2159 = vld [vmem:[%s1690 + $0x10] sm:$0xf]
            %v2160 = vld [vmem:[%s1690 + $0x14] sm:$0x1]
            %v2161 = vld [vmem:[%s1690 + $0x18] sm:$0xe]
            %v2162 = vld [vmem:[%s1690 + $0x1c] sm:$0xf]
            %v2163 = vld [vmem:[%s1690 + $0x20] sm:$0x1]
            %v2164 = vld [vmem:[%s1690 + $0x24] sm:$0xe]
            %v2165 = vld [vmem:[%s1690 + $0x28] sm:$0xf]
            %v2166 = vld [vmem:[%s1690 + $0x2c] sm:$0x1]
            %v2179 = vrot.slane %v2155, 5
            %v2180 = vrot.slane %v2179, 4
            %v2181 = vrot.slane %v2156, 5
            %v2182 = vsel %vm798, %v2180, %v2181
            %v2183 = vrot.slane %v2181, 4
            %v2184 = vrot.slane %v2157, 5
            %v2185 = vsel %vm798, %v2183, %v2184
            %v2186 = vrot.slane %v2158, 5
            %v2187 = vrot.slane %v2186, 4
            %v2188 = vrot.slane %v2159, 5
            %v2189 = vsel %vm798, %v2187, %v2188
            %v2190 = vrot.slane %v2188, 4
            %v2191 = vrot.slane %v2160, 5
            %v2192 = vsel %vm798, %v2190, %v2191
            %v2193 = vrot.slane %v2161, 5
            %v2194 = vrot.slane %v2193, 4
            %v2195 = vrot.slane %v2162, 5
            %v2196 = vsel %vm798, %v2194, %v2195
            %v2197 = vrot.slane %v2195, 4
            %v2198 = vrot.slane %v2163, 5
            %v2199 = vsel %vm798, %v2197, %v2198
            %v2200 = vrot.slane %v2164, 5
            %v2201 = vrot.slane %v2200, 4
            %v2202 = vrot.slane %v2165, 5
            %v2203 = vsel %vm798, %v2201, %v2202
            %v2204 = vrot.slane %v2202, 4
            %v2205 = vrot.slane %v2166, 5
            %v2206 = vsel %vm798, %v2204, %v2205
            %s2207 = scalar_lea.vmem %s1, 512
            %v2208 = vld [vmem:[%s2207] sm:$0xf]
            %v2209 = vld [vmem:[%s2207 + $0x4] sm:$0xf]
            %v2210 = vld [vmem:[%s2207 + $0x8] sm:$0xf]
            %v2211 = vld [vmem:[%s2207 + $0xc] sm:$0xf]
            %v2212 = vld [vmem:[%s2207 + $0x10] sm:$0xf]
            %v2213 = vld [vmem:[%s2207 + $0x14] sm:$0xf]
            %v2214 = vld [vmem:[%s2207 + $0x18] sm:$0xf]
            %v2215 = vld [vmem:[%s2207 + $0x1c] sm:$0xf]
            %v2216 = vld [vmem:[%s2207 + $0x20] sm:$0xf]
            %v2217 = vld [vmem:[%s2207 + $0x24] sm:$0xf]
            %v2218 = vld [vmem:[%s2207 + $0x28] sm:$0xf]
            %v2219 = vld [vmem:[%s2207 + $0x2c] sm:$0xf]
            %v2220 = vld [vmem:[%s2207 + $0x30] sm:$0xf]
            %v2221 = vld [vmem:[%s2207 + $0x34] sm:$0xf]
            %v2222 = vld [vmem:[%s2207 + $0x38] sm:$0xf]
            %v2223 = vld [vmem:[%s2207 + $0x3c] sm:$0xf]
            %v2224 = vunpack.c.l.b16 %v2182
            %v2225 = vunpack.c.l.b16 %v2185
            %v2226 = vunpack.c.l.b16 %v2189
            %v2227 = vunpack.c.l.b16 %v2192
            %v2228 = vunpack.c.l.b16 %v2196
            %v2229 = vunpack.c.l.b16 %v2199
            %v2230 = vunpack.c.l.b16 %v2203
            %v2231 = vunpack.c.l.b16 %v2206
            %v2232 = vpack.c.b16 %v2225, %v2224
            %v2233 = vpack.c.b16 %v2227, %v2226
            %v2234 = vpack.c.b16 %v2229, %v2228
            %v2235 = vpack.c.b16 %v2231, %v2230
            %v2256 = vunpack.c.l.b16 %v2208
            %v2257 = vunpack.c.l.b16 %v2209
            %v2258 = vunpack.c.l.b16 %v2210
            %v2259 = vunpack.c.l.b16 %v2211
            %v2260 = vunpack.c.l.b16 %v2212
            %v2261 = vunpack.c.l.b16 %v2213
            %v2262 = vunpack.c.l.b16 %v2214
            %v2263 = vunpack.c.l.b16 %v2215
            %v2264 = vunpack.c.l.b16 %v2216
            %v2265 = vunpack.c.l.b16 %v2217
            %v2266 = vunpack.c.l.b16 %v2218
            %v2267 = vunpack.c.l.b16 %v2219
            %v2268 = vunpack.c.l.b16 %v2220
            %v2269 = vunpack.c.l.b16 %v2221
            %v2270 = vunpack.c.l.b16 %v2222
            %v2271 = vunpack.c.l.b16 %v2223
            %v2272 = vpack.c.b16 %v2257, %v2256
            %v2273 = vpack.c.b16 %v2259, %v2258
            %v2274 = vpack.c.b16 %v2261, %v2260
            %v2275 = vpack.c.b16 %v2263, %v2262
            %v2276 = vpack.c.b16 %v2265, %v2264
            %v2277 = vpack.c.b16 %v2267, %v2266
            %v2278 = vpack.c.b16 %v2269, %v2268
            %v2279 = vpack.c.b16 %v2271, %v2270
            %2288 = vmatprep.subr.bf16.mxu0 0
            %2289 = vmatpush1.bf16.msra.mxu0 %v2272
            %2290 = vmatprep.subr.bf16.mxu0 0
            %2291 = vmatpush1.bf16.msra.mxu0 %v2273
            %2292 = vmatprep.subr.bf16.mxu0 0
            %2293 = vmatpush1.bf16.msra.mxu0 %v2274
            %2294 = vmatprep.subr.bf16.mxu0 0
            %2295 = vmatpush1.bf16.msra.mxu0 %v2275
            %2296 = vmatprep.subr.bf16.mxu0 0
            %2297 = vmatpush1.bf16.msra.mxu0 %v2276
            %2298 = vmatprep.subr.bf16.mxu0 0
            %2299 = vmatpush1.bf16.msra.mxu0 %v2277
            %2300 = vmatprep.subr.bf16.mxu0 0
            %2301 = vmatpush1.bf16.msra.mxu0 %v2278
            %2302 = vmatprep.subr.bf16.mxu0 0
            %2303 = vmatpush1.bf16.msra.mxu0 %v2279
            %2304 = vmatprep.subr.bf16.mxu0 0
            %2305 = vmatpush1.bf16.msra.mxu0 0
            %2306 = vmatprep.subr.bf16.mxu0 0
            %2307 = vmatpush1.bf16.msra.mxu0 0
            %2308 = vmatprep.subr.bf16.mxu0 0
            %2309 = vmatpush1.bf16.msra.mxu0 0
            %2310 = vmatprep.subr.bf16.mxu0 0
            %2311 = vmatpush1.bf16.msra.mxu0 0
            %2312 = vmatprep.subr.bf16.mxu0 0
            %2313 = vmatpush1.bf16.msra.mxu0 0
            %2314 = vmatprep.subr.bf16.mxu0 0
            %2315 = vmatpush1.bf16.msra.mxu0 0
            %2316 = vmatprep.subr.bf16.mxu0 0
            %2317 = vmatpush1.bf16.msra.mxu0 0
            %2318 = vmatprep.subr.bf16.mxu0 0
            %2319 = vmatpush1.bf16.msra.mxu0 0
            %2320 = vmatprep.mubr.bf16.mxu0 0
            %2321 = vmatmul.mubr.bf16.gmra.mrb[0].mxu0 %v2232
            %v2322 = vpop.f32.mrb[0].mxu0
            %v2323 = vadd.f32 0.0, %v2322
            %v2324 = vpop.f32.mrb[0].mxu0
            %v2325 = vpop.f32.mrb[0].mxu0
            %v2326 = vadd.f32 0.0, %v2325
            %v2327 = vpop.f32.mrb[0].mxu0
            %2328 = vmatprep.mubr.bf16.mxu0 0
            %2329 = vmatmul.mubr.bf16.gmra.mrb[0].mxu0 %v2233
            %v2330 = vpop.f32.mrb[0].mxu0
            %v2331 = vadd.f32 0.0, %v2330
            %v2332 = vpop.f32.mrb[0].mxu0
            %v2333 = vpop.f32.mrb[0].mxu0
            %v2334 = vadd.f32 0.0, %v2333
            %v2335 = vpop.f32.mrb[0].mxu0
            %2336 = vmatprep.mubr.bf16.mxu0 0
            %2337 = vmatmul.mubr.bf16.gmra.mrb[0].mxu0 %v2234
            %v2338 = vpop.f32.mrb[0].mxu0
            %v2339 = vadd.f32 0.0, %v2338
            %v2340 = vpop.f32.mrb[0].mxu0
            %v2341 = vpop.f32.mrb[0].mxu0
            %v2342 = vadd.f32 0.0, %v2341
            %v2343 = vpop.f32.mrb[0].mxu0
            %2344 = vmatprep.mubr.bf16.mxu0 0
            %2345 = vmatmul.mubr.bf16.gmra.mrb[0].mxu0 %v2235
            %v2346 = vpop.f32.mrb[0].mxu0
            %v2347 = vadd.f32 0.0, %v2346
            %v2348 = vpop.f32.mrb[0].mxu0
            %v2349 = vpop.f32.mrb[0].mxu0
            %v2350 = vadd.f32 0.0, %v2349
            %v2351 = vpop.f32.mrb[0].mxu0
            %2352 = vdwg.mxu0
            %v2353 = vld [vmem:[#allocation2] sm:$0xff]
            %v2354 = vld [vmem:[#allocation2 + $0x8] sm:$0xff]
            %v2355 = vld [vmem:[#allocation2 + $0x10] sm:$0xff]
            %v2356 = vld [vmem:[#allocation2 + $0x18] sm:$0xff]
            %v2357 = vld [vmem:[#allocation2 + $0x20] sm:$0xff]
            %v2358 = vld [vmem:[#allocation2 + $0x28] sm:$0xff]
            %v2359 = vld [vmem:[#allocation2 + $0x30] sm:$0xff]
            %v2360 = vld [vmem:[#allocation2 + $0x38] sm:$0xff]
            %v2361 = vadd.f32 %v2353, %v2323
            %v2362 = vadd.f32 %v2354, %v2326
            %v2363 = vadd.f32 %v2355, %v2331
            %v2364 = vadd.f32 %v2356, %v2334
            %v2365 = vadd.f32 %v2357, %v2339
            %v2366 = vadd.f32 %v2358, %v2342
            %v2367 = vadd.f32 %v2359, %v2347
            %v2368 = vadd.f32 %v2360, %v2350
            %2369 = vst [vmem:[#allocation2] sm:$0xff] %v2361
            %2370 = vst [vmem:[#allocation2 + $0x8] sm:$0xff] %v2362
            %2371 = vst [vmem:[#allocation2 + $0x10] sm:$0xff] %v2363
            %2372 = vst [vmem:[#allocation2 + $0x18] sm:$0xff] %v2364
            %2373 = vst [vmem:[#allocation2 + $0x20] sm:$0xff] %v2365
            %2374 = vst [vmem:[#allocation2 + $0x28] sm:$0xff] %v2366
            %2375 = vst [vmem:[#allocation2 + $0x30] sm:$0xff] %v2367
            %2376 = vst [vmem:[#allocation2 + $0x38] sm:$0xff] %v2368
            %v2377 = vld [vmem:[#allocation2] sm:$0xff]
            %v2378 = vld [vmem:[#allocation2 + $0x8] sm:$0xff]
            %v2379 = vld [vmem:[#allocation2 + $0x10] sm:$0xff]
            %v2380 = vld [vmem:[#allocation2 + $0x18] sm:$0xff]
            %v2381 = vld [vmem:[#allocation2 + $0x20] sm:$0xff]
            %v2382 = vld [vmem:[#allocation2 + $0x28] sm:$0xff]
            %v2383 = vld [vmem:[#allocation2 + $0x30] sm:$0xff]
            %v2384 = vld [vmem:[#allocation2 + $0x38] sm:$0xff]
            %v2385 = vld [vmem:[%s2] sm:$0x1]
            %v2387 = vlaneseq
            %v2388 = vshrl.u32 %v2387, 7
            %v2389 = vsub.s32 0, %v2388
            %v2390 = vrot.slane %v2385, %v2389
            %v2392 = vadd.f32 %v2377, %v2390
            %v2393 = vadd.f32 %v2378, %v2390
            %v2394 = vadd.f32 %v2379, %v2390
            %v2395 = vadd.f32 %v2380, %v2390
            %v2396 = vadd.f32 %v2381, %v2390
            %v2397 = vadd.f32 %v2382, %v2390
            %v2398 = vadd.f32 %v2383, %v2390
            %v2399 = vadd.f32 %v2384, %v2390
            %v2400 = vmax.f32 %v2392, 0.0
            %v2401 = vmax.f32 %v2393, 0.0
            %v2402 = vmax.f32 %v2394, 0.0
            %v2403 = vmax.f32 %v2395, 0.0
            %v2404 = vmax.f32 %v2396, 0.0
            %v2405 = vmax.f32 %v2397, 0.0
            %v2406 = vmax.f32 %v2398, 0.0
            %v2407 = vmax.f32 %v2399, 0.0
            %v2408 = vpack.c.bf16 %v2401, %v2400
            %v2409 = vpack.c.bf16 %v2403, %v2402
            %v2410 = vpack.c.bf16 %v2405, %v2404
            %v2411 = vpack.c.bf16 %v2407, %v2406
            %v2416 = vunpack.c.l.b16 %v2408
            %v2417 = vunpack.c.h.b16 %v2408
            %v2418 = vunpack.c.l.b16 %v2409
            %v2419 = vunpack.c.h.b16 %v2409
            %v2420 = vunpack.c.l.b16 %v2410
            %v2421 = vunpack.c.h.b16 %v2410
            %v2422 = vunpack.c.l.b16 %v2411
            %v2423 = vunpack.c.h.b16 %v2411
            %v2424 = vpack.c.b16 %v2416, %v2416
            %v2425 = vpack.c.b16 %v2417, %v2417
            %v2426 = vpack.c.b16 %v2418, %v2418
            %v2427 = vpack.c.b16 %v2419, %v2419
            %v2428 = vpack.c.b16 %v2420, %v2420
            %v2429 = vpack.c.b16 %v2421, %v2421
            %v2430 = vpack.c.b16 %v2422, %v2422
            %v2431 = vpack.c.b16 %v2423, %v2423
            %vm2432 = vsmask.f32 256
            %vm2433 = vsmask.f32 4368
            %vm2434 = vmor %vm2432, %vm2433
            %v2436 = vshrl.u32 %v2424, 16
            %v2438 = vrot.slane %v2436, 7
            %v2439 = vshll.u32 %v2424, 16
            %v2441 = vor.u32 %v2438, %v2439
            %v2442 = vrot.slane %v2438, 4
            %v2444 = vshrl.u32 %v2425, 16
            %v2446 = vrot.slane %v2444, 7
            %v2447 = vshll.u32 %v2425, 16
            %v2449 = vor.u32 %v2446, %v2447
            %v2450 = vsel %vm2434, %v2442, %v2449
            %v2451 = vrot.slane %v2446, 4
            %v2453 = vshrl.u32 %v2426, 16
            %v2455 = vrot.slane %v2453, 7
            %v2456 = vshll.u32 %v2426, 16
            %v2458 = vor.u32 %v2455, %v2456
            %v2459 = vrot.slane %v2455, 4
            %v2461 = vshrl.u32 %v2427, 16
            %v2463 = vrot.slane %v2461, 7
            %v2464 = vshll.u32 %v2427, 16
            %v2466 = vor.u32 %v2463, %v2464
            %v2467 = vsel %vm2434, %v2459, %v2466
            %v2468 = vrot.slane %v2463, 4
            %v2470 = vshrl.u32 %v2428, 16
            %v2472 = vrot.slane %v2470, 7
            %v2473 = vshll.u32 %v2428, 16
            %v2475 = vor.u32 %v2472, %v2473
            %v2476 = vrot.slane %v2472, 4
            %v2478 = vshrl.u32 %v2429, 16
            %v2480 = vrot.slane %v2478, 7
            %v2481 = vshll.u32 %v2429, 16
            %v2483 = vor.u32 %v2480, %v2481
            %v2484 = vsel %vm2434, %v2476, %v2483
            %v2485 = vrot.slane %v2480, 4
            %v2487 = vshrl.u32 %v2430, 16
            %v2489 = vrot.slane %v2487, 7
            %v2490 = vshll.u32 %v2430, 16
            %v2492 = vor.u32 %v2489, %v2490
            %v2493 = vrot.slane %v2489, 4
            %v2495 = vshrl.u32 %v2431, 16
            %v2497 = vrot.slane %v2495, 7
            %v2498 = vshll.u32 %v2431, 16
            %v2500 = vor.u32 %v2497, %v2498
            %v2501 = vsel %vm2434, %v2493, %v2500
            %v2502 = vrot.slane %v2497, 4
            %s2515 = smul.addr %s998, 4
            %s2516 = scalar_lea.vmem [#allocation3], %s2515
            %vm2517 = vcmask 1043456
            %vm2518 = vsmask.f32 7938
            %vm2519 = vmand %vm2517, %vm2518
            %v2520 = vld [vmem:[%s2516] sm:$0xf]
            %v2521 = vsel %vm2519, %v2441, %v2520
            %2522 = vst [vmem:[%s2516] sm:$0xf] %v2521
            %2523 = vst [vmem:[%s2516 + $0x4] sm:$0xf] %v2450
            %vm2524 = vcmask 1040384
            %vm2525 = vmand %vm2524, %vm2432
            %v2526 = vld [vmem:[%s2516 + $0x8] sm:$0x1]
            %v2527 = vsel %vm2525, %v2451, %v2526
            %2528 = vst [vmem:[%s2516 + $0x8] sm:$0x1] %v2527
            %v2529 = vld [vmem:[%s2516 + $0xc] sm:$0xf]
            %v2530 = vsel %vm2519, %v2458, %v2529
            %2531 = vst [vmem:[%s2516 + $0xc] sm:$0xf] %v2530
            %2532 = vst [vmem:[%s2516 + $0x10] sm:$0xf] %v2467
            %v2533 = vld [vmem:[%s2516 + $0x14] sm:$0x1]
            %v2534 = vsel %vm2525, %v2468, %v2533
            %2535 = vst [vmem:[%s2516 + $0x14] sm:$0x1] %v2534
            %v2536 = vld [vmem:[%s2516 + $0x18] sm:$0xf]
            %v2537 = vsel %vm2519, %v2475, %v2536
            %2538 = vst [vmem:[%s2516 + $0x18] sm:$0xf] %v2537
            %2539 = vst [vmem:[%s2516 + $0x1c] sm:$0xf] %v2484
            %v2540 = vld [vmem:[%s2516 + $0x20] sm:$0x1]
            %v2541 = vsel %vm2525, %v2485, %v2540
            %2542 = vst [vmem:[%s2516 + $0x20] sm:$0x1] %v2541
            %v2543 = vld [vmem:[%s2516 + $0x24] sm:$0xf]
            %v2544 = vsel %vm2519, %v2492, %v2543
            %2545 = vst [vmem:[%s2516 + $0x24] sm:$0xf] %v2544
            %2546 = vst [vmem:[%s2516 + $0x28] sm:$0xf] %v2501
            %v2547 = vld [vmem:[%s2516 + $0x2c] sm:$0x1]
            %v2548 = vsel %vm2525, %v2502, %v2547
            %2549 = vst [vmem:[%s2516 + $0x2c] sm:$0x1] %v2548
          $region53: #{tpu_custom_call.1} parent=47 // loop_footer
            %s317 = sadd.s32 1, %s313
          $region54: #{tpu_custom_call.1} parent=47 // loop_footer_branch
            %312 = sbr.rel target = $region50
          $region55: #{tpu_custom_call.1} parent=47 // loop_exit
            _
        $region48: #{tpu_custom_call.1} parent=39 // pred_fallthru
          _
        %s2550 = smul.u32 %s25, 4
        %s2551 = smul.u32 %s2550, 3
        %s2552 = smul.addr %s2551, 4
        %s2553 = scalar_lea.vmem [#allocation3], %s2552
        %v2554 = vld [vmem:[%s2553] sm:$0xf]
        %v2555 = vld [vmem:[%s2553 + $0x4] sm:$0xf]
        %v2556 = vld [vmem:[%s2553 + $0xc] sm:$0xf]
        %v2557 = vld [vmem:[%s2553 + $0x10] sm:$0xf]
        %v2558 = vld [vmem:[%s2553 + $0x18] sm:$0xf]
        %v2559 = vld [vmem:[%s2553 + $0x1c] sm:$0xf]
        %v2560 = vld [vmem:[%s2553 + $0x24] sm:$0xf]
        %v2561 = vld [vmem:[%s2553 + $0x28] sm:$0xf]
        %v2562 = vld [vmem:[#allocation4] sm:$0xf]
        %v2563 = vld [vmem:[#allocation4 + $0x4] sm:$0xf]
        %v2564 = vld [vmem:[#allocation4 + $0x8] sm:$0xf]
        %v2565 = vld [vmem:[#allocation4 + $0xc] sm:$0xf]
        %v2566 = vld [vmem:[#allocation4 + $0x10] sm:$0xf]
        %v2567 = vld [vmem:[#allocation4 + $0x14] sm:$0xf]
        %v2568 = vld [vmem:[#allocation4 + $0x18] sm:$0xf]
        %v2569 = vld [vmem:[#allocation4 + $0x1c] sm:$0xf]
        %v2570 = vld [vmem:[#allocation4 + $0x20] sm:$0xf]
        %v2571 = vld [vmem:[#allocation4 + $0x24] sm:$0xf]
        %v2572 = vld [vmem:[#allocation4 + $0x28] sm:$0xf]
        %v2573 = vld [vmem:[#allocation4 + $0x2c] sm:$0xf]
        %v2574 = vld [vmem:[#allocation4 + $0x30] sm:$0xf]
        %v2575 = vld [vmem:[#allocation4 + $0x34] sm:$0xf]
        %v2576 = vld [vmem:[#allocation4 + $0x38] sm:$0xf]
        %v2577 = vld [vmem:[#allocation4 + $0x3c] sm:$0xf]
        %v2586 = vunpack.c.l.b16 %v2554
        %v2587 = vunpack.c.l.b16 %v2555
        %v2588 = vunpack.c.l.b16 %v2556
        %v2589 = vunpack.c.l.b16 %v2557
        %v2590 = vunpack.c.l.b16 %v2558
        %v2591 = vunpack.c.l.b16 %v2559
        %v2592 = vunpack.c.l.b16 %v2560
        %v2593 = vunpack.c.l.b16 %v2561
        %v2594 = vpack.c.b16 %v2587, %v2586
        %v2595 = vpack.c.b16 %v2589, %v2588
        %v2596 = vpack.c.b16 %v2591, %v2590
        %v2597 = vpack.c.b16 %v2593, %v2592
        %v2618 = vunpack.c.l.b16 %v2562
        %v2619 = vunpack.c.l.b16 %v2563
        %v2620 = vunpack.c.l.b16 %v2564
        %v2621 = vunpack.c.l.b16 %v2565
        %v2622 = vunpack.c.l.b16 %v2566
        %v2623 = vunpack.c.l.b16 %v2567
        %v2624 = vunpack.c.l.b16 %v2568
        %v2625 = vunpack.c.l.b16 %v2569
        %v2626 = vunpack.c.l.b16 %v2570
        %v2627 = vunpack.c.l.b16 %v2571
        %v2628 = vunpack.c.l.b16 %v2572
        %v2629 = vunpack.c.l.b16 %v2573
        %v2630 = vunpack.c.l.b16 %v2574
        %v2631 = vunpack.c.l.b16 %v2575
        %v2632 = vunpack.c.l.b16 %v2576
        %v2633 = vunpack.c.l.b16 %v2577
        %v2634 = vpack.c.b16 %v2619, %v2618
        %v2635 = vpack.c.b16 %v2621, %v2620
        %v2636 = vpack.c.b16 %v2623, %v2622
        %v2637 = vpack.c.b16 %v2625, %v2624
        %v2638 = vpack.c.b16 %v2627, %v2626
        %v2639 = vpack.c.b16 %v2629, %v2628
        %v2640 = vpack.c.b16 %v2631, %v2630
        %v2641 = vpack.c.b16 %v2633, %v2632
        %2650 = vmatprep.subr.bf16.mxu0 0
        %2651 = vmatpush1.bf16.msra.mxu0 %v2634
        %2652 = vmatprep.subr.bf16.mxu0 0
        %2653 = vmatpush1.bf16.msra.mxu0 %v2635
        %2654 = vmatprep.subr.bf16.mxu0 0
        %2655 = vmatpush1.bf16.msra.mxu0 %v2636
        %2656 = vmatprep.subr.bf16.mxu0 0
        %2657 = vmatpush1.bf16.msra.mxu0 %v2637
        %2658 = vmatprep.subr.bf16.mxu0 0
        %2659 = vmatpush1.bf16.msra.mxu0 %v2638
        %2660 = vmatprep.subr.bf16.mxu0 0
        %2661 = vmatpush1.bf16.msra.mxu0 %v2639
        %2662 = vmatprep.subr.bf16.mxu0 0
        %2663 = vmatpush1.bf16.msra.mxu0 %v2640
        %2664 = vmatprep.subr.bf16.mxu0 0
        %2665 = vmatpush1.bf16.msra.mxu0 %v2641
        %2666 = vmatprep.subr.bf16.mxu0 0
        %2667 = vmatpush1.bf16.msra.mxu0 0
        %2668 = vmatprep.subr.bf16.mxu0 0
        %2669 = vmatpush1.bf16.msra.mxu0 0
        %2670 = vmatprep.subr.bf16.mxu0 0
        %2671 = vmatpush1.bf16.msra.mxu0 0
        %2672 = vmatprep.subr.bf16.mxu0 0
        %2673 = vmatpush1.bf16.msra.mxu0 0
        %2674 = vmatprep.subr.bf16.mxu0 0
        %2675 = vmatpush1.bf16.msra.mxu0 0
        %2676 = vmatprep.subr.bf16.mxu0 0
        %2677 = vmatpush1.bf16.msra.mxu0 0
        %2678 = vmatprep.subr.bf16.mxu0 0
        %2679 = vmatpush1.bf16.msra.mxu0 0
        %2680 = vmatprep.subr.bf16.mxu0 0
        %2681 = vmatpush1.bf16.msra.mxu0 0
        %2682 = vmatprep.mubr.bf16.mxu0 0
        %2683 = vmatmul.mubr.bf16.gmra.mrb[0].mxu0 %v2594
        %v2684 = vpop.f32.mrb[0].mxu0
        %v2685 = vadd.f32 0.0, %v2684
        %v2686 = vpop.f32.mrb[0].mxu0
        %v2687 = vpop.f32.mrb[0].mxu0
        %v2688 = vadd.f32 0.0, %v2687
        %v2689 = vpop.f32.mrb[0].mxu0
        %2690 = vmatprep.mubr.bf16.mxu0 0
        %2691 = vmatmul.mubr.bf16.gmra.mrb[0].mxu0 %v2595
        %v2692 = vpop.f32.mrb[0].mxu0
        %v2693 = vadd.f32 0.0, %v2692
        %v2694 = vpop.f32.mrb[0].mxu0
        %v2695 = vpop.f32.mrb[0].mxu0
        %v2696 = vadd.f32 0.0, %v2695
        %v2697 = vpop.f32.mrb[0].mxu0
        %2698 = vmatprep.mubr.bf16.mxu0 0
        %2699 = vmatmul.mubr.bf16.gmra.mrb[0].mxu0 %v2596
        %v2700 = vpop.f32.mrb[0].mxu0
        %v2701 = vadd.f32 0.0, %v2700
        %v2702 = vpop.f32.mrb[0].mxu0
        %v2703 = vpop.f32.mrb[0].mxu0
        %v2704 = vadd.f32 0.0, %v2703
        %v2705 = vpop.f32.mrb[0].mxu0
        %2706 = vmatprep.mubr.bf16.mxu0 0
        %2707 = vmatmul.mubr.bf16.gmra.mrb[0].mxu0 %v2597
        %v2708 = vpop.f32.mrb[0].mxu0
        %v2709 = vadd.f32 0.0, %v2708
        %v2710 = vpop.f32.mrb[0].mxu0
        %v2711 = vpop.f32.mrb[0].mxu0
        %v2712 = vadd.f32 0.0, %v2711
        %v2713 = vpop.f32.mrb[0].mxu0
        %2714 = vdwg.mxu0
        %2715 = vst [vmem:[#allocation2] sm:$0xff] %v2685
        %2716 = vst [vmem:[#allocation2 + $0x8] sm:$0xff] %v2688
        %2717 = vst [vmem:[#allocation2 + $0x10] sm:$0xff] %v2693
        %2718 = vst [vmem:[#allocation2 + $0x18] sm:$0xff] %v2696
        %2719 = vst [vmem:[#allocation2 + $0x20] sm:$0xff] %v2701
        %2720 = vst [vmem:[#allocation2 + $0x28] sm:$0xff] %v2704
        %2721 = vst [vmem:[#allocation2 + $0x30] sm:$0xff] %v2709
        %2722 = vst [vmem:[#allocation2 + $0x38] sm:$0xff] %v2712
        %v2723 = vld [vmem:[%s2553] sm:$0xf]
        %v2724 = vld [vmem:[%s2553 + $0x4] sm:$0xf]
        %v2725 = vld [vmem:[%s2553 + $0x8] sm:$0x1]
        %v2726 = vld [vmem:[%s2553 + $0xc] sm:$0xf]
        %v2727 = vld [vmem:[%s2553 + $0x10] sm:$0xf]
        %v2728 = vld [vmem:[%s2553 + $0x14] sm:$0x1]
        %v2729 = vld [vmem:[%s2553 + $0x18] sm:$0xf]
        %v2730 = vld [vmem:[%s2553 + $0x1c] sm:$0xf]
        %v2731 = vld [vmem:[%s2553 + $0x20] sm:$0x1]
        %v2732 = vld [vmem:[%s2553 + $0x24] sm:$0xf]
        %v2733 = vld [vmem:[%s2553 + $0x28] sm:$0xf]
        %v2734 = vld [vmem:[%s2553 + $0x2c] sm:$0x1]
        %vm2735 = vsmask.f32 3328
        %vm2736 = vsmask.f32 7440
        %vm2737 = vmor %vm2735, %vm2736
        %v2739 = vshrl.u32 %v2723, 16
        %v2741 = vrot.slane %v2739, 4
        %v2742 = vshll.u32 %v2723, 16
        %v2744 = vrot.slane %v2742, 5
        %v2745 = vor.u32 %v2741, %v2744
        %v2746 = vrot.slane %v2745, 4
        %v2748 = vshll.u32 %v2724, 16
        %v2750 = vrot.slane %v2748, 5
        %v2751 = vsel %vm2737, %v2746, %v2750
        %v2752 = vshrl.u32 %v2724, 16
        %v2754 = vrot.slane %v2752, 4
        %v2755 = vor.u32 %v2754, %v2750
        %v2756 = vrot.slane %v2755, 4
        %v2758 = vshll.u32 %v2725, 16
        %v2760 = vrot.slane %v2758, 5
        %v2761 = vsel %vm2737, %v2756, %v2760
        %v2763 = vshrl.u32 %v2726, 16
        %v2765 = vrot.slane %v2763, 4
        %v2766 = vshll.u32 %v2726, 16
        %v2768 = vrot.slane %v2766, 5
        %v2769 = vor.u32 %v2765, %v2768
        %v2770 = vrot.slane %v2769, 4
        %v2772 = vshll.u32 %v2727, 16
        %v2774 = vrot.slane %v2772, 5
        %v2775 = vsel %vm2737, %v2770, %v2774
        %v2776 = vshrl.u32 %v2727, 16
        %v2778 = vrot.slane %v2776, 4
        %v2779 = vor.u32 %v2778, %v2774
        %v2780 = vrot.slane %v2779, 4
        %v2782 = vshll.u32 %v2728, 16
        %v2784 = vrot.slane %v2782, 5
        %v2785 = vsel %vm2737, %v2780, %v2784
        %v2787 = vshrl.u32 %v2729, 16
        %v2789 = vrot.slane %v2787, 4
        %v2790 = vshll.u32 %v2729, 16
        %v2792 = vrot.slane %v2790, 5
        %v2793 = vor.u32 %v2789, %v2792
        %v2794 = vrot.slane %v2793, 4
        %v2796 = vshll.u32 %v2730, 16
        %v2798 = vrot.slane %v2796, 5
        %v2799 = vsel %vm2737, %v2794, %v2798
        %v2800 = vshrl.u32 %v2730, 16
        %v2802 = vrot.slane %v2800, 4
        %v2803 = vor.u32 %v2802, %v2798
        %v2804 = vrot.slane %v2803, 4
        %v2806 = vshll.u32 %v2731, 16
        %v2808 = vrot.slane %v2806, 5
        %v2809 = vsel %vm2737, %v2804, %v2808
        %v2811 = vshrl.u32 %v2732, 16
        %v2813 = vrot.slane %v2811, 4
        %v2814 = vshll.u32 %v2732, 16
        %v2816 = vrot.slane %v2814, 5
        %v2817 = vor.u32 %v2813, %v2816
        %v2818 = vrot.slane %v2817, 4
        %v2820 = vshll.u32 %v2733, 16
        %v2822 = vrot.slane %v2820, 5
        %v2823 = vsel %vm2737, %v2818, %v2822
        %v2824 = vshrl.u32 %v2733, 16
        %v2826 = vrot.slane %v2824, 4
        %v2827 = vor.u32 %v2826, %v2822
        %v2828 = vrot.slane %v2827, 4
        %v2830 = vshll.u32 %v2734, 16
        %v2832 = vrot.slane %v2830, 5
        %v2833 = vsel %vm2737, %v2828, %v2832
        %s2834 = scalar_lea.vmem [#allocation4], 64
        %v2835 = vld [vmem:[%s2834] sm:$0xf]
        %v2836 = vld [vmem:[%s2834 + $0x4] sm:$0xf]
        %v2837 = vld [vmem:[%s2834 + $0x8] sm:$0xf]
        %v2838 = vld [vmem:[%s2834 + $0xc] sm:$0xf]
        %v2839 = vld [vmem:[%s2834 + $0x10] sm:$0xf]
        %v2840 = vld [vmem:[%s2834 + $0x14] sm:$0xf]
        %v2841 = vld [vmem:[%s2834 + $0x18] sm:$0xf]
        %v2842 = vld [vmem:[%s2834 + $0x1c] sm:$0xf]
        %v2843 = vld [vmem:[%s2834 + $0x20] sm:$0xf]
        %v2844 = vld [vmem:[%s2834 + $0x24] sm:$0xf]
        %v2845 = vld [vmem:[%s2834 + $0x28] sm:$0xf]
        %v2846 = vld [vmem:[%s2834 + $0x2c] sm:$0xf]
        %v2847 = vld [vmem:[%s2834 + $0x30] sm:$0xf]
        %v2848 = vld [vmem:[%s2834 + $0x34] sm:$0xf]
        %v2849 = vld [vmem:[%s2834 + $0x38] sm:$0xf]
        %v2850 = vld [vmem:[%s2834 + $0x3c] sm:$0xf]
        %v2851 = vunpack.c.l.b16 %v2751
        %v2852 = vunpack.c.l.b16 %v2761
        %v2853 = vunpack.c.l.b16 %v2775
        %v2854 = vunpack.c.l.b16 %v2785
        %v2855 = vunpack.c.l.b16 %v2799
        %v2856 = vunpack.c.l.b16 %v2809
        %v2857 = vunpack.c.l.b16 %v2823
        %v2858 = vunpack.c.l.b16 %v2833
        %v2859 = vpack.c.b16 %v2852, %v2851
        %v2860 = vpack.c.b16 %v2854, %v2853
        %v2861 = vpack.c.b16 %v2856, %v2855
        %v2862 = vpack.c.b16 %v2858, %v2857
        %v2883 = vunpack.c.l.b16 %v2835
        %v2884 = vunpack.c.l.b16 %v2836
        %v2885 = vunpack.c.l.b16 %v2837
        %v2886 = vunpack.c.l.b16 %v2838
        %v2887 = vunpack.c.l.b16 %v2839
        %v2888 = vunpack.c.l.b16 %v2840
        %v2889 = vunpack.c.l.b16 %v2841
        %v2890 = vunpack.c.l.b16 %v2842
        %v2891 = vunpack.c.l.b16 %v2843
        %v2892 = vunpack.c.l.b16 %v2844
        %v2893 = vunpack.c.l.b16 %v2845
        %v2894 = vunpack.c.l.b16 %v2846
        %v2895 = vunpack.c.l.b16 %v2847
        %v2896 = vunpack.c.l.b16 %v2848
        %v2897 = vunpack.c.l.b16 %v2849
        %v2898 = vunpack.c.l.b16 %v2850
        %v2899 = vpack.c.b16 %v2884, %v2883
        %v2900 = vpack.c.b16 %v2886, %v2885
        %v2901 = vpack.c.b16 %v2888, %v2887
        %v2902 = vpack.c.b16 %v2890, %v2889
        %v2903 = vpack.c.b16 %v2892, %v2891
        %v2904 = vpack.c.b16 %v2894, %v2893
        %v2905 = vpack.c.b16 %v2896, %v2895
        %v2906 = vpack.c.b16 %v2898, %v2897
        %2915 = vmatprep.subr.bf16.mxu0 0
        %2916 = vmatpush1.bf16.msra.mxu0 %v2899
        %2917 = vmatprep.subr.bf16.mxu0 0
        %2918 = vmatpush1.bf16.msra.mxu0 %v2900
        %2919 = vmatprep.subr.bf16.mxu0 0
        %2920 = vmatpush1.bf16.msra.mxu0 %v2901
        %2921 = vmatprep.subr.bf16.mxu0 0
        %2922 = vmatpush1.bf16.msra.mxu0 %v2902
        %2923 = vmatprep.subr.bf16.mxu0 0
        %2924 = vmatpush1.bf16.msra.mxu0 %v2903
        %2925 = vmatprep.subr.bf16.mxu0 0
        %2926 = vmatpush1.bf16.msra.mxu0 %v2904
        %2927 = vmatprep.subr.bf16.mxu0 0
        %2928 = vmatpush1.bf16.msra.mxu0 %v2905
        %2929 = vmatprep.subr.bf16.mxu0 0
        %2930 = vmatpush1.bf16.msra.mxu0 %v2906
        %2931 = vmatprep.subr.bf16.mxu0 0
        %2932 = vmatpush1.bf16.msra.mxu0 0
        %2933 = vmatprep.subr.bf16.mxu0 0
        %2934 = vmatpush1.bf16.msra.mxu0 0
        %2935 = vmatprep.subr.bf16.mxu0 0
        %2936 = vmatpush1.bf16.msra.mxu0 0
        %2937 = vmatprep.subr.bf16.mxu0 0
        %2938 = vmatpush1.bf16.msra.mxu0 0
        %2939 = vmatprep.subr.bf16.mxu0 0
        %2940 = vmatpush1.bf16.msra.mxu0 0
        %2941 = vmatprep.subr.bf16.mxu0 0
        %2942 = vmatpush1.bf16.msra.mxu0 0
        %2943 = vmatprep.subr.bf16.mxu0 0
        %2944 = vmatpush1.bf16.msra.mxu0 0
        %2945 = vmatprep.subr.bf16.mxu0 0
        %2946 = vmatpush1.bf16.msra.mxu0 0
        %2947 = vmatprep.mubr.bf16.mxu0 0
        %2948 = vmatmul.mubr.bf16.gmra.mrb[0].mxu0 %v2859
        %v2949 = vpop.f32.mrb[0].mxu0
        %v2950 = vadd.f32 0.0, %v2949
        %v2951 = vpop.f32.mrb[0].mxu0
        %v2952 = vpop.f32.mrb[0].mxu0
        %v2953 = vadd.f32 0.0, %v2952
        %v2954 = vpop.f32.mrb[0].mxu0
        %2955 = vmatprep.mubr.bf16.mxu0 0
        %2956 = vmatmul.mubr.bf16.gmra.mrb[0].mxu0 %v2860
        %v2957 = vpop.f32.mrb[0].mxu0
        %v2958 = vadd.f32 0.0, %v2957
        %v2959 = vpop.f32.mrb[0].mxu0
        %v2960 = vpop.f32.mrb[0].mxu0
        %v2961 = vadd.f32 0.0, %v2960
        %v2962 = vpop.f32.mrb[0].mxu0
        %2963 = vmatprep.mubr.bf16.mxu0 0
        %2964 = vmatmul.mubr.bf16.gmra.mrb[0].mxu0 %v2861
        %v2965 = vpop.f32.mrb[0].mxu0
        %v2966 = vadd.f32 0.0, %v2965
        %v2967 = vpop.f32.mrb[0].mxu0
        %v2968 = vpop.f32.mrb[0].mxu0
        %v2969 = vadd.f32 0.0, %v2968
        %v2970 = vpop.f32.mrb[0].mxu0
        %2971 = vmatprep.mubr.bf16.mxu0 0
        %2972 = vmatmul.mubr.bf16.gmra.mrb[0].mxu0 %v2862
        %v2973 = vpop.f32.mrb[0].mxu0
        %v2974 = vadd.f32 0.0, %v2973
        %v2975 = vpop.f32.mrb[0].mxu0
        %v2976 = vpop.f32.mrb[0].mxu0
        %v2977 = vadd.f32 0.0, %v2976
        %v2978 = vpop.f32.mrb[0].mxu0
        %2979 = vdwg.mxu0
        %v2980 = vld [vmem:[#allocation2] sm:$0xff]
        %v2981 = vld [vmem:[#allocation2 + $0x8] sm:$0xff]
        %v2982 = vld [vmem:[#allocation2 + $0x10] sm:$0xff]
        %v2983 = vld [vmem:[#allocation2 + $0x18] sm:$0xff]
        %v2984 = vld [vmem:[#allocation2 + $0x20] sm:$0xff]
        %v2985 = vld [vmem:[#allocation2 + $0x28] sm:$0xff]
        %v2986 = vld [vmem:[#allocation2 + $0x30] sm:$0xff]
        %v2987 = vld [vmem:[#allocation2 + $0x38] sm:$0xff]
        %v2988 = vadd.f32 %v2980, %v2950
        %v2989 = vadd.f32 %v2981, %v2953
        %v2990 = vadd.f32 %v2982, %v2958
        %v2991 = vadd.f32 %v2983, %v2961
        %v2992 = vadd.f32 %v2984, %v2966
        %v2993 = vadd.f32 %v2985, %v2969
        %v2994 = vadd.f32 %v2986, %v2974
        %v2995 = vadd.f32 %v2987, %v2977
        %2996 = vst [vmem:[#allocation2] sm:$0xff] %v2988
        %2997 = vst [vmem:[#allocation2 + $0x8] sm:$0xff] %v2989
        %2998 = vst [vmem:[#allocation2 + $0x10] sm:$0xff] %v2990
        %2999 = vst [vmem:[#allocation2 + $0x18] sm:$0xff] %v2991
        %3000 = vst [vmem:[#allocation2 + $0x20] sm:$0xff] %v2992
        %3001 = vst [vmem:[#allocation2 + $0x28] sm:$0xff] %v2993
        %3002 = vst [vmem:[#allocation2 + $0x30] sm:$0xff] %v2994
        %3003 = vst [vmem:[#allocation2 + $0x38] sm:$0xff] %v2995
        %v3004 = vld [vmem:[%s2553] sm:$0xe]
        %v3005 = vld [vmem:[%s2553 + $0x4] sm:$0xf]
        %v3006 = vld [vmem:[%s2553 + $0x8] sm:$0x1]
        %v3007 = vld [vmem:[%s2553 + $0xc] sm:$0xe]
        %v3008 = vld [vmem:[%s2553 + $0x10] sm:$0xf]
        %v3009 = vld [vmem:[%s2553 + $0x14] sm:$0x1]
        %v3010 = vld [vmem:[%s2553 + $0x18] sm:$0xe]
        %v3011 = vld [vmem:[%s2553 + $0x1c] sm:$0xf]
        %v3012 = vld [vmem:[%s2553 + $0x20] sm:$0x1]
        %v3013 = vld [vmem:[%s2553 + $0x24] sm:$0xe]
        %v3014 = vld [vmem:[%s2553 + $0x28] sm:$0xf]
        %v3015 = vld [vmem:[%s2553 + $0x2c] sm:$0x1]
        %vm3028 = vcmask 1042432
        %vm3029 = vcmask 1046532
        %vm3030 = vmor %vm3028, %vm3029
        %v3031 = vrot.slane %v3004, 5
        %v3032 = vrot.slane %v3031, 4
        %v3033 = vrot.slane %v3005, 5
        %v3034 = vsel %vm3030, %v3032, %v3033
        %v3035 = vrot.slane %v3033, 4
        %v3036 = vrot.slane %v3006, 5
        %v3037 = vsel %vm3030, %v3035, %v3036
        %v3038 = vrot.slane %v3007, 5
        %v3039 = vrot.slane %v3038, 4
        %v3040 = vrot.slane %v3008, 5
        %v3041 = vsel %vm3030, %v3039, %v3040
        %v3042 = vrot.slane %v3040, 4
        %v3043 = vrot.slane %v3009, 5
        %v3044 = vsel %vm3030, %v3042, %v3043
        %v3045 = vrot.slane %v3010, 5
        %v3046 = vrot.slane %v3045, 4
        %v3047 = vrot.slane %v3011, 5
        %v3048 = vsel %vm3030, %v3046, %v3047
        %v3049 = vrot.slane %v3047, 4
        %v3050 = vrot.slane %v3012, 5
        %v3051 = vsel %vm3030, %v3049, %v3050
        %v3052 = vrot.slane %v3013, 5
        %v3053 = vrot.slane %v3052, 4
        %v3054 = vrot.slane %v3014, 5
        %v3055 = vsel %vm3030, %v3053, %v3054
        %v3056 = vrot.slane %v3054, 4
        %v3057 = vrot.slane %v3015, 5
        %v3058 = vsel %vm3030, %v3056, %v3057
        %s3059 = scalar_lea.vmem [#allocation4], 128
        %v3060 = vld [vmem:[%s3059] sm:$0xf]
        %v3061 = vld [vmem:[%s3059 + $0x4] sm:$0xf]
        %v3062 = vld [vmem:[%s3059 + $0x8] sm:$0xf]
        %v3063 = vld [vmem:[%s3059 + $0xc] sm:$0xf]
        %v3064 = vld [vmem:[%s3059 + $0x10] sm:$0xf]
        %v3065 = vld [vmem:[%s3059 + $0x14] sm:$0xf]
        %v3066 = vld [vmem:[%s3059 + $0x18] sm:$0xf]
        %v3067 = vld [vmem:[%s3059 + $0x1c] sm:$0xf]
        %v3068 = vld [vmem:[%s3059 + $0x20] sm:$0xf]
        %v3069 = vld [vmem:[%s3059 + $0x24] sm:$0xf]
        %v3070 = vld [vmem:[%s3059 + $0x28] sm:$0xf]
        %v3071 = vld [vmem:[%s3059 + $0x2c] sm:$0xf]
        %v3072 = vld [vmem:[%s3059 + $0x30] sm:$0xf]
        %v3073 = vld [vmem:[%s3059 + $0x34] sm:$0xf]
        %v3074 = vld [vmem:[%s3059 + $0x38] sm:$0xf]
        %v3075 = vld [vmem:[%s3059 + $0x3c] sm:$0xf]
        %v3076 = vunpack.c.l.b16 %v3034
        %v3077 = vunpack.c.l.b16 %v3037
        %v3078 = vunpack.c.l.b16 %v3041
        %v3079 = vunpack.c.l.b16 %v3044
        %v3080 = vunpack.c.l.b16 %v3048
        %v3081 = vunpack.c.l.b16 %v3051
        %v3082 = vunpack.c.l.b16 %v3055
        %v3083 = vunpack.c.l.b16 %v3058
        %v3084 = vpack.c.b16 %v3077, %v3076
        %v3085 = vpack.c.b16 %v3079, %v3078
        %v3086 = vpack.c.b16 %v3081, %v3080
        %v3087 = vpack.c.b16 %v3083, %v3082
        %v3108 = vunpack.c.l.b16 %v3060
        %v3109 = vunpack.c.l.b16 %v3061
        %v3110 = vunpack.c.l.b16 %v3062
        %v3111 = vunpack.c.l.b16 %v3063
        %v3112 = vunpack.c.l.b16 %v3064
        %v3113 = vunpack.c.l.b16 %v3065
        %v3114 = vunpack.c.l.b16 %v3066
        %v3115 = vunpack.c.l.b16 %v3067
        %v3116 = vunpack.c.l.b16 %v3068
        %v3117 = vunpack.c.l.b16 %v3069
        %v3118 = vunpack.c.l.b16 %v3070
        %v3119 = vunpack.c.l.b16 %v3071
        %v3120 = vunpack.c.l.b16 %v3072
        %v3121 = vunpack.c.l.b16 %v3073
        %v3122 = vunpack.c.l.b16 %v3074
        %v3123 = vunpack.c.l.b16 %v3075
        %v3124 = vpack.c.b16 %v3109, %v3108
        %v3125 = vpack.c.b16 %v3111, %v3110
        %v3126 = vpack.c.b16 %v3113, %v3112
        %v3127 = vpack.c.b16 %v3115, %v3114
        %v3128 = vpack.c.b16 %v3117, %v3116
        %v3129 = vpack.c.b16 %v3119, %v3118
        %v3130 = vpack.c.b16 %v3121, %v3120
        %v3131 = vpack.c.b16 %v3123, %v3122
        %3140 = vmatprep.subr.bf16.mxu0 0
        %3141 = vmatpush1.bf16.msra.mxu0 %v3124
        %3142 = vmatprep.subr.bf16.mxu0 0
        %3143 = vmatpush1.bf16.msra.mxu0 %v3125
        %3144 = vmatprep.subr.bf16.mxu0 0
        %3145 = vmatpush1.bf16.msra.mxu0 %v3126
        %3146 = vmatprep.subr.bf16.mxu0 0
        %3147 = vmatpush1.bf16.msra.mxu0 %v3127
        %3148 = vmatprep.subr.bf16.mxu0 0
        %3149 = vmatpush1.bf16.msra.mxu0 %v3128
        %3150 = vmatprep.subr.bf16.mxu0 0
        %3151 = vmatpush1.bf16.msra.mxu0 %v3129
        %3152 = vmatprep.subr.bf16.mxu0 0
        %3153 = vmatpush1.bf16.msra.mxu0 %v3130
        %3154 = vmatprep.subr.bf16.mxu0 0
        %3155 = vmatpush1.bf16.msra.mxu0 %v3131
        %3156 = vmatprep.subr.bf16.mxu0 0
        %3157 = vmatpush1.bf16.msra.mxu0 0
        %3158 = vmatprep.subr.bf16.mxu0 0
        %3159 = vmatpush1.bf16.msra.mxu0 0
        %3160 = vmatprep.subr.bf16.mxu0 0
        %3161 = vmatpush1.bf16.msra.mxu0 0
        %3162 = vmatprep.subr.bf16.mxu0 0
        %3163 = vmatpush1.bf16.msra.mxu0 0
        %3164 = vmatprep.subr.bf16.mxu0 0
        %3165 = vmatpush1.bf16.msra.mxu0 0
        %3166 = vmatprep.subr.bf16.mxu0 0
        %3167 = vmatpush1.bf16.msra.mxu0 0
        %3168 = vmatprep.subr.bf16.mxu0 0
        %3169 = vmatpush1.bf16.msra.mxu0 0
        %3170 = vmatprep.subr.bf16.mxu0 0
        %3171 = vmatpush1.bf16.msra.mxu0 0
        %3172 = vmatprep.mubr.bf16.mxu0 0
        %3173 = vmatmul.mubr.bf16.gmra.mrb[0].mxu0 %v3084
        %v3174 = vpop.f32.mrb[0].mxu0
        %v3175 = vadd.f32 0.0, %v3174
        %v3176 = vpop.f32.mrb[0].mxu0
        %v3177 = vpop.f32.mrb[0].mxu0
        %v3178 = vadd.f32 0.0, %v3177
        %v3179 = vpop.f32.mrb[0].mxu0
        %3180 = vmatprep.mubr.bf16.mxu0 0
        %3181 = vmatmul.mubr.bf16.gmra.mrb[0].mxu0 %v3085
        %v3182 = vpop.f32.mrb[0].mxu0
        %v3183 = vadd.f32 0.0, %v3182
        %v3184 = vpop.f32.mrb[0].mxu0
        %v3185 = vpop.f32.mrb[0].mxu0
        %v3186 = vadd.f32 0.0, %v3185
        %v3187 = vpop.f32.mrb[0].mxu0
        %3188 = vmatprep.mubr.bf16.mxu0 0
        %3189 = vmatmul.mubr.bf16.gmra.mrb[0].mxu0 %v3086
        %v3190 = vpop.f32.mrb[0].mxu0
        %v3191 = vadd.f32 0.0, %v3190
        %v3192 = vpop.f32.mrb[0].mxu0
        %v3193 = vpop.f32.mrb[0].mxu0
        %v3194 = vadd.f32 0.0, %v3193
        %v3195 = vpop.f32.mrb[0].mxu0
        %3196 = vmatprep.mubr.bf16.mxu0 0
        %3197 = vmatmul.mubr.bf16.gmra.mrb[0].mxu0 %v3087
        %v3198 = vpop.f32.mrb[0].mxu0
        %v3199 = vadd.f32 0.0, %v3198
        %v3200 = vpop.f32.mrb[0].mxu0
        %v3201 = vpop.f32.mrb[0].mxu0
        %v3202 = vadd.f32 0.0, %v3201
        %v3203 = vpop.f32.mrb[0].mxu0
        %3204 = vdwg.mxu0
        %v3205 = vld [vmem:[#allocation2] sm:$0xff]
        %v3206 = vld [vmem:[#allocation2 + $0x8] sm:$0xff]
        %v3207 = vld [vmem:[#allocation2 + $0x10] sm:$0xff]
        %v3208 = vld [vmem:[#allocation2 + $0x18] sm:$0xff]
        %v3209 = vld [vmem:[#allocation2 + $0x20] sm:$0xff]
        %v3210 = vld [vmem:[#allocation2 + $0x28] sm:$0xff]
        %v3211 = vld [vmem:[#allocation2 + $0x30] sm:$0xff]
        %v3212 = vld [vmem:[#allocation2 + $0x38] sm:$0xff]
        %v3213 = vadd.f32 %v3205, %v3175
        %v3214 = vadd.f32 %v3206, %v3178
        %v3215 = vadd.f32 %v3207, %v3183
        %v3216 = vadd.f32 %v3208, %v3186
        %v3217 = vadd.f32 %v3209, %v3191
        %v3218 = vadd.f32 %v3210, %v3194
        %v3219 = vadd.f32 %v3211, %v3199
        %v3220 = vadd.f32 %v3212, %v3202
        %3221 = vst [vmem:[#allocation2] sm:$0xff] %v3213
        %3222 = vst [vmem:[#allocation2 + $0x8] sm:$0xff] %v3214
        %3223 = vst [vmem:[#allocation2 + $0x10] sm:$0xff] %v3215
        %3224 = vst [vmem:[#allocation2 + $0x18] sm:$0xff] %v3216
        %3225 = vst [vmem:[#allocation2 + $0x20] sm:$0xff] %v3217
        %3226 = vst [vmem:[#allocation2 + $0x28] sm:$0xff] %v3218
        %3227 = vst [vmem:[#allocation2 + $0x30] sm:$0xff] %v3219
        %3228 = vst [vmem:[#allocation2 + $0x38] sm:$0xff] %v3220
        %s3229 = sadd.s32 %s2550, 1
        %s3230 = smul.u32 %s3229, 3
        %s3231 = smul.addr %s3230, 4
        %s3232 = scalar_lea.vmem [#allocation3], %s3231
        %v3233 = vld [vmem:[%s3232] sm:$0xf]
        %v3234 = vld [vmem:[%s3232 + $0x4] sm:$0xf]
        %v3235 = vld [vmem:[%s3232 + $0xc] sm:$0xf]
        %v3236 = vld [vmem:[%s3232 + $0x10] sm:$0xf]
        %v3237 = vld [vmem:[%s3232 + $0x18] sm:$0xf]
        %v3238 = vld [vmem:[%s3232 + $0x1c] sm:$0xf]
        %v3239 = vld [vmem:[%s3232 + $0x24] sm:$0xf]
        %v3240 = vld [vmem:[%s3232 + $0x28] sm:$0xf]
        %s3241 = scalar_lea.vmem [#allocation4], 192
        %v3242 = vld [vmem:[%s3241] sm:$0xf]
        %v3243 = vld [vmem:[%s3241 + $0x4] sm:$0xf]
        %v3244 = vld [vmem:[%s3241 + $0x8] sm:$0xf]
        %v3245 = vld [vmem:[%s3241 + $0xc] sm:$0xf]
        %v3246 = vld [vmem:[%s3241 + $0x10] sm:$0xf]
        %v3247 = vld [vmem:[%s3241 + $0x14] sm:$0xf]
        %v3248 = vld [vmem:[%s3241 + $0x18] sm:$0xf]
        %v3249 = vld [vmem:[%s3241 + $0x1c] sm:$0xf]
        %v3250 = vld [vmem:[%s3241 + $0x20] sm:$0xf]
        %v3251 = vld [vmem:[%s3241 + $0x24] sm:$0xf]
        %v3252 = vld [vmem:[%s3241 + $0x28] sm:$0xf]
        %v3253 = vld [vmem:[%s3241 + $0x2c] sm:$0xf]
        %v3254 = vld [vmem:[%s3241 + $0x30] sm:$0xf]
        %v3255 = vld [vmem:[%s3241 + $0x34] sm:$0xf]
        %v3256 = vld [vmem:[%s3241 + $0x38] sm:$0xf]
        %v3257 = vld [vmem:[%s3241 + $0x3c] sm:$0xf]
        %v3266 = vunpack.c.l.b16 %v3233
        %v3267 = vunpack.c.l.b16 %v3234
        %v3268 = vunpack.c.l.b16 %v3235
        %v3269 = vunpack.c.l.b16 %v3236
        %v3270 = vunpack.c.l.b16 %v3237
        %v3271 = vunpack.c.l.b16 %v3238
        %v3272 = vunpack.c.l.b16 %v3239
        %v3273 = vunpack.c.l.b16 %v3240
        %v3274 = vpack.c.b16 %v3267, %v3266
        %v3275 = vpack.c.b16 %v3269, %v3268
        %v3276 = vpack.c.b16 %v3271, %v3270
        %v3277 = vpack.c.b16 %v3273, %v3272
        %v3298 = vunpack.c.l.b16 %v3242
        %v3299 = vunpack.c.l.b16 %v3243
        %v3300 = vunpack.c.l.b16 %v3244
        %v3301 = vunpack.c.l.b16 %v3245
        %v3302 = vunpack.c.l.b16 %v3246
        %v3303 = vunpack.c.l.b16 %v3247
        %v3304 = vunpack.c.l.b16 %v3248
        %v3305 = vunpack.c.l.b16 %v3249
        %v3306 = vunpack.c.l.b16 %v3250
        %v3307 = vunpack.c.l.b16 %v3251
        %v3308 = vunpack.c.l.b16 %v3252
        %v3309 = vunpack.c.l.b16 %v3253
        %v3310 = vunpack.c.l.b16 %v3254
        %v3311 = vunpack.c.l.b16 %v3255
        %v3312 = vunpack.c.l.b16 %v3256
        %v3313 = vunpack.c.l.b16 %v3257
        %v3314 = vpack.c.b16 %v3299, %v3298
        %v3315 = vpack.c.b16 %v3301, %v3300
        %v3316 = vpack.c.b16 %v3303, %v3302
        %v3317 = vpack.c.b16 %v3305, %v3304
        %v3318 = vpack.c.b16 %v3307, %v3306
        %v3319 = vpack.c.b16 %v3309, %v3308
        %v3320 = vpack.c.b16 %v3311, %v3310
        %v3321 = vpack.c.b16 %v3313, %v3312
        %3330 = vmatprep.subr.bf16.mxu0 0
        %3331 = vmatpush1.bf16.msra.mxu0 %v3314
        %3332 = vmatprep.subr.bf16.mxu0 0
        %3333 = vmatpush1.bf16.msra.mxu0 %v3315
        %3334 = vmatprep.subr.bf16.mxu0 0
        %3335 = vmatpush1.bf16.msra.mxu0 %v3316
        %3336 = vmatprep.subr.bf16.mxu0 0
        %3337 = vmatpush1.bf16.msra.mxu0 %v3317
        %3338 = vmatprep.subr.bf16.mxu0 0
        %3339 = vmatpush1.bf16.msra.mxu0 %v3318
        %3340 = vmatprep.subr.bf16.mxu0 0
        %3341 = vmatpush1.bf16.msra.mxu0 %v3319
        %3342 = vmatprep.subr.bf16.mxu0 0
        %3343 = vmatpush1.bf16.msra.mxu0 %v3320
        %3344 = vmatprep.subr.bf16.mxu0 0
        %3345 = vmatpush1.bf16.msra.mxu0 %v3321
        %3346 = vmatprep.subr.bf16.mxu0 0
        %3347 = vmatpush1.bf16.msra.mxu0 0
        %3348 = vmatprep.subr.bf16.mxu0 0
        %3349 = vmatpush1.bf16.msra.mxu0 0
        %3350 = vmatprep.subr.bf16.mxu0 0
        %3351 = vmatpush1.bf16.msra.mxu0 0
        %3352 = vmatprep.subr.bf16.mxu0 0
        %3353 = vmatpush1.bf16.msra.mxu0 0
        %3354 = vmatprep.subr.bf16.mxu0 0
        %3355 = vmatpush1.bf16.msra.mxu0 0
        %3356 = vmatprep.subr.bf16.mxu0 0
        %3357 = vmatpush1.bf16.msra.mxu0 0
        %3358 = vmatprep.subr.bf16.mxu0 0
        %3359 = vmatpush1.bf16.msra.mxu0 0
        %3360 = vmatprep.subr.bf16.mxu0 0
        %3361 = vmatpush1.bf16.msra.mxu0 0
        %3362 = vmatprep.mubr.bf16.mxu0 0
        %3363 = vmatmul.mubr.bf16.gmra.mrb[0].mxu0 %v3274
        %v3364 = vpop.f32.mrb[0].mxu0
        %v3365 = vadd.f32 0.0, %v3364
        %v3366 = vpop.f32.mrb[0].mxu0
        %v3367 = vpop.f32.mrb[0].mxu0
        %v3368 = vadd.f32 0.0, %v3367
        %v3369 = vpop.f32.mrb[0].mxu0
        %3370 = vmatprep.mubr.bf16.mxu0 0
        %3371 = vmatmul.mubr.bf16.gmra.mrb[0].mxu0 %v3275
        %v3372 = vpop.f32.mrb[0].mxu0
        %v3373 = vadd.f32 0.0, %v3372
        %v3374 = vpop.f32.mrb[0].mxu0
        %v3375 = vpop.f32.mrb[0].mxu0
        %v3376 = vadd.f32 0.0, %v3375
        %v3377 = vpop.f32.mrb[0].mxu0
        %3378 = vmatprep.mubr.bf16.mxu0 0
        %3379 = vmatmul.mubr.bf16.gmra.mrb[0].mxu0 %v3276
        %v3380 = vpop.f32.mrb[0].mxu0
        %v3381 = vadd.f32 0.0, %v3380
        %v3382 = vpop.f32.mrb[0].mxu0
        %v3383 = vpop.f32.mrb[0].mxu0
        %v3384 = vadd.f32 0.0, %v3383
        %v3385 = vpop.f32.mrb[0].mxu0
        %3386 = vmatprep.mubr.bf16.mxu0 0
        %3387 = vmatmul.mubr.bf16.gmra.mrb[0].mxu0 %v3277
        %v3388 = vpop.f32.mrb[0].mxu0
        %v3389 = vadd.f32 0.0, %v3388
        %v3390 = vpop.f32.mrb[0].mxu0
        %v3391 = vpop.f32.mrb[0].mxu0
        %v3392 = vadd.f32 0.0, %v3391
        %v3393 = vpop.f32.mrb[0].mxu0
        %3394 = vdwg.mxu0
        %v3395 = vld [vmem:[#allocation2] sm:$0xff]
        %v3396 = vld [vmem:[#allocation2 + $0x8] sm:$0xff]
        %v3397 = vld [vmem:[#allocation2 + $0x10] sm:$0xff]
        %v3398 = vld [vmem:[#allocation2 + $0x18] sm:$0xff]
        %v3399 = vld [vmem:[#allocation2 + $0x20] sm:$0xff]
        %v3400 = vld [vmem:[#allocation2 + $0x28] sm:$0xff]
        %v3401 = vld [vmem:[#allocation2 + $0x30] sm:$0xff]
        %v3402 = vld [vmem:[#allocation2 + $0x38] sm:$0xff]
        %v3403 = vadd.f32 %v3395, %v3365
        %v3404 = vadd.f32 %v3396, %v3368
        %v3405 = vadd.f32 %v3397, %v3373
        %v3406 = vadd.f32 %v3398, %v3376
        %v3407 = vadd.f32 %v3399, %v3381
        %v3408 = vadd.f32 %v3400, %v3384
        %v3409 = vadd.f32 %v3401, %v3389
        %v3410 = vadd.f32 %v3402, %v3392
        %3411 = vst [vmem:[#allocation2] sm:$0xff] %v3403
        %3412 = vst [vmem:[#allocation2 + $0x8] sm:$0xff] %v3404
        %3413 = vst [vmem:[#allocation2 + $0x10] sm:$0xff] %v3405
        %3414 = vst [vmem:[#allocation2 + $0x18] sm:$0xff] %v3406
        %3415 = vst [vmem:[#allocation2 + $0x20] sm:$0xff] %v3407
        %3416 = vst [vmem:[#allocation2 + $0x28] sm:$0xff] %v3408
        %3417 = vst [vmem:[#allocation2 + $0x30] sm:$0xff] %v3409
        %3418 = vst [vmem:[#allocation2 + $0x38] sm:$0xff] %v3410
        %v3419 = vld [vmem:[%s3232] sm:$0xf]
        %v3420 = vld [vmem:[%s3232 + $0x4] sm:$0xf]
        %v3421 = vld [vmem:[%s3232 + $0x8] sm:$0x1]
        %v3422 = vld [vmem:[%s3232 + $0xc] sm:$0xf]
        %v3423 = vld [vmem:[%s3232 + $0x10] sm:$0xf]
        %v3424 = vld [vmem:[%s3232 + $0x14] sm:$0x1]
        %v3425 = vld [vmem:[%s3232 + $0x18] sm:$0xf]
        %v3426 = vld [vmem:[%s3232 + $0x1c] sm:$0xf]
        %v3427 = vld [vmem:[%s3232 + $0x20] sm:$0x1]
        %v3428 = vld [vmem:[%s3232 + $0x24] sm:$0xf]
        %v3429 = vld [vmem:[%s3232 + $0x28] sm:$0xf]
        %v3430 = vld [vmem:[%s3232 + $0x2c] sm:$0x1]
        %v3432 = vshrl.u32 %v3419, 16
        %v3434 = vrot.slane %v3432, 4
        %v3435 = vshll.u32 %v3419, 16
        %v3437 = vrot.slane %v3435, 5
        %v3438 = vor.u32 %v3434, %v3437
        %v3439 = vrot.slane %v3438, 4
        %v3441 = vshll.u32 %v3420, 16
        %v3443 = vrot.slane %v3441, 5
        %v3444 = vsel %vm2737, %v3439, %v3443
        %v3445 = vshrl.u32 %v3420, 16
        %v3447 = vrot.slane %v3445, 4
        %v3448 = vor.u32 %v3447, %v3443
        %v3449 = vrot.slane %v3448, 4
        %v3451 = vshll.u32 %v3421, 16
        %v3453 = vrot.slane %v3451, 5
        %v3454 = vsel %vm2737, %v3449, %v3453
        %v3456 = vshrl.u32 %v3422, 16
        %v3458 = vrot.slane %v3456, 4
        %v3459 = vshll.u32 %v3422, 16
        %v3461 = vrot.slane %v3459, 5
        %v3462 = vor.u32 %v3458, %v3461
        %v3463 = vrot.slane %v3462, 4
        %v3465 = vshll.u32 %v3423, 16
        %v3467 = vrot.slane %v3465, 5
        %v3468 = vsel %vm2737, %v3463, %v3467
        %v3469 = vshrl.u32 %v3423, 16
        %v3471 = vrot.slane %v3469, 4
        %v3472 = vor.u32 %v3471, %v3467
        %v3473 = vrot.slane %v3472, 4
        %v3475 = vshll.u32 %v3424, 16
        %v3477 = vrot.slane %v3475, 5
        %v3478 = vsel %vm2737, %v3473, %v3477
        %v3480 = vshrl.u32 %v3425, 16
        %v3482 = vrot.slane %v3480, 4
        %v3483 = vshll.u32 %v3425, 16
        %v3485 = vrot.slane %v3483, 5
        %v3486 = vor.u32 %v3482, %v3485
        %v3487 = vrot.slane %v3486, 4
        %v3489 = vshll.u32 %v3426, 16
        %v3491 = vrot.slane %v3489, 5
        %v3492 = vsel %vm2737, %v3487, %v3491
        %v3493 = vshrl.u32 %v3426, 16
        %v3495 = vrot.slane %v3493, 4
        %v3496 = vor.u32 %v3495, %v3491
        %v3497 = vrot.slane %v3496, 4
        %v3499 = vshll.u32 %v3427, 16
        %v3501 = vrot.slane %v3499, 5
        %v3502 = vsel %vm2737, %v3497, %v3501
        %v3504 = vshrl.u32 %v3428, 16
        %v3506 = vrot.slane %v3504, 4
        %v3507 = vshll.u32 %v3428, 16
        %v3509 = vrot.slane %v3507, 5
        %v3510 = vor.u32 %v3506, %v3509
        %v3511 = vrot.slane %v3510, 4
        %v3513 = vshll.u32 %v3429, 16
        %v3515 = vrot.slane %v3513, 5
        %v3516 = vsel %vm2737, %v3511, %v3515
        %v3517 = vshrl.u32 %v3429, 16
        %v3519 = vrot.slane %v3517, 4
        %v3520 = vor.u32 %v3519, %v3515
        %v3521 = vrot.slane %v3520, 4
        %v3523 = vshll.u32 %v3430, 16
        %v3525 = vrot.slane %v3523, 5
        %v3526 = vsel %vm2737, %v3521, %v3525
        %s3527 = scalar_lea.vmem [#allocation4], 256
        %v3528 = vld [vmem:[%s3527] sm:$0xf]
        %v3529 = vld [vmem:[%s3527 + $0x4] sm:$0xf]
        %v3530 = vld [vmem:[%s3527 + $0x8] sm:$0xf]
        %v3531 = vld [vmem:[%s3527 + $0xc] sm:$0xf]
        %v3532 = vld [vmem:[%s3527 + $0x10] sm:$0xf]
        %v3533 = vld [vmem:[%s3527 + $0x14] sm:$0xf]
        %v3534 = vld [vmem:[%s3527 + $0x18] sm:$0xf]
        %v3535 = vld [vmem:[%s3527 + $0x1c] sm:$0xf]
        %v3536 = vld [vmem:[%s3527 + $0x20] sm:$0xf]
        %v3537 = vld [vmem:[%s3527 + $0x24] sm:$0xf]
        %v3538 = vld [vmem:[%s3527 + $0x28] sm:$0xf]
        %v3539 = vld [vmem:[%s3527 + $0x2c] sm:$0xf]
        %v3540 = vld [vmem:[%s3527 + $0x30] sm:$0xf]
        %v3541 = vld [vmem:[%s3527 + $0x34] sm:$0xf]
        %v3542 = vld [vmem:[%s3527 + $0x38] sm:$0xf]
        %v3543 = vld [vmem:[%s3527 + $0x3c] sm:$0xf]
        %v3544 = vunpack.c.l.b16 %v3444
        %v3545 = vunpack.c.l.b16 %v3454
        %v3546 = vunpack.c.l.b16 %v3468
        %v3547 = vunpack.c.l.b16 %v3478
        %v3548 = vunpack.c.l.b16 %v3492
        %v3549 = vunpack.c.l.b16 %v3502
        %v3550 = vunpack.c.l.b16 %v3516
        %v3551 = vunpack.c.l.b16 %v3526
        %v3552 = vpack.c.b16 %v3545, %v3544
        %v3553 = vpack.c.b16 %v3547, %v3546
        %v3554 = vpack.c.b16 %v3549, %v3548
        %v3555 = vpack.c.b16 %v3551, %v3550
        %v3576 = vunpack.c.l.b16 %v3528
        %v3577 = vunpack.c.l.b16 %v3529
        %v3578 = vunpack.c.l.b16 %v3530
        %v3579 = vunpack.c.l.b16 %v3531
        %v3580 = vunpack.c.l.b16 %v3532
        %v3581 = vunpack.c.l.b16 %v3533
        %v3582 = vunpack.c.l.b16 %v3534
        %v3583 = vunpack.c.l.b16 %v3535
        %v3584 = vunpack.c.l.b16 %v3536
        %v3585 = vunpack.c.l.b16 %v3537
        %v3586 = vunpack.c.l.b16 %v3538
        %v3587 = vunpack.c.l.b16 %v3539
        %v3588 = vunpack.c.l.b16 %v3540
        %v3589 = vunpack.c.l.b16 %v3541
        %v3590 = vunpack.c.l.b16 %v3542
        %v3591 = vunpack.c.l.b16 %v3543
        %v3592 = vpack.c.b16 %v3577, %v3576
        %v3593 = vpack.c.b16 %v3579, %v3578
        %v3594 = vpack.c.b16 %v3581, %v3580
        %v3595 = vpack.c.b16 %v3583, %v3582
        %v3596 = vpack.c.b16 %v3585, %v3584
        %v3597 = vpack.c.b16 %v3587, %v3586
        %v3598 = vpack.c.b16 %v3589, %v3588
        %v3599 = vpack.c.b16 %v3591, %v3590
        %3608 = vmatprep.subr.bf16.mxu0 0
        %3609 = vmatpush1.bf16.msra.mxu0 %v3592
        %3610 = vmatprep.subr.bf16.mxu0 0
        %3611 = vmatpush1.bf16.msra.mxu0 %v3593
        %3612 = vmatprep.subr.bf16.mxu0 0
        %3613 = vmatpush1.bf16.msra.mxu0 %v3594
        %3614 = vmatprep.subr.bf16.mxu0 0
        %3615 = vmatpush1.bf16.msra.mxu0 %v3595
        %3616 = vmatprep.subr.bf16.mxu0 0
        %3617 = vmatpush1.bf16.msra.mxu0 %v3596
        %3618 = vmatprep.subr.bf16.mxu0 0
        %3619 = vmatpush1.bf16.msra.mxu0 %v3597
        %3620 = vmatprep.subr.bf16.mxu0 0
        %3621 = vmatpush1.bf16.msra.mxu0 %v3598
        %3622 = vmatprep.subr.bf16.mxu0 0
        %3623 = vmatpush1.bf16.msra.mxu0 %v3599
        %3624 = vmatprep.subr.bf16.mxu0 0
        %3625 = vmatpush1.bf16.msra.mxu0 0
        %3626 = vmatprep.subr.bf16.mxu0 0
        %3627 = vmatpush1.bf16.msra.mxu0 0
        %3628 = vmatprep.subr.bf16.mxu0 0
        %3629 = vmatpush1.bf16.msra.mxu0 0
        %3630 = vmatprep.subr.bf16.mxu0 0
        %3631 = vmatpush1.bf16.msra.mxu0 0
        %3632 = vmatprep.subr.bf16.mxu0 0
        %3633 = vmatpush1.bf16.msra.mxu0 0
        %3634 = vmatprep.subr.bf16.mxu0 0
        %3635 = vmatpush1.bf16.msra.mxu0 0
        %3636 = vmatprep.subr.bf16.mxu0 0
        %3637 = vmatpush1.bf16.msra.mxu0 0
        %3638 = vmatprep.subr.bf16.mxu0 0
        %3639 = vmatpush1.bf16.msra.mxu0 0
        %3640 = vmatprep.mubr.bf16.mxu0 0
        %3641 = vmatmul.mubr.bf16.gmra.mrb[0].mxu0 %v3552
        %v3642 = vpop.f32.mrb[0].mxu0
        %v3643 = vadd.f32 0.0, %v3642
        %v3644 = vpop.f32.mrb[0].mxu0
        %v3645 = vpop.f32.mrb[0].mxu0
        %v3646 = vadd.f32 0.0, %v3645
        %v3647 = vpop.f32.mrb[0].mxu0
        %3648 = vmatprep.mubr.bf16.mxu0 0
        %3649 = vmatmul.mubr.bf16.gmra.mrb[0].mxu0 %v3553
        %v3650 = vpop.f32.mrb[0].mxu0
        %v3651 = vadd.f32 0.0, %v3650
        %v3652 = vpop.f32.mrb[0].mxu0
        %v3653 = vpop.f32.mrb[0].mxu0
        %v3654 = vadd.f32 0.0, %v3653
        %v3655 = vpop.f32.mrb[0].mxu0
        %3656 = vmatprep.mubr.bf16.mxu0 0
        %3657 = vmatmul.mubr.bf16.gmra.mrb[0].mxu0 %v3554
        %v3658 = vpop.f32.mrb[0].mxu0
        %v3659 = vadd.f32 0.0, %v3658
        %v3660 = vpop.f32.mrb[0].mxu0
        %v3661 = vpop.f32.mrb[0].mxu0
        %v3662 = vadd.f32 0.0, %v3661
        %v3663 = vpop.f32.mrb[0].mxu0
        %3664 = vmatprep.mubr.bf16.mxu0 0
        %3665 = vmatmul.mubr.bf16.gmra.mrb[0].mxu0 %v3555
        %v3666 = vpop.f32.mrb[0].mxu0
        %v3667 = vadd.f32 0.0, %v3666
        %v3668 = vpop.f32.mrb[0].mxu0
        %v3669 = vpop.f32.mrb[0].mxu0
        %v3670 = vadd.f32 0.0, %v3669
        %v3671 = vpop.f32.mrb[0].mxu0
        %3672 = vdwg.mxu0
        %v3673 = vld [vmem:[#allocation2] sm:$0xff]
        %v3674 = vld [vmem:[#allocation2 + $0x8] sm:$0xff]
        %v3675 = vld [vmem:[#allocation2 + $0x10] sm:$0xff]
        %v3676 = vld [vmem:[#allocation2 + $0x18] sm:$0xff]
        %v3677 = vld [vmem:[#allocation2 + $0x20] sm:$0xff]
        %v3678 = vld [vmem:[#allocation2 + $0x28] sm:$0xff]
        %v3679 = vld [vmem:[#allocation2 + $0x30] sm:$0xff]
        %v3680 = vld [vmem:[#allocation2 + $0x38] sm:$0xff]
        %v3681 = vadd.f32 %v3673, %v3643
        %v3682 = vadd.f32 %v3674, %v3646
        %v3683 = vadd.f32 %v3675, %v3651
        %v3684 = vadd.f32 %v3676, %v3654
        %v3685 = vadd.f32 %v3677, %v3659
        %v3686 = vadd.f32 %v3678, %v3662
        %v3687 = vadd.f32 %v3679, %v3667
        %v3688 = vadd.f32 %v3680, %v3670
        %3689 = vst [vmem:[#allocation2] sm:$0xff] %v3681
        %3690 = vst [vmem:[#allocation2 + $0x8] sm:$0xff] %v3682
        %3691 = vst [vmem:[#allocation2 + $0x10] sm:$0xff] %v3683
        %3692 = vst [vmem:[#allocation2 + $0x18] sm:$0xff] %v3684
        %3693 = vst [vmem:[#allocation2 + $0x20] sm:$0xff] %v3685
        %3694 = vst [vmem:[#allocation2 + $0x28] sm:$0xff] %v3686
        %3695 = vst [vmem:[#allocation2 + $0x30] sm:$0xff] %v3687
        %3696 = vst [vmem:[#allocation2 + $0x38] sm:$0xff] %v3688
        %v3697 = vld [vmem:[%s3232] sm:$0xe]
        %v3698 = vld [vmem:[%s3232 + $0x4] sm:$0xf]
        %v3699 = vld [vmem:[%s3232 + $0x8] sm:$0x1]
        %v3700 = vld [vmem:[%s3232 + $0xc] sm:$0xe]
        %v3701 = vld [vmem:[%s3232 + $0x10] sm:$0xf]
        %v3702 = vld [vmem:[%s3232 + $0x14] sm:$0x1]
        %v3703 = vld [vmem:[%s3232 + $0x18] sm:$0xe]
        %v3704 = vld [vmem:[%s3232 + $0x1c] sm:$0xf]
        %v3705 = vld [vmem:[%s3232 + $0x20] sm:$0x1]
        %v3706 = vld [vmem:[%s3232 + $0x24] sm:$0xe]
        %v3707 = vld [vmem:[%s3232 + $0x28] sm:$0xf]
        %v3708 = vld [vmem:[%s3232 + $0x2c] sm:$0x1]
        %v3721 = vrot.slane %v3697, 5
        %v3722 = vrot.slane %v3721, 4
        %v3723 = vrot.slane %v3698, 5
        %v3724 = vsel %vm3030, %v3722, %v3723
        %v3725 = vrot.slane %v3723, 4
        %v3726 = vrot.slane %v3699, 5
        %v3727 = vsel %vm3030, %v3725, %v3726
        %v3728 = vrot.slane %v3700, 5
        %v3729 = vrot.slane %v3728, 4
        %v3730 = vrot.slane %v3701, 5
        %v3731 = vsel %vm3030, %v3729, %v3730
        %v3732 = vrot.slane %v3730, 4
        %v3733 = vrot.slane %v3702, 5
        %v3734 = vsel %vm3030, %v3732, %v3733
        %v3735 = vrot.slane %v3703, 5
        %v3736 = vrot.slane %v3735, 4
        %v3737 = vrot.slane %v3704, 5
        %v3738 = vsel %vm3030, %v3736, %v3737
        %v3739 = vrot.slane %v3737, 4
        %v3740 = vrot.slane %v3705, 5
        %v3741 = vsel %vm3030, %v3739, %v3740
        %v3742 = vrot.slane %v3706, 5
        %v3743 = vrot.slane %v3742, 4
        %v3744 = vrot.slane %v3707, 5
        %v3745 = vsel %vm3030, %v3743, %v3744
        %v3746 = vrot.slane %v3744, 4
        %v3747 = vrot.slane %v3708, 5
        %v3748 = vsel %vm3030, %v3746, %v3747
        %s3749 = scalar_lea.vmem [#allocation4], 320
        %v3750 = vld [vmem:[%s3749] sm:$0xf]
        %v3751 = vld [vmem:[%s3749 + $0x4] sm:$0xf]
        %v3752 = vld [vmem:[%s3749 + $0x8] sm:$0xf]
        %v3753 = vld [vmem:[%s3749 + $0xc] sm:$0xf]
        %v3754 = vld [vmem:[%s3749 + $0x10] sm:$0xf]
        %v3755 = vld [vmem:[%s3749 + $0x14] sm:$0xf]
        %v3756 = vld [vmem:[%s3749 + $0x18] sm:$0xf]
        %v3757 = vld [vmem:[%s3749 + $0x1c] sm:$0xf]
        %v3758 = vld [vmem:[%s3749 + $0x20] sm:$0xf]
        %v3759 = vld [vmem:[%s3749 + $0x24] sm:$0xf]
        %v3760 = vld [vmem:[%s3749 + $0x28] sm:$0xf]
        %v3761 = vld [vmem:[%s3749 + $0x2c] sm:$0xf]
        %v3762 = vld [vmem:[%s3749 + $0x30] sm:$0xf]
        %v3763 = vld [vmem:[%s3749 + $0x34] sm:$0xf]
        %v3764 = vld [vmem:[%s3749 + $0x38] sm:$0xf]
        %v3765 = vld [vmem:[%s3749 + $0x3c] sm:$0xf]
        %v3766 = vunpack.c.l.b16 %v3724
        %v3767 = vunpack.c.l.b16 %v3727
        %v3768 = vunpack.c.l.b16 %v3731
        %v3769 = vunpack.c.l.b16 %v3734
        %v3770 = vunpack.c.l.b16 %v3738
        %v3771 = vunpack.c.l.b16 %v3741
        %v3772 = vunpack.c.l.b16 %v3745
        %v3773 = vunpack.c.l.b16 %v3748
        %v3774 = vpack.c.b16 %v3767, %v3766
        %v3775 = vpack.c.b16 %v3769, %v3768
        %v3776 = vpack.c.b16 %v3771, %v3770
        %v3777 = vpack.c.b16 %v3773, %v3772
        %v3798 = vunpack.c.l.b16 %v3750
        %v3799 = vunpack.c.l.b16 %v3751
        %v3800 = vunpack.c.l.b16 %v3752
        %v3801 = vunpack.c.l.b16 %v3753
        %v3802 = vunpack.c.l.b16 %v3754
        %v3803 = vunpack.c.l.b16 %v3755
        %v3804 = vunpack.c.l.b16 %v3756
        %v3805 = vunpack.c.l.b16 %v3757
        %v3806 = vunpack.c.l.b16 %v3758
        %v3807 = vunpack.c.l.b16 %v3759
        %v3808 = vunpack.c.l.b16 %v3760
        %v3809 = vunpack.c.l.b16 %v3761
        %v3810 = vunpack.c.l.b16 %v3762
        %v3811 = vunpack.c.l.b16 %v3763
        %v3812 = vunpack.c.l.b16 %v3764
        %v3813 = vunpack.c.l.b16 %v3765
        %v3814 = vpack.c.b16 %v3799, %v3798
        %v3815 = vpack.c.b16 %v3801, %v3800
        %v3816 = vpack.c.b16 %v3803, %v3802
        %v3817 = vpack.c.b16 %v3805, %v3804
        %v3818 = vpack.c.b16 %v3807, %v3806
        %v3819 = vpack.c.b16 %v3809, %v3808
        %v3820 = vpack.c.b16 %v3811, %v3810
        %v3821 = vpack.c.b16 %v3813, %v3812
        %3830 = vmatprep.subr.bf16.mxu0 0
        %3831 = vmatpush1.bf16.msra.mxu0 %v3814
        %3832 = vmatprep.subr.bf16.mxu0 0
        %3833 = vmatpush1.bf16.msra.mxu0 %v3815
        %3834 = vmatprep.subr.bf16.mxu0 0
        %3835 = vmatpush1.bf16.msra.mxu0 %v3816
        %3836 = vmatprep.subr.bf16.mxu0 0
        %3837 = vmatpush1.bf16.msra.mxu0 %v3817
        %3838 = vmatprep.subr.bf16.mxu0 0
        %3839 = vmatpush1.bf16.msra.mxu0 %v3818
        %3840 = vmatprep.subr.bf16.mxu0 0
        %3841 = vmatpush1.bf16.msra.mxu0 %v3819
        %3842 = vmatprep.subr.bf16.mxu0 0
        %3843 = vmatpush1.bf16.msra.mxu0 %v3820
        %3844 = vmatprep.subr.bf16.mxu0 0
        %3845 = vmatpush1.bf16.msra.mxu0 %v3821
        %3846 = vmatprep.subr.bf16.mxu0 0
        %3847 = vmatpush1.bf16.msra.mxu0 0
        %3848 = vmatprep.subr.bf16.mxu0 0
        %3849 = vmatpush1.bf16.msra.mxu0 0
        %3850 = vmatprep.subr.bf16.mxu0 0
        %3851 = vmatpush1.bf16.msra.mxu0 0
        %3852 = vmatprep.subr.bf16.mxu0 0
        %3853 = vmatpush1.bf16.msra.mxu0 0
        %3854 = vmatprep.subr.bf16.mxu0 0
        %3855 = vmatpush1.bf16.msra.mxu0 0
        %3856 = vmatprep.subr.bf16.mxu0 0
        %3857 = vmatpush1.bf16.msra.mxu0 0
        %3858 = vmatprep.subr.bf16.mxu0 0
        %3859 = vmatpush1.bf16.msra.mxu0 0
        %3860 = vmatprep.subr.bf16.mxu0 0
        %3861 = vmatpush1.bf16.msra.mxu0 0
        %3862 = vmatprep.mubr.bf16.mxu0 0
        %3863 = vmatmul.mubr.bf16.gmra.mrb[0].mxu0 %v3774
        %v3864 = vpop.f32.mrb[0].mxu0
        %v3865 = vadd.f32 0.0, %v3864
        %v3866 = vpop.f32.mrb[0].mxu0
        %v3867 = vpop.f32.mrb[0].mxu0
        %v3868 = vadd.f32 0.0, %v3867
        %v3869 = vpop.f32.mrb[0].mxu0
        %3870 = vmatprep.mubr.bf16.mxu0 0
        %3871 = vmatmul.mubr.bf16.gmra.mrb[0].mxu0 %v3775
        %v3872 = vpop.f32.mrb[0].mxu0
        %v3873 = vadd.f32 0.0, %v3872
        %v3874 = vpop.f32.mrb[0].mxu0
        %v3875 = vpop.f32.mrb[0].mxu0
        %v3876 = vadd.f32 0.0, %v3875
        %v3877 = vpop.f32.mrb[0].mxu0
        %3878 = vmatprep.mubr.bf16.mxu0 0
        %3879 = vmatmul.mubr.bf16.gmra.mrb[0].mxu0 %v3776
        %v3880 = vpop.f32.mrb[0].mxu0
        %v3881 = vadd.f32 0.0, %v3880
        %v3882 = vpop.f32.mrb[0].mxu0
        %v3883 = vpop.f32.mrb[0].mxu0
        %v3884 = vadd.f32 0.0, %v3883
        %v3885 = vpop.f32.mrb[0].mxu0
        %3886 = vmatprep.mubr.bf16.mxu0 0
        %3887 = vmatmul.mubr.bf16.gmra.mrb[0].mxu0 %v3777
        %v3888 = vpop.f32.mrb[0].mxu0
        %v3889 = vadd.f32 0.0, %v3888
        %v3890 = vpop.f32.mrb[0].mxu0
        %v3891 = vpop.f32.mrb[0].mxu0
        %v3892 = vadd.f32 0.0, %v3891
        %v3893 = vpop.f32.mrb[0].mxu0
        %3894 = vdwg.mxu0
        %v3895 = vld [vmem:[#allocation2] sm:$0xff]
        %v3896 = vld [vmem:[#allocation2 + $0x8] sm:$0xff]
        %v3897 = vld [vmem:[#allocation2 + $0x10] sm:$0xff]
        %v3898 = vld [vmem:[#allocation2 + $0x18] sm:$0xff]
        %v3899 = vld [vmem:[#allocation2 + $0x20] sm:$0xff]
        %v3900 = vld [vmem:[#allocation2 + $0x28] sm:$0xff]
        %v3901 = vld [vmem:[#allocation2 + $0x30] sm:$0xff]
        %v3902 = vld [vmem:[#allocation2 + $0x38] sm:$0xff]
        %v3903 = vadd.f32 %v3895, %v3865
        %v3904 = vadd.f32 %v3896, %v3868
        %v3905 = vadd.f32 %v3897, %v3873
        %v3906 = vadd.f32 %v3898, %v3876
        %v3907 = vadd.f32 %v3899, %v3881
        %v3908 = vadd.f32 %v3900, %v3884
        %v3909 = vadd.f32 %v3901, %v3889
        %v3910 = vadd.f32 %v3902, %v3892
        %3911 = vst [vmem:[#allocation2] sm:$0xff] %v3903
        %3912 = vst [vmem:[#allocation2 + $0x8] sm:$0xff] %v3904
        %3913 = vst [vmem:[#allocation2 + $0x10] sm:$0xff] %v3905
        %3914 = vst [vmem:[#allocation2 + $0x18] sm:$0xff] %v3906
        %3915 = vst [vmem:[#allocation2 + $0x20] sm:$0xff] %v3907
        %3916 = vst [vmem:[#allocation2 + $0x28] sm:$0xff] %v3908
        %3917 = vst [vmem:[#allocation2 + $0x30] sm:$0xff] %v3909
        %3918 = vst [vmem:[#allocation2 + $0x38] sm:$0xff] %v3910
        %s3919 = sadd.s32 %s2550, 2
        %s3920 = smul.u32 %s3919, 3
        %s3921 = smul.addr %s3920, 4
        %s3922 = scalar_lea.vmem [#allocation3], %s3921
        %v3923 = vld [vmem:[%s3922] sm:$0xf]
        %v3924 = vld [vmem:[%s3922 + $0x4] sm:$0xf]
        %v3925 = vld [vmem:[%s3922 + $0xc] sm:$0xf]
        %v3926 = vld [vmem:[%s3922 + $0x10] sm:$0xf]
        %v3927 = vld [vmem:[%s3922 + $0x18] sm:$0xf]
        %v3928 = vld [vmem:[%s3922 + $0x1c] sm:$0xf]
        %v3929 = vld [vmem:[%s3922 + $0x24] sm:$0xf]
        %v3930 = vld [vmem:[%s3922 + $0x28] sm:$0xf]
        %s3931 = scalar_lea.vmem [#allocation4], 384
        %v3932 = vld [vmem:[%s3931] sm:$0xf]
        %v3933 = vld [vmem:[%s3931 + $0x4] sm:$0xf]
        %v3934 = vld [vmem:[%s3931 + $0x8] sm:$0xf]
        %v3935 = vld [vmem:[%s3931 + $0xc] sm:$0xf]
        %v3936 = vld [vmem:[%s3931 + $0x10] sm:$0xf]
        %v3937 = vld [vmem:[%s3931 + $0x14] sm:$0xf]
        %v3938 = vld [vmem:[%s3931 + $0x18] sm:$0xf]
        %v3939 = vld [vmem:[%s3931 + $0x1c] sm:$0xf]
        %v3940 = vld [vmem:[%s3931 + $0x20] sm:$0xf]
        %v3941 = vld [vmem:[%s3931 + $0x24] sm:$0xf]
        %v3942 = vld [vmem:[%s3931 + $0x28] sm:$0xf]
        %v3943 = vld [vmem:[%s3931 + $0x2c] sm:$0xf]
        %v3944 = vld [vmem:[%s3931 + $0x30] sm:$0xf]
        %v3945 = vld [vmem:[%s3931 + $0x34] sm:$0xf]
        %v3946 = vld [vmem:[%s3931 + $0x38] sm:$0xf]
        %v3947 = vld [vmem:[%s3931 + $0x3c] sm:$0xf]
        %v3956 = vunpack.c.l.b16 %v3923
        %v3957 = vunpack.c.l.b16 %v3924
        %v3958 = vunpack.c.l.b16 %v3925
        %v3959 = vunpack.c.l.b16 %v3926
        %v3960 = vunpack.c.l.b16 %v3927
        %v3961 = vunpack.c.l.b16 %v3928
        %v3962 = vunpack.c.l.b16 %v3929
        %v3963 = vunpack.c.l.b16 %v3930
        %v3964 = vpack.c.b16 %v3957, %v3956
        %v3965 = vpack.c.b16 %v3959, %v3958
        %v3966 = vpack.c.b16 %v3961, %v3960
        %v3967 = vpack.c.b16 %v3963, %v3962
        %v3988 = vunpack.c.l.b16 %v3932
        %v3989 = vunpack.c.l.b16 %v3933
        %v3990 = vunpack.c.l.b16 %v3934
        %v3991 = vunpack.c.l.b16 %v3935
        %v3992 = vunpack.c.l.b16 %v3936
        %v3993 = vunpack.c.l.b16 %v3937
        %v3994 = vunpack.c.l.b16 %v3938
        %v3995 = vunpack.c.l.b16 %v3939
        %v3996 = vunpack.c.l.b16 %v3940
        %v3997 = vunpack.c.l.b16 %v3941
        %v3998 = vunpack.c.l.b16 %v3942
        %v3999 = vunpack.c.l.b16 %v3943
        %v4000 = vunpack.c.l.b16 %v3944
        %v4001 = vunpack.c.l.b16 %v3945
        %v4002 = vunpack.c.l.b16 %v3946
        %v4003 = vunpack.c.l.b16 %v3947
        %v4004 = vpack.c.b16 %v3989, %v3988
        %v4005 = vpack.c.b16 %v3991, %v3990
        %v4006 = vpack.c.b16 %v3993, %v3992
        %v4007 = vpack.c.b16 %v3995, %v3994
        %v4008 = vpack.c.b16 %v3997, %v3996
        %v4009 = vpack.c.b16 %v3999, %v3998
        %v4010 = vpack.c.b16 %v4001, %v4000
        %v4011 = vpack.c.b16 %v4003, %v4002
        %4020 = vmatprep.subr.bf16.mxu0 0
        %4021 = vmatpush1.bf16.msra.mxu0 %v4004
        %4022 = vmatprep.subr.bf16.mxu0 0
        %4023 = vmatpush1.bf16.msra.mxu0 %v4005
        %4024 = vmatprep.subr.bf16.mxu0 0
        %4025 = vmatpush1.bf16.msra.mxu0 %v4006
        %4026 = vmatprep.subr.bf16.mxu0 0
        %4027 = vmatpush1.bf16.msra.mxu0 %v4007
        %4028 = vmatprep.subr.bf16.mxu0 0
        %4029 = vmatpush1.bf16.msra.mxu0 %v4008
        %4030 = vmatprep.subr.bf16.mxu0 0
        %4031 = vmatpush1.bf16.msra.mxu0 %v4009
        %4032 = vmatprep.subr.bf16.mxu0 0
        %4033 = vmatpush1.bf16.msra.mxu0 %v4010
        %4034 = vmatprep.subr.bf16.mxu0 0
        %4035 = vmatpush1.bf16.msra.mxu0 %v4011
        %4036 = vmatprep.subr.bf16.mxu0 0
        %4037 = vmatpush1.bf16.msra.mxu0 0
        %4038 = vmatprep.subr.bf16.mxu0 0
        %4039 = vmatpush1.bf16.msra.mxu0 0
        %4040 = vmatprep.subr.bf16.mxu0 0
        %4041 = vmatpush1.bf16.msra.mxu0 0
        %4042 = vmatprep.subr.bf16.mxu0 0
        %4043 = vmatpush1.bf16.msra.mxu0 0
        %4044 = vmatprep.subr.bf16.mxu0 0
        %4045 = vmatpush1.bf16.msra.mxu0 0
        %4046 = vmatprep.subr.bf16.mxu0 0
        %4047 = vmatpush1.bf16.msra.mxu0 0
        %4048 = vmatprep.subr.bf16.mxu0 0
        %4049 = vmatpush1.bf16.msra.mxu0 0
        %4050 = vmatprep.subr.bf16.mxu0 0
        %4051 = vmatpush1.bf16.msra.mxu0 0
        %4052 = vmatprep.mubr.bf16.mxu0 0
        %4053 = vmatmul.mubr.bf16.gmra.mrb[0].mxu0 %v3964
        %v4054 = vpop.f32.mrb[0].mxu0
        %v4055 = vadd.f32 0.0, %v4054
        %v4056 = vpop.f32.mrb[0].mxu0
        %v4057 = vpop.f32.mrb[0].mxu0
        %v4058 = vadd.f32 0.0, %v4057
        %v4059 = vpop.f32.mrb[0].mxu0
        %4060 = vmatprep.mubr.bf16.mxu0 0
        %4061 = vmatmul.mubr.bf16.gmra.mrb[0].mxu0 %v3965
        %v4062 = vpop.f32.mrb[0].mxu0
        %v4063 = vadd.f32 0.0, %v4062
        %v4064 = vpop.f32.mrb[0].mxu0
        %v4065 = vpop.f32.mrb[0].mxu0
        %v4066 = vadd.f32 0.0, %v4065
        %v4067 = vpop.f32.mrb[0].mxu0
        %4068 = vmatprep.mubr.bf16.mxu0 0
        %4069 = vmatmul.mubr.bf16.gmra.mrb[0].mxu0 %v3966
        %v4070 = vpop.f32.mrb[0].mxu0
        %v4071 = vadd.f32 0.0, %v4070
        %v4072 = vpop.f32.mrb[0].mxu0
        %v4073 = vpop.f32.mrb[0].mxu0
        %v4074 = vadd.f32 0.0, %v4073
        %v4075 = vpop.f32.mrb[0].mxu0
        %4076 = vmatprep.mubr.bf16.mxu0 0
        %4077 = vmatmul.mubr.bf16.gmra.mrb[0].mxu0 %v3967
        %v4078 = vpop.f32.mrb[0].mxu0
        %v4079 = vadd.f32 0.0, %v4078
        %v4080 = vpop.f32.mrb[0].mxu0
        %v4081 = vpop.f32.mrb[0].mxu0
        %v4082 = vadd.f32 0.0, %v4081
        %v4083 = vpop.f32.mrb[0].mxu0
        %4084 = vdwg.mxu0
        %v4085 = vld [vmem:[#allocation2] sm:$0xff]
        %v4086 = vld [vmem:[#allocation2 + $0x8] sm:$0xff]
        %v4087 = vld [vmem:[#allocation2 + $0x10] sm:$0xff]
        %v4088 = vld [vmem:[#allocation2 + $0x18] sm:$0xff]
        %v4089 = vld [vmem:[#allocation2 + $0x20] sm:$0xff]
        %v4090 = vld [vmem:[#allocation2 + $0x28] sm:$0xff]
        %v4091 = vld [vmem:[#allocation2 + $0x30] sm:$0xff]
        %v4092 = vld [vmem:[#allocation2 + $0x38] sm:$0xff]
        %v4093 = vadd.f32 %v4085, %v4055
        %v4094 = vadd.f32 %v4086, %v4058
        %v4095 = vadd.f32 %v4087, %v4063
        %v4096 = vadd.f32 %v4088, %v4066
        %v4097 = vadd.f32 %v4089, %v4071
        %v4098 = vadd.f32 %v4090, %v4074
        %v4099 = vadd.f32 %v4091, %v4079
        %v4100 = vadd.f32 %v4092, %v4082
        %4101 = vst [vmem:[#allocation2] sm:$0xff] %v4093
        %4102 = vst [vmem:[#allocation2 + $0x8] sm:$0xff] %v4094
        %4103 = vst [vmem:[#allocation2 + $0x10] sm:$0xff] %v4095
        %4104 = vst [vmem:[#allocation2 + $0x18] sm:$0xff] %v4096
        %4105 = vst [vmem:[#allocation2 + $0x20] sm:$0xff] %v4097
        %4106 = vst [vmem:[#allocation2 + $0x28] sm:$0xff] %v4098
        %4107 = vst [vmem:[#allocation2 + $0x30] sm:$0xff] %v4099
        %4108 = vst [vmem:[#allocation2 + $0x38] sm:$0xff] %v4100
        %v4109 = vld [vmem:[%s3922] sm:$0xf]
        %v4110 = vld [vmem:[%s3922 + $0x4] sm:$0xf]
        %v4111 = vld [vmem:[%s3922 + $0x8] sm:$0x1]
        %v4112 = vld [vmem:[%s3922 + $0xc] sm:$0xf]
        %v4113 = vld [vmem:[%s3922 + $0x10] sm:$0xf]
        %v4114 = vld [vmem:[%s3922 + $0x14] sm:$0x1]
        %v4115 = vld [vmem:[%s3922 + $0x18] sm:$0xf]
        %v4116 = vld [vmem:[%s3922 + $0x1c] sm:$0xf]
        %v4117 = vld [vmem:[%s3922 + $0x20] sm:$0x1]
        %v4118 = vld [vmem:[%s3922 + $0x24] sm:$0xf]
        %v4119 = vld [vmem:[%s3922 + $0x28] sm:$0xf]
        %v4120 = vld [vmem:[%s3922 + $0x2c] sm:$0x1]
        %v4122 = vshrl.u32 %v4109, 16
        %v4124 = vrot.slane %v4122, 4
        %v4125 = vshll.u32 %v4109, 16
        %v4127 = vrot.slane %v4125, 5
        %v4128 = vor.u32 %v4124, %v4127
        %v4129 = vrot.slane %v4128, 4
        %v4131 = vshll.u32 %v4110, 16
        %v4133 = vrot.slane %v4131, 5
        %v4134 = vsel %vm2737, %v4129, %v4133
        %v4135 = vshrl.u32 %v4110, 16
        %v4137 = vrot.slane %v4135, 4
        %v4138 = vor.u32 %v4137, %v4133
        %v4139 = vrot.slane %v4138, 4
        %v4141 = vshll.u32 %v4111, 16
        %v4143 = vrot.slane %v4141, 5
        %v4144 = vsel %vm2737, %v4139, %v4143
        %v4146 = vshrl.u32 %v4112, 16
        %v4148 = vrot.slane %v4146, 4
        %v4149 = vshll.u32 %v4112, 16
        %v4151 = vrot.slane %v4149, 5
        %v4152 = vor.u32 %v4148, %v4151
        %v4153 = vrot.slane %v4152, 4
        %v4155 = vshll.u32 %v4113, 16
        %v4157 = vrot.slane %v4155, 5
        %v4158 = vsel %vm2737, %v4153, %v4157
        %v4159 = vshrl.u32 %v4113, 16
        %v4161 = vrot.slane %v4159, 4
        %v4162 = vor.u32 %v4161, %v4157
        %v4163 = vrot.slane %v4162, 4
        %v4165 = vshll.u32 %v4114, 16
        %v4167 = vrot.slane %v4165, 5
        %v4168 = vsel %vm2737, %v4163, %v4167
        %v4170 = vshrl.u32 %v4115, 16
        %v4172 = vrot.slane %v4170, 4
        %v4173 = vshll.u32 %v4115, 16
        %v4175 = vrot.slane %v4173, 5
        %v4176 = vor.u32 %v4172, %v4175
        %v4177 = vrot.slane %v4176, 4
        %v4179 = vshll.u32 %v4116, 16
        %v4181 = vrot.slane %v4179, 5
        %v4182 = vsel %vm2737, %v4177, %v4181
        %v4183 = vshrl.u32 %v4116, 16
        %v4185 = vrot.slane %v4183, 4
        %v4186 = vor.u32 %v4185, %v4181
        %v4187 = vrot.slane %v4186, 4
        %v4189 = vshll.u32 %v4117, 16
        %v4191 = vrot.slane %v4189, 5
        %v4192 = vsel %vm2737, %v4187, %v4191
        %v4194 = vshrl.u32 %v4118, 16
        %v4196 = vrot.slane %v4194, 4
        %v4197 = vshll.u32 %v4118, 16
        %v4199 = vrot.slane %v4197, 5
        %v4200 = vor.u32 %v4196, %v4199
        %v4201 = vrot.slane %v4200, 4
        %v4203 = vshll.u32 %v4119, 16
        %v4205 = vrot.slane %v4203, 5
        %v4206 = vsel %vm2737, %v4201, %v4205
        %v4207 = vshrl.u32 %v4119, 16
        %v4209 = vrot.slane %v4207, 4
        %v4210 = vor.u32 %v4209, %v4205
        %v4211 = vrot.slane %v4210, 4
        %v4213 = vshll.u32 %v4120, 16
        %v4215 = vrot.slane %v4213, 5
        %v4216 = vsel %vm2737, %v4211, %v4215
        %s4217 = scalar_lea.vmem [#allocation4], 448
        %v4218 = vld [vmem:[%s4217] sm:$0xf]
        %v4219 = vld [vmem:[%s4217 + $0x4] sm:$0xf]
        %v4220 = vld [vmem:[%s4217 + $0x8] sm:$0xf]
        %v4221 = vld [vmem:[%s4217 + $0xc] sm:$0xf]
        %v4222 = vld [vmem:[%s4217 + $0x10] sm:$0xf]
        %v4223 = vld [vmem:[%s4217 + $0x14] sm:$0xf]
        %v4224 = vld [vmem:[%s4217 + $0x18] sm:$0xf]
        %v4225 = vld [vmem:[%s4217 + $0x1c] sm:$0xf]
        %v4226 = vld [vmem:[%s4217 + $0x20] sm:$0xf]
        %v4227 = vld [vmem:[%s4217 + $0x24] sm:$0xf]
        %v4228 = vld [vmem:[%s4217 + $0x28] sm:$0xf]
        %v4229 = vld [vmem:[%s4217 + $0x2c] sm:$0xf]
        %v4230 = vld [vmem:[%s4217 + $0x30] sm:$0xf]
        %v4231 = vld [vmem:[%s4217 + $0x34] sm:$0xf]
        %v4232 = vld [vmem:[%s4217 + $0x38] sm:$0xf]
        %v4233 = vld [vmem:[%s4217 + $0x3c] sm:$0xf]
        %v4234 = vunpack.c.l.b16 %v4134
        %v4235 = vunpack.c.l.b16 %v4144
        %v4236 = vunpack.c.l.b16 %v4158
        %v4237 = vunpack.c.l.b16 %v4168
        %v4238 = vunpack.c.l.b16 %v4182
        %v4239 = vunpack.c.l.b16 %v4192
        %v4240 = vunpack.c.l.b16 %v4206
        %v4241 = vunpack.c.l.b16 %v4216
        %v4242 = vpack.c.b16 %v4235, %v4234
        %v4243 = vpack.c.b16 %v4237, %v4236
        %v4244 = vpack.c.b16 %v4239, %v4238
        %v4245 = vpack.c.b16 %v4241, %v4240
        %v4266 = vunpack.c.l.b16 %v4218
        %v4267 = vunpack.c.l.b16 %v4219
        %v4268 = vunpack.c.l.b16 %v4220
        %v4269 = vunpack.c.l.b16 %v4221
        %v4270 = vunpack.c.l.b16 %v4222
        %v4271 = vunpack.c.l.b16 %v4223
        %v4272 = vunpack.c.l.b16 %v4224
        %v4273 = vunpack.c.l.b16 %v4225
        %v4274 = vunpack.c.l.b16 %v4226
        %v4275 = vunpack.c.l.b16 %v4227
        %v4276 = vunpack.c.l.b16 %v4228
        %v4277 = vunpack.c.l.b16 %v4229
        %v4278 = vunpack.c.l.b16 %v4230
        %v4279 = vunpack.c.l.b16 %v4231
        %v4280 = vunpack.c.l.b16 %v4232
        %v4281 = vunpack.c.l.b16 %v4233
        %v4282 = vpack.c.b16 %v4267, %v4266
        %v4283 = vpack.c.b16 %v4269, %v4268
        %v4284 = vpack.c.b16 %v4271, %v4270
        %v4285 = vpack.c.b16 %v4273, %v4272
        %v4286 = vpack.c.b16 %v4275, %v4274
        %v4287 = vpack.c.b16 %v4277, %v4276
        %v4288 = vpack.c.b16 %v4279, %v4278
        %v4289 = vpack.c.b16 %v4281, %v4280
        %4298 = vmatprep.subr.bf16.mxu0 0
        %4299 = vmatpush1.bf16.msra.mxu0 %v4282
        %4300 = vmatprep.subr.bf16.mxu0 0
        %4301 = vmatpush1.bf16.msra.mxu0 %v4283
        %4302 = vmatprep.subr.bf16.mxu0 0
        %4303 = vmatpush1.bf16.msra.mxu0 %v4284
        %4304 = vmatprep.subr.bf16.mxu0 0
        %4305 = vmatpush1.bf16.msra.mxu0 %v4285
        %4306 = vmatprep.subr.bf16.mxu0 0
        %4307 = vmatpush1.bf16.msra.mxu0 %v4286
        %4308 = vmatprep.subr.bf16.mxu0 0
        %4309 = vmatpush1.bf16.msra.mxu0 %v4287
        %4310 = vmatprep.subr.bf16.mxu0 0
        %4311 = vmatpush1.bf16.msra.mxu0 %v4288
        %4312 = vmatprep.subr.bf16.mxu0 0
        %4313 = vmatpush1.bf16.msra.mxu0 %v4289
        %4314 = vmatprep.subr.bf16.mxu0 0
        %4315 = vmatpush1.bf16.msra.mxu0 0
        %4316 = vmatprep.subr.bf16.mxu0 0
        %4317 = vmatpush1.bf16.msra.mxu0 0
        %4318 = vmatprep.subr.bf16.mxu0 0
        %4319 = vmatpush1.bf16.msra.mxu0 0
        %4320 = vmatprep.subr.bf16.mxu0 0
        %4321 = vmatpush1.bf16.msra.mxu0 0
        %4322 = vmatprep.subr.bf16.mxu0 0
        %4323 = vmatpush1.bf16.msra.mxu0 0
        %4324 = vmatprep.subr.bf16.mxu0 0
        %4325 = vmatpush1.bf16.msra.mxu0 0
        %4326 = vmatprep.subr.bf16.mxu0 0
        %4327 = vmatpush1.bf16.msra.mxu0 0
        %4328 = vmatprep.subr.bf16.mxu0 0
        %4329 = vmatpush1.bf16.msra.mxu0 0
        %4330 = vmatprep.mubr.bf16.mxu0 0
        %4331 = vmatmul.mubr.bf16.gmra.mrb[0].mxu0 %v4242
        %v4332 = vpop.f32.mrb[0].mxu0
        %v4333 = vadd.f32 0.0, %v4332
        %v4334 = vpop.f32.mrb[0].mxu0
        %v4335 = vpop.f32.mrb[0].mxu0
        %v4336 = vadd.f32 0.0, %v4335
        %v4337 = vpop.f32.mrb[0].mxu0
        %4338 = vmatprep.mubr.bf16.mxu0 0
        %4339 = vmatmul.mubr.bf16.gmra.mrb[0].mxu0 %v4243
        %v4340 = vpop.f32.mrb[0].mxu0
        %v4341 = vadd.f32 0.0, %v4340
        %v4342 = vpop.f32.mrb[0].mxu0
        %v4343 = vpop.f32.mrb[0].mxu0
        %v4344 = vadd.f32 0.0, %v4343
        %v4345 = vpop.f32.mrb[0].mxu0
        %4346 = vmatprep.mubr.bf16.mxu0 0
        %4347 = vmatmul.mubr.bf16.gmra.mrb[0].mxu0 %v4244
        %v4348 = vpop.f32.mrb[0].mxu0
        %v4349 = vadd.f32 0.0, %v4348
        %v4350 = vpop.f32.mrb[0].mxu0
        %v4351 = vpop.f32.mrb[0].mxu0
        %v4352 = vadd.f32 0.0, %v4351
        %v4353 = vpop.f32.mrb[0].mxu0
        %4354 = vmatprep.mubr.bf16.mxu0 0
        %4355 = vmatmul.mubr.bf16.gmra.mrb[0].mxu0 %v4245
        %v4356 = vpop.f32.mrb[0].mxu0
        %v4357 = vadd.f32 0.0, %v4356
        %v4358 = vpop.f32.mrb[0].mxu0
        %v4359 = vpop.f32.mrb[0].mxu0
        %v4360 = vadd.f32 0.0, %v4359
        %v4361 = vpop.f32.mrb[0].mxu0
        %4362 = vdwg.mxu0
        %v4363 = vld [vmem:[#allocation2] sm:$0xff]
        %v4364 = vld [vmem:[#allocation2 + $0x8] sm:$0xff]
        %v4365 = vld [vmem:[#allocation2 + $0x10] sm:$0xff]
        %v4366 = vld [vmem:[#allocation2 + $0x18] sm:$0xff]
        %v4367 = vld [vmem:[#allocation2 + $0x20] sm:$0xff]
        %v4368 = vld [vmem:[#allocation2 + $0x28] sm:$0xff]
        %v4369 = vld [vmem:[#allocation2 + $0x30] sm:$0xff]
        %v4370 = vld [vmem:[#allocation2 + $0x38] sm:$0xff]
        %v4371 = vadd.f32 %v4363, %v4333
        %v4372 = vadd.f32 %v4364, %v4336
        %v4373 = vadd.f32 %v4365, %v4341
        %v4374 = vadd.f32 %v4366, %v4344
        %v4375 = vadd.f32 %v4367, %v4349
        %v4376 = vadd.f32 %v4368, %v4352
        %v4377 = vadd.f32 %v4369, %v4357
        %v4378 = vadd.f32 %v4370, %v4360
        %4379 = vst [vmem:[#allocation2] sm:$0xff] %v4371
        %4380 = vst [vmem:[#allocation2 + $0x8] sm:$0xff] %v4372
        %4381 = vst [vmem:[#allocation2 + $0x10] sm:$0xff] %v4373
        %4382 = vst [vmem:[#allocation2 + $0x18] sm:$0xff] %v4374
        %4383 = vst [vmem:[#allocation2 + $0x20] sm:$0xff] %v4375
        %4384 = vst [vmem:[#allocation2 + $0x28] sm:$0xff] %v4376
        %4385 = vst [vmem:[#allocation2 + $0x30] sm:$0xff] %v4377
        %4386 = vst [vmem:[#allocation2 + $0x38] sm:$0xff] %v4378
        %v4387 = vld [vmem:[%s3922] sm:$0xe]
        %v4388 = vld [vmem:[%s3922 + $0x4] sm:$0xf]
        %v4389 = vld [vmem:[%s3922 + $0x8] sm:$0x1]
        %v4390 = vld [vmem:[%s3922 + $0xc] sm:$0xe]
        %v4391 = vld [vmem:[%s3922 + $0x10] sm:$0xf]
        %v4392 = vld [vmem:[%s3922 + $0x14] sm:$0x1]
        %v4393 = vld [vmem:[%s3922 + $0x18] sm:$0xe]
        %v4394 = vld [vmem:[%s3922 + $0x1c] sm:$0xf]
        %v4395 = vld [vmem:[%s3922 + $0x20] sm:$0x1]
        %v4396 = vld [vmem:[%s3922 + $0x24] sm:$0xe]
        %v4397 = vld [vmem:[%s3922 + $0x28] sm:$0xf]
        %v4398 = vld [vmem:[%s3922 + $0x2c] sm:$0x1]
        %v4411 = vrot.slane %v4387, 5
        %v4412 = vrot.slane %v4411, 4
        %v4413 = vrot.slane %v4388, 5
        %v4414 = vsel %vm3030, %v4412, %v4413
        %v4415 = vrot.slane %v4413, 4
        %v4416 = vrot.slane %v4389, 5
        %v4417 = vsel %vm3030, %v4415, %v4416
        %v4418 = vrot.slane %v4390, 5
        %v4419 = vrot.slane %v4418, 4
        %v4420 = vrot.slane %v4391, 5
        %v4421 = vsel %vm3030, %v4419, %v4420
        %v4422 = vrot.slane %v4420, 4
        %v4423 = vrot.slane %v4392, 5
        %v4424 = vsel %vm3030, %v4422, %v4423
        %v4425 = vrot.slane %v4393, 5
        %v4426 = vrot.slane %v4425, 4
        %v4427 = vrot.slane %v4394, 5
        %v4428 = vsel %vm3030, %v4426, %v4427
        %v4429 = vrot.slane %v4427, 4
        %v4430 = vrot.slane %v4395, 5
        %v4431 = vsel %vm3030, %v4429, %v4430
        %v4432 = vrot.slane %v4396, 5
        %v4433 = vrot.slane %v4432, 4
        %v4434 = vrot.slane %v4397, 5
        %v4435 = vsel %vm3030, %v4433, %v4434
        %v4436 = vrot.slane %v4434, 4
        %v4437 = vrot.slane %v4398, 5
        %v4438 = vsel %vm3030, %v4436, %v4437
        %s4439 = scalar_lea.vmem [#allocation4], 512
        %v4440 = vld [vmem:[%s4439] sm:$0xf]
        %v4441 = vld [vmem:[%s4439 + $0x4] sm:$0xf]
        %v4442 = vld [vmem:[%s4439 + $0x8] sm:$0xf]
        %v4443 = vld [vmem:[%s4439 + $0xc] sm:$0xf]
        %v4444 = vld [vmem:[%s4439 + $0x10] sm:$0xf]
        %v4445 = vld [vmem:[%s4439 + $0x14] sm:$0xf]
        %v4446 = vld [vmem:[%s4439 + $0x18] sm:$0xf]
        %v4447 = vld [vmem:[%s4439 + $0x1c] sm:$0xf]
        %v4448 = vld [vmem:[%s4439 + $0x20] sm:$0xf]
        %v4449 = vld [vmem:[%s4439 + $0x24] sm:$0xf]
        %v4450 = vld [vmem:[%s4439 + $0x28] sm:$0xf]
        %v4451 = vld [vmem:[%s4439 + $0x2c] sm:$0xf]
        %v4452 = vld [vmem:[%s4439 + $0x30] sm:$0xf]
        %v4453 = vld [vmem:[%s4439 + $0x34] sm:$0xf]
        %v4454 = vld [vmem:[%s4439 + $0x38] sm:$0xf]
        %v4455 = vld [vmem:[%s4439 + $0x3c] sm:$0xf]
        %v4456 = vunpack.c.l.b16 %v4414
        %v4457 = vunpack.c.l.b16 %v4417
        %v4458 = vunpack.c.l.b16 %v4421
        %v4459 = vunpack.c.l.b16 %v4424
        %v4460 = vunpack.c.l.b16 %v4428
        %v4461 = vunpack.c.l.b16 %v4431
        %v4462 = vunpack.c.l.b16 %v4435
        %v4463 = vunpack.c.l.b16 %v4438
        %v4464 = vpack.c.b16 %v4457, %v4456
        %v4465 = vpack.c.b16 %v4459, %v4458
        %v4466 = vpack.c.b16 %v4461, %v4460
        %v4467 = vpack.c.b16 %v4463, %v4462
        %v4488 = vunpack.c.l.b16 %v4440
        %v4489 = vunpack.c.l.b16 %v4441
        %v4490 = vunpack.c.l.b16 %v4442
        %v4491 = vunpack.c.l.b16 %v4443
        %v4492 = vunpack.c.l.b16 %v4444
        %v4493 = vunpack.c.l.b16 %v4445
        %v4494 = vunpack.c.l.b16 %v4446
        %v4495 = vunpack.c.l.b16 %v4447
        %v4496 = vunpack.c.l.b16 %v4448
        %v4497 = vunpack.c.l.b16 %v4449
        %v4498 = vunpack.c.l.b16 %v4450
        %v4499 = vunpack.c.l.b16 %v4451
        %v4500 = vunpack.c.l.b16 %v4452
        %v4501 = vunpack.c.l.b16 %v4453
        %v4502 = vunpack.c.l.b16 %v4454
        %v4503 = vunpack.c.l.b16 %v4455
        %v4504 = vpack.c.b16 %v4489, %v4488
        %v4505 = vpack.c.b16 %v4491, %v4490
        %v4506 = vpack.c.b16 %v4493, %v4492
        %v4507 = vpack.c.b16 %v4495, %v4494
        %v4508 = vpack.c.b16 %v4497, %v4496
        %v4509 = vpack.c.b16 %v4499, %v4498
        %v4510 = vpack.c.b16 %v4501, %v4500
        %v4511 = vpack.c.b16 %v4503, %v4502
        %4520 = vmatprep.subr.bf16.mxu0 0
        %4521 = vmatpush1.bf16.msra.mxu0 %v4504
        %4522 = vmatprep.subr.bf16.mxu0 0
        %4523 = vmatpush1.bf16.msra.mxu0 %v4505
        %4524 = vmatprep.subr.bf16.mxu0 0
        %4525 = vmatpush1.bf16.msra.mxu0 %v4506
        %4526 = vmatprep.subr.bf16.mxu0 0
        %4527 = vmatpush1.bf16.msra.mxu0 %v4507
        %4528 = vmatprep.subr.bf16.mxu0 0
        %4529 = vmatpush1.bf16.msra.mxu0 %v4508
        %4530 = vmatprep.subr.bf16.mxu0 0
        %4531 = vmatpush1.bf16.msra.mxu0 %v4509
        %4532 = vmatprep.subr.bf16.mxu0 0
        %4533 = vmatpush1.bf16.msra.mxu0 %v4510
        %4534 = vmatprep.subr.bf16.mxu0 0
        %4535 = vmatpush1.bf16.msra.mxu0 %v4511
        %4536 = vmatprep.subr.bf16.mxu0 0
        %4537 = vmatpush1.bf16.msra.mxu0 0
        %4538 = vmatprep.subr.bf16.mxu0 0
        %4539 = vmatpush1.bf16.msra.mxu0 0
        %4540 = vmatprep.subr.bf16.mxu0 0
        %4541 = vmatpush1.bf16.msra.mxu0 0
        %4542 = vmatprep.subr.bf16.mxu0 0
        %4543 = vmatpush1.bf16.msra.mxu0 0
        %4544 = vmatprep.subr.bf16.mxu0 0
        %4545 = vmatpush1.bf16.msra.mxu0 0
        %4546 = vmatprep.subr.bf16.mxu0 0
        %4547 = vmatpush1.bf16.msra.mxu0 0
        %4548 = vmatprep.subr.bf16.mxu0 0
        %4549 = vmatpush1.bf16.msra.mxu0 0
        %4550 = vmatprep.subr.bf16.mxu0 0
        %4551 = vmatpush1.bf16.msra.mxu0 0
        %4552 = vmatprep.mubr.bf16.mxu0 0
        %4553 = vmatmul.mubr.bf16.gmra.mrb[0].mxu0 %v4464
        %v4554 = vpop.f32.mrb[0].mxu0
        %v4555 = vadd.f32 0.0, %v4554
        %v4556 = vpop.f32.mrb[0].mxu0
        %v4557 = vpop.f32.mrb[0].mxu0
        %v4558 = vadd.f32 0.0, %v4557
        %v4559 = vpop.f32.mrb[0].mxu0
        %4560 = vmatprep.mubr.bf16.mxu0 0
        %4561 = vmatmul.mubr.bf16.gmra.mrb[0].mxu0 %v4465
        %v4562 = vpop.f32.mrb[0].mxu0
        %v4563 = vadd.f32 0.0, %v4562
        %v4564 = vpop.f32.mrb[0].mxu0
        %v4565 = vpop.f32.mrb[0].mxu0
        %v4566 = vadd.f32 0.0, %v4565
        %v4567 = vpop.f32.mrb[0].mxu0
        %4568 = vmatprep.mubr.bf16.mxu0 0
        %4569 = vmatmul.mubr.bf16.gmra.mrb[0].mxu0 %v4466
        %v4570 = vpop.f32.mrb[0].mxu0
        %v4571 = vadd.f32 0.0, %v4570
        %v4572 = vpop.f32.mrb[0].mxu0
        %v4573 = vpop.f32.mrb[0].mxu0
        %v4574 = vadd.f32 0.0, %v4573
        %v4575 = vpop.f32.mrb[0].mxu0
        %4576 = vmatprep.mubr.bf16.mxu0 0
        %4577 = vmatmul.mubr.bf16.gmra.mrb[0].mxu0 %v4467
        %v4578 = vpop.f32.mrb[0].mxu0
        %v4579 = vadd.f32 0.0, %v4578
        %v4580 = vpop.f32.mrb[0].mxu0
        %v4581 = vpop.f32.mrb[0].mxu0
        %v4582 = vadd.f32 0.0, %v4581
        %v4583 = vpop.f32.mrb[0].mxu0
        %4584 = vdwg.mxu0
        %v4585 = vld [vmem:[#allocation2] sm:$0xff]
        %v4586 = vld [vmem:[#allocation2 + $0x8] sm:$0xff]
        %v4587 = vld [vmem:[#allocation2 + $0x10] sm:$0xff]
        %v4588 = vld [vmem:[#allocation2 + $0x18] sm:$0xff]
        %v4589 = vld [vmem:[#allocation2 + $0x20] sm:$0xff]
        %v4590 = vld [vmem:[#allocation2 + $0x28] sm:$0xff]
        %v4591 = vld [vmem:[#allocation2 + $0x30] sm:$0xff]
        %v4592 = vld [vmem:[#allocation2 + $0x38] sm:$0xff]
        %v4593 = vadd.f32 %v4585, %v4555
        %v4594 = vadd.f32 %v4586, %v4558
        %v4595 = vadd.f32 %v4587, %v4563
        %v4596 = vadd.f32 %v4588, %v4566
        %v4597 = vadd.f32 %v4589, %v4571
        %v4598 = vadd.f32 %v4590, %v4574
        %v4599 = vadd.f32 %v4591, %v4579
        %v4600 = vadd.f32 %v4592, %v4582
        %4601 = vst [vmem:[#allocation2] sm:$0xff] %v4593
        %4602 = vst [vmem:[#allocation2 + $0x8] sm:$0xff] %v4594
        %4603 = vst [vmem:[#allocation2 + $0x10] sm:$0xff] %v4595
        %4604 = vst [vmem:[#allocation2 + $0x18] sm:$0xff] %v4596
        %4605 = vst [vmem:[#allocation2 + $0x20] sm:$0xff] %v4597
        %4606 = vst [vmem:[#allocation2 + $0x28] sm:$0xff] %v4598
        %4607 = vst [vmem:[#allocation2 + $0x30] sm:$0xff] %v4599
        %4608 = vst [vmem:[#allocation2 + $0x38] sm:$0xff] %v4600
        %v4609 = vld [vmem:[#allocation2] sm:$0xff]
        %v4610 = vld [vmem:[#allocation2 + $0x8] sm:$0xff]
        %v4611 = vld [vmem:[#allocation2 + $0x10] sm:$0xff]
        %v4612 = vld [vmem:[#allocation2 + $0x18] sm:$0xff]
        %v4613 = vld [vmem:[#allocation2 + $0x20] sm:$0xff]
        %v4614 = vld [vmem:[#allocation2 + $0x28] sm:$0xff]
        %v4615 = vld [vmem:[#allocation2 + $0x30] sm:$0xff]
        %v4616 = vld [vmem:[#allocation2 + $0x38] sm:$0xff]
        %v4617 = vld [vmem:[%s4] sm:$0x1]
        %v4619 = vlaneseq
        %v4620 = vshrl.u32 %v4619, 7
        %v4621 = vsub.s32 0, %v4620
        %v4622 = vrot.slane %v4617, %v4621
        %v4624 = vadd.f32 %v4609, %v4622
        %v4625 = vadd.f32 %v4610, %v4622
        %v4626 = vadd.f32 %v4611, %v4622
        %v4627 = vadd.f32 %v4612, %v4622
        %v4628 = vadd.f32 %v4613, %v4622
        %v4629 = vadd.f32 %v4614, %v4622
        %v4630 = vadd.f32 %v4615, %v4622
        %v4631 = vadd.f32 %v4616, %v4622
        %s4632 = smul.addr %s3230, 4
        %s4633 = scalar_lea.vmem %s251, %s4632
        %v4634 = vld [vmem:[%s4633] sm:$0xf]
        %v4635 = vld [vmem:[%s4633 + $0x4] sm:$0xf]
        %v4636 = vld [vmem:[%s4633 + $0x8] sm:$0x1]
        %v4637 = vld [vmem:[%s4633 + $0xc] sm:$0xf]
        %v4638 = vld [vmem:[%s4633 + $0x10] sm:$0xf]
        %v4639 = vld [vmem:[%s4633 + $0x14] sm:$0x1]
        %v4640 = vld [vmem:[%s4633 + $0x18] sm:$0xf]
        %v4641 = vld [vmem:[%s4633 + $0x1c] sm:$0xf]
        %v4642 = vld [vmem:[%s4633 + $0x20] sm:$0x1]
        %v4643 = vld [vmem:[%s4633 + $0x24] sm:$0xf]
        %v4644 = vld [vmem:[%s4633 + $0x28] sm:$0xf]
        %v4645 = vld [vmem:[%s4633 + $0x2c] sm:$0x1]
        %v4647 = vshrl.u32 %v4634, 16
        %v4649 = vrot.slane %v4647, 4
        %v4650 = vshll.u32 %v4634, 16
        %v4652 = vrot.slane %v4650, 5
        %v4653 = vor.u32 %v4649, %v4652
        %v4654 = vrot.slane %v4653, 4
        %v4656 = vshll.u32 %v4635, 16
        %v4658 = vrot.slane %v4656, 5
        %v4659 = vsel %vm2737, %v4654, %v4658
        %v4660 = vshrl.u32 %v4635, 16
        %v4662 = vrot.slane %v4660, 4
        %v4663 = vor.u32 %v4662, %v4658
        %v4664 = vrot.slane %v4663, 4
        %v4666 = vshll.u32 %v4636, 16
        %v4668 = vrot.slane %v4666, 5
        %v4669 = vsel %vm2737, %v4664, %v4668
        %v4671 = vshrl.u32 %v4637, 16
        %v4673 = vrot.slane %v4671, 4
        %v4674 = vshll.u32 %v4637, 16
        %v4676 = vrot.slane %v4674, 5
        %v4677 = vor.u32 %v4673, %v4676
        %v4678 = vrot.slane %v4677, 4
        %v4680 = vshll.u32 %v4638, 16
        %v4682 = vrot.slane %v4680, 5
        %v4683 = vsel %vm2737, %v4678, %v4682
        %v4684 = vshrl.u32 %v4638, 16
        %v4686 = vrot.slane %v4684, 4
        %v4687 = vor.u32 %v4686, %v4682
        %v4688 = vrot.slane %v4687, 4
        %v4690 = vshll.u32 %v4639, 16
        %v4692 = vrot.slane %v4690, 5
        %v4693 = vsel %vm2737, %v4688, %v4692
        %v4695 = vshrl.u32 %v4640, 16
        %v4697 = vrot.slane %v4695, 4
        %v4698 = vshll.u32 %v4640, 16
        %v4700 = vrot.slane %v4698, 5
        %v4701 = vor.u32 %v4697, %v4700
        %v4702 = vrot.slane %v4701, 4
        %v4704 = vshll.u32 %v4641, 16
        %v4706 = vrot.slane %v4704, 5
        %v4707 = vsel %vm2737, %v4702, %v4706
        %v4708 = vshrl.u32 %v4641, 16
        %v4710 = vrot.slane %v4708, 4
        %v4711 = vor.u32 %v4710, %v4706
        %v4712 = vrot.slane %v4711, 4
        %v4714 = vshll.u32 %v4642, 16
        %v4716 = vrot.slane %v4714, 5
        %v4717 = vsel %vm2737, %v4712, %v4716
        %v4719 = vshrl.u32 %v4643, 16
        %v4721 = vrot.slane %v4719, 4
        %v4722 = vshll.u32 %v4643, 16
        %v4724 = vrot.slane %v4722, 5
        %v4725 = vor.u32 %v4721, %v4724
        %v4726 = vrot.slane %v4725, 4
        %v4728 = vshll.u32 %v4644, 16
        %v4730 = vrot.slane %v4728, 5
        %v4731 = vsel %vm2737, %v4726, %v4730
        %v4732 = vshrl.u32 %v4644, 16
        %v4734 = vrot.slane %v4732, 4
        %v4735 = vor.u32 %v4734, %v4730
        %v4736 = vrot.slane %v4735, 4
        %v4738 = vshll.u32 %v4645, 16
        %v4740 = vrot.slane %v4738, 5
        %v4741 = vsel %vm2737, %v4736, %v4740
        %v4750 = vunpack.c.l.bf16 %v4659
        %v4751 = vunpack.c.l.bf16 %v4669
        %v4752 = vunpack.c.l.bf16 %v4683
        %v4753 = vunpack.c.l.bf16 %v4693
        %v4754 = vunpack.c.l.bf16 %v4707
        %v4755 = vunpack.c.l.bf16 %v4717
        %v4756 = vunpack.c.l.bf16 %v4731
        %v4757 = vunpack.c.l.bf16 %v4741
        %v4758 = vadd.f32 %v4624, %v4750
        %v4759 = vadd.f32 %v4625, %v4751
        %v4760 = vadd.f32 %v4626, %v4752
        %v4761 = vadd.f32 %v4627, %v4753
        %v4762 = vadd.f32 %v4628, %v4754
        %v4763 = vadd.f32 %v4629, %v4755
        %v4764 = vadd.f32 %v4630, %v4756
        %v4765 = vadd.f32 %v4631, %v4757
        %v4766 = vmax.f32 %v4758, 0.0
        %v4767 = vmax.f32 %v4759, 0.0
        %v4768 = vmax.f32 %v4760, 0.0
        %v4769 = vmax.f32 %v4761, 0.0
        %v4770 = vmax.f32 %v4762, 0.0
        %v4771 = vmax.f32 %v4763, 0.0
        %v4772 = vmax.f32 %v4764, 0.0
        %v4773 = vmax.f32 %v4765, 0.0
        %v4774 = vpack.c.bf16 %v4767, %v4766
        %v4775 = vpack.c.bf16 %v4769, %v4768
        %v4776 = vpack.c.bf16 %v4771, %v4770
        %v4777 = vpack.c.bf16 %v4773, %v4772
        %v4782 = vunpack.c.l.b16 %v4774
        %v4783 = vunpack.c.h.b16 %v4774
        %v4784 = vunpack.c.l.b16 %v4775
        %v4785 = vunpack.c.h.b16 %v4775
        %v4786 = vunpack.c.l.b16 %v4776
        %v4787 = vunpack.c.h.b16 %v4776
        %v4788 = vunpack.c.l.b16 %v4777
        %v4789 = vunpack.c.h.b16 %v4777
        %v4790 = vpack.c.b16 %v4782, %v4782
        %v4791 = vpack.c.b16 %v4783, %v4783
        %v4792 = vpack.c.b16 %v4784, %v4784
        %v4793 = vpack.c.b16 %v4785, %v4785
        %v4794 = vpack.c.b16 %v4786, %v4786
        %v4795 = vpack.c.b16 %v4787, %v4787
        %v4796 = vpack.c.b16 %v4788, %v4788
        %v4797 = vpack.c.b16 %v4789, %v4789
        %4806 = vst [vmem:[%s246] sm:$0xf] %v4790
        %4807 = vst [vmem:[%s246 + $0x4] sm:$0xf] %v4791
        %4808 = vst [vmem:[%s246 + $0x8] sm:$0xf] %v4792
        %4809 = vst [vmem:[%s246 + $0xc] sm:$0xf] %v4793
        %4810 = vst [vmem:[%s246 + $0x10] sm:$0xf] %v4794
        %4811 = vst [vmem:[%s246 + $0x14] sm:$0xf] %v4795
        %4812 = vst [vmem:[%s246 + $0x18] sm:$0xf] %v4796
        %4813 = vst [vmem:[%s246 + $0x1c] sm:$0xf] %v4797
        %s4814 = sand.u32 %s152, 1
        %s4815 = scalar_lea.sflag [#allocation6], %s4814
        %s4816 = sand.u32 %s152, 1
        %s4817 = smul.addr %s4816, 32
        %s4818 = scalar_lea.vmem [#allocation7], %s4817
        // Predicated region
        $region56: #{tpu_custom_call.1} parent=39 // pred_check
          %p4819 = pneg %p162
        $region57: #{tpu_custom_call.1} parent=39 // pred_check_branch
          %4821 = sbr.rel (%p4819) target = $region59
        $region58: #{tpu_custom_call.1} parent=39 // pred_region
          %s4822 = smul.u32 4, %s25
          %s4824 = ssub.s32 512, 512
          %4825 = vsyncadd %s4815, %s4824
          %s4826 = smul.addr %s4822, 2
          %s4827 = smul.addr %s24, 32
          %s4828 = sadd.s32 %s4826, %s4827
          %s4829 = smul.addr %s4828, 64
          %s4830 = scalar_lea.hbm %s5, %s4829
          %s4831 = sshll.u32 %s4818, 4
          %s4832 = int_to_ptr.vmem [resolvable:$true] %s4831
          %4837 = dma.vmem_to_hbm [thread:$0]  %s4832, 512, %s4830, %s4815, 64, 64, 4
        $region59: #{tpu_custom_call.1} parent=39 // pred_fallthru
          _
      $region40: #{tpu_custom_call.1} parent=5 // pred_fallthru
        _
      %p4838 = scmp.le.s32.totalorder 2, %s15
      // Predicated region
      $region60: #{tpu_custom_call.1} parent=5 // pred_check
        %p4839 = pneg %p4838
      $region61: #{tpu_custom_call.1} parent=5 // pred_check_branch
        %4841 = sbr.rel (%p4839) target = $region63
      $region62: #{tpu_custom_call.1} parent=5 // pred_region
        %s4842 = ssub.s32 %s15, 2
        // Predicated region
        $region64: #{tpu_custom_call.1} parent=62 // pred_check
          %p4843 = pneg %p168
        $region65: #{tpu_custom_call.1} parent=62 // pred_check_branch
          %4845 = sbr.rel (%p4843) target = $region67
        $region66: #{tpu_custom_call.1} parent=62 // pred_region
          %s4846 = sand.u32 %s153, 1
          %s4847 = scalar_lea.sflag [#allocation6], %s4846
          %s4848 = sand.u32 %s153, 1
          %s4849 = smul.addr %s4848, 32
          %s4850 = scalar_lea.vmem [#allocation7], %s4849
          %4851 = dma.done %s4847, 512
        $region67: #{tpu_custom_call.1} parent=62 // pred_fallthru
          _
      $region63: #{tpu_custom_call.1} parent=5 // pred_fallthru
        _
    $region6: #{tpu_custom_call.1} parent=1 // loop_footer
      %s19 = sadd.s32 1, %s15
    $region7: #{tpu_custom_call.1} parent=1 // loop_footer_branch
      %14 = sbr.rel target = $region3
    $region8: #{tpu_custom_call.1} parent=1 // loop_exit
      _
    %4852 = vsyncpa [#allocation5], 1
    %s4853 = scalar_lea.sflag [#allocation5], 1
    %4854 = vsyncpa %s4853, 1
    %4855 = vsyncpa [#allocation6], 1
    %s4856 = scalar_lea.sflag [#allocation6], 1
    %4857 = vsyncpa %s4856, 1

</llo_original>
